<compile_context>
chip_gen: v5e
topology: v5e:2x2
jax: 0.10.0
libtpu: 0.0.40
codegen_flags: <defaults>
</compile_context>

<pallas_src>
import functools

import jax
import jax.numpy as jnp
from jax import lax
from jax.experimental import pallas as pl
from jax.experimental.pallas import tpu as pltpu

BN_EPS = 1e-5


def _round_up(x, m):
    return (x + m - 1) // m * m


def _row_tiling(M):
    """Row-tile size and padded row count.  Prefers >= 2 row tiles (so grids
    have >= 2 'parallel' entries for v7x's 2 TensorCores) with small padding."""
    tm = 256
    m_pad = _round_up(M, tm)
    if m_pad // tm == 1:
        tm = 64 if M <= 128 else 128
        m_pad = _round_up(M, tm)
    return tm, m_pad


# ---------------- Pallas kernels ----------------

def _mm_stats_kernel(a_ref, b_ref, o_ref, s_ref, q_ref):
    """Single K-step: bf16 MXU matmul, bf16 output tile, and per-channel f32
    sum / sum-of-squares (BatchNorm partials) as a fused epilogue."""
    acc = jnp.dot(a_ref[...], b_ref[...], preferred_element_type=jnp.float32)
    o_ref[...] = acc.astype(o_ref.dtype)
    s_ref[...] = jnp.sum(acc, axis=0).reshape(s_ref.shape)
    q_ref[...] = jnp.sum(acc * acc, axis=0).reshape(q_ref.shape)


def _mm_stats_ktiled_kernel(a_ref, b_ref, o_ref, s_ref, q_ref, acc_ref):
    """K-tiled variant (only used when K > 1024): f32 VMEM accumulator, output
    tile and BN partials emitted on the last K step."""
    k = pl.program_id(2)

    @pl.when(k == 0)
    def _():
        acc_ref[...] = jnp.zeros_like(acc_ref)

    acc_ref[...] += jnp.dot(a_ref[...], b_ref[...],
                            preferred_element_type=jnp.float32)

    @pl.when(k == pl.num_programs(2) - 1)
    def _():
        acc = acc_ref[...]
        o_ref[...] = acc.astype(o_ref.dtype)
        s_ref[...] = jnp.sum(acc, axis=0).reshape(s_ref.shape)
        q_ref[...] = jnp.sum(acc * acc, axis=0).reshape(q_ref.shape)


def _bn_act_kernel(x_ref, sc_ref, bi_ref, o_ref, *, relu):
    y = x_ref[...].astype(jnp.float32) * sc_ref[...] + bi_ref[...]
    if relu:
        y = jnp.maximum(y, 0.0)
    o_ref[...] = y.astype(o_ref.dtype)


def _bn_act_add_kernel(x_ref, sc_ref, bi_ref, r_ref, o_ref, *, relu):
    """bn(x) + identity shortcut, then ReLU."""
    y = (x_ref[...].astype(jnp.float32) * sc_ref[...] + bi_ref[...]
         + r_ref[...].astype(jnp.float32))
    if relu:
        y = jnp.maximum(y, 0.0)
    o_ref[...] = y.astype(o_ref.dtype)


def _bn_act_add_bn_kernel(x_ref, sc_ref, bi_ref, r_ref, rsc_ref, rbi_ref,
                          o_ref, *, relu):
    """bn2(x) + bn_d(r) (shortcut BatchNorm folded in), then ReLU."""
    y = (x_ref[...].astype(jnp.float32) * sc_ref[...] + bi_ref[...]
         + r_ref[...].astype(jnp.float32) * rsc_ref[...] + rbi_ref[...])
    if relu:
        y = jnp.maximum(y, 0.0)
    o_ref[...] = y.astype(o_ref.dtype)


# ---------------- Matmul + BN-stats pipeline ----------------

def _matmul_with_stats(a_bf16, b_bf16, tm, m_pad):
    """(M, K) @ (K, N) -> bf16 (m_pad, N) output plus per-row-tile per-channel
    f32 sum / sum-of-squares.  K and N are lane-aligned by the caller; padded
    rows/columns are zero and do not perturb the result or the statistics."""
    M, K = a_bf16.shape
    K2, N = b_bf16.shape
    assert K == K2 and K % 128 == 0 and N % 128 == 0
    if m_pad > M:
        a_bf16 = jnp.pad(a_bf16, ((0, m_pad - M), (0, 0)))

    tn = 256 if N % 256 == 0 else 128
    gm, gn = m_pad // tm, N // tn
    out_shapes = (jax.ShapeDtypeStruct((m_pad, N), jnp.bfloat16),
                  jax.ShapeDtypeStruct((gm, 1, N), jnp.float32),
                  jax.ShapeDtypeStruct((gm, 1, N), jnp.float32))

    if K <= 1024:
        # Single K step: no accumulator scratch, no reduction grid axis.
        out, s, q = pl.pallas_call(
            _mm_stats_kernel,
            out_shape=out_shapes,
            grid=(gm, gn),
            in_specs=[pl.BlockSpec((tm, K), lambda i, j: (i, 0)),
                      pl.BlockSpec((K, tn), lambda i, j: (0, j))],
            out_specs=(pl.BlockSpec((tm, tn), lambda i, j: (i, j)),
                       pl.BlockSpec((1, 1, tn), lambda i, j: (i, 0, j)),
                       pl.BlockSpec((1, 1, tn), lambda i, j: (i, 0, j))),
            compiler_params=pltpu.CompilerParams(
                dimension_semantics=("parallel", "parallel")),
        )(a_bf16, b_bf16)
    else:
        tk = 512
        k_pad = _round_up(K, tk)
        a_bf16 = jnp.pad(a_bf16, ((0, 0), (0, k_pad - K)))
        b_bf16 = jnp.pad(b_bf16, ((0, k_pad - K), (0, 0)))
        gk = k_pad // tk
        out, s, q = pl.pallas_call(
            _mm_stats_ktiled_kernel,
            out_shape=out_shapes,
            grid=(gm, gn, gk),
            in_specs=[pl.BlockSpec((tm, tk), lambda i, j, k: (i, k)),
                      pl.BlockSpec((tk, tn), lambda i, j, k: (k, j))],
            out_specs=(pl.BlockSpec((tm, tn), lambda i, j, k: (i, j)),
                       pl.BlockSpec((1, 1, tn), lambda i, j, k: (i, 0, j)),
                       pl.BlockSpec((1, 1, tn), lambda i, j, k: (i, 0, j))),
            scratch_shapes=[pltpu.VMEM((tm, tn), jnp.float32)],
            compiler_params=pltpu.CompilerParams(
                dimension_semantics=("parallel", "parallel", "arbitrary")),
        )(a_bf16, b_bf16)

    return out, jnp.sum(s, axis=(0, 1)), jnp.sum(q, axis=(0, 1))


def _conv_bn_matmul(x_nhwc, w_oihw, stride, padding, fuse_w_1x1=None):
    """im2col conv with a fused per-channel BN-stats epilogue.  Optionally a
    1x1 / same-stride / pad-0 conv (the projection shortcut) is fused in by
    placing its weight at the centre-tap rows and appending along Cout.

    Returns (raw, s_sum, q_sum, geom): raw is the (m_pad, n_tot) bf16 pre-BN
    output; s_sum / q_sum are f32 per-channel sums over the M real rows."""
    N, H, W, Cin = x_nhwc.shape
    Cout, Cin2, KH, KW = w_oihw.shape
    assert Cin == Cin2
    HO = (H + 2 * padding - KH) // stride + 1
    WO = (W + 2 * padding - KW) // stride + 1
    M = N * HO * WO
    tm, m_pad = _row_tiling(M)

    K = KH * KW * Cin
    k_pad = _round_up(K, 128)

    # im2col patches (feature order kh, kw, cin) in bf16; the lane padding is
    # folded into the concat so the patch matrix is materialized exactly once.
    # TODO(synk): build these per M-tile inside the kernel (strided window
    #             loads) to avoid the KH*KW-duplicated patch matrix in HBM.
    xp = jnp.pad(x_nhwc, ((0, 0), (padding, padding), (padding, padding),
                          (0, 0))).astype(jnp.bfloat16)
    slabs = [xp[:, kh:kh + stride * HO:stride, kw:kw + stride * WO:stride, :]
             for kh in range(KH) for kw in range(KW)]
    if k_pad > K:
        slabs.append(jnp.zeros((N, HO, WO, k_pad - K), jnp.bfloat16))
    patches = jnp.concatenate(slabs, axis=-1).reshape(M, k_pad)

    # Weights -> (k_pad, n_tot); each Cout segment padded to a 128-lane mult.
    cout_pad = _round_up(Cout, 128)
    w2d = jnp.transpose(w_oihw, (2, 3, 1, 0)).reshape(K, Cout)
    w2d = jnp.pad(w2d.astype(jnp.float32),
                  ((0, k_pad - K), (0, cout_pad - Cout)))
    n_tot = cout_pad
    if fuse_w_1x1 is not None:
        # The 1x1 stride-s pad-0 conv reads exactly the centre-tap
        # (kh=KH//2, kw=KW//2) slab of these patches, so it shares the matmul.
        Cd = fuse_w_1x1.shape[0]
        cd_pad = _round_up(Cd, 128)
        ctr = (KH // 2) * KW + (KW // 2)
        wd = jnp.transpose(fuse_w_1x1.reshape(Cd, Cin), (1, 0)).astype(jnp.float32)
        wd_full = jnp.zeros((k_pad, cd_pad), jnp.float32)
        wd_full = wd_full.at[ctr * Cin:(ctr + 1) * Cin, :Cd].set(wd)
        w2d = jnp.concatenate([w2d, wd_full], axis=1)
        n_tot += cd_pad

    raw, s_sum, q_sum = _matmul_with_stats(
        patches, w2d.astype(jnp.bfloat16), tm, m_pad)
    geom = dict(M=M, m_pad=m_pad, tm=tm, HO=HO, WO=WO, cout_pad=cout_pad,
                n_tot=n_tot)
    return raw, s_sum, q_sum, geom


def _bn_affine(s_sum, q_sum, gamma, beta, m_rows):
    """Per-channel (scale, bias) for training-mode (batch-statistics) BN, as a
    tiny jnp reduction that XLA fuses (no extra kernel launch).  Zero-padded
    channels get scale = bias = 0."""
    inv_m = 1.0 / float(m_rows)
    mean = s_sum * inv_m
    var = jnp.maximum(q_sum * inv_m - mean * mean, 0.0)
    width = s_sum.shape[0]
    g = jnp.zeros((width,), jnp.float32).at[:gamma.shape[0]].set(
        gamma.astype(jnp.float32))
    b = jnp.zeros((width,), jnp.float32).at[:beta.shape[0]].set(
        beta.astype(jnp.float32))
    scale = g * lax.rsqrt(var + BN_EPS)
    bias = b - mean * scale
    return scale.reshape(1, width), bias.reshape(1, width)


def _bn_pass(kernel, specs_and_args, m_pad, tm, width):
    """Tiled, 'parallel' elementwise pass (bf16 out).  specs_and_args is a
    sequence of (array, kind, col_block) in kernel-argument order; kind 'row'
    uses a (tm, width) row-tiled block taken from column-block `col_block`,
    kind 'vec' is a (1, width) broadcast row."""
    in_specs, args = [], []
    for arr, kind, col in specs_and_args:
        if kind == 'vec':
            in_specs.append(pl.BlockSpec((1, width), lambda i: (0, 0)))
        else:
            in_specs.append(pl.BlockSpec((tm, width), lambda i, c=col: (i, c)))
        args.append(arr)
    return pl.pallas_call(
        kernel,
        out_shape=jax.ShapeDtypeStruct((m_pad, width), jnp.bfloat16),
        grid=(m_pad // tm,),
        in_specs=in_specs,
        out_specs=pl.BlockSpec((tm, width), lambda i: (i, 0)),
        compiler_params=pltpu.CompilerParams(dimension_semantics=("parallel",)),
    )(*args)


# ---------------- BasicBlock ----------------

def basic_block_nhwc(x_nhwc, p, stride=1):
    """One BasicBlock on an NHWC activation; returns NHWC bf16."""
    x_nhwc = x_nhwc.astype(jnp.bfloat16)
    N, H, W, Cin = x_nhwc.shape
    Cout = p['conv1_w'].shape[0]
    has_down = 'down_w' in p

    # conv1 (3x3, stride) — with the 1x1 projection shortcut fused along Cout
    # when it exists.
    raw1, s1, q1, g1 = _conv_bn_matmul(
        x_nhwc, p['conv1_w'], stride, 1,
        fuse_w_1x1=p['down_w'] if has_down else None)
    M, m_pad, tm = g1['M'], g1['m_pad'], g1['tm']
    HO, WO, cp = g1['HO'], g1['WO'], g1['cout_pad']

    # bn1 + ReLU on conv1's columns only (the fused shortcut columns stay raw
    # and are consumed, with their own BN affine, in the final pass).
    scale1, bias1 = _bn_affine(s1[:cp], q1[:cp], p['bn1_g'], p['bn1_b'], M)
    y1 = _bn_pass(functools.partial(_bn_act_kernel, relu=True),
                  [(raw1, 'row', 0), (scale1, 'vec', 0), (bias1, 'vec', 0)],
                  m_pad, tm, cp)

    # conv2 (3x3, stride 1) on the bn1 output.
    y1_nhwc = y1[:M, :Cout].reshape(N, HO, WO, Cout)
    raw2, s2, q2, g2 = _conv_bn_matmul(y1_nhwc, p['conv2_w'], 1, 1)
    assert g2['M'] == M and g2['m_pad'] == m_pad and g2['tm'] == tm
    assert g2['cout_pad'] == cp
    scale2, bias2 = _bn_affine(s2[:cp], q2[:cp], p['bn2_g'], p['bn2_b'], M)

    # bn2 + shortcut add + final ReLU, all in one pass.
    if has_down:
        scale_d, bias_d = _bn_affine(s1[cp:], q1[cp:], p['down_g'],
                                     p['down_b'], M)
        out2d = _bn_pass(
            functools.partial(_bn_act_add_bn_kernel, relu=True),
            [(raw2, 'row', 0), (scale2, 'vec', 0), (bias2, 'vec', 0),
             (raw1, 'row', 1),                 # shortcut columns of fused conv1
             (scale_d, 'vec', 0), (bias_d, 'vec', 0)],
            m_pad, tm, cp)
    else:
        # Identity shortcut: stride == 1 and Cin == Cout by construction.
        sc2d = x_nhwc.reshape(M, Cin)
        if m_pad > M or cp > Cin:
            sc2d = jnp.pad(sc2d, ((0, m_pad - M), (0, cp - Cin)))
        out2d = _bn_pass(
            functools.partial(_bn_act_add_kernel, relu=True),
            [(raw2, 'row', 0), (scale2, 'vec', 0), (bias2, 'vec', 0),
             (sc2d, 'row', 0)],
            m_pad, tm, cp)

    return out2d[:M, :Cout].reshape(N, HO, WO, Cout)


def basic_block_forward(params, x_nchw, stride=1):
    """PyTorch-facing interface: NCHW f32 in, NCHW f32 out."""
    x = jnp.transpose(x_nchw, (0, 2, 3, 1))                 # NCHW -> NHWC
    y = basic_block_nhwc(x, params, stride)
    return jnp.transpose(y, (0, 3, 1, 2)).astype(jnp.float32)  # NHWC -> NCHW


def init_basic_block_params(key, in_chan, out_chan, stride):
    keys = iter(jax.random.split(key, 12))

    def conv_w(c_out, c_in, k):
        fan_in = c_in * k * k
        return (jax.random.normal(next(keys), (c_out, c_in, k, k), jnp.float32)
                / jnp.sqrt(jnp.float32(fan_in)))

    def bn_p(c):
        g = 1.0 + 0.1 * jax.random.normal(next(keys), (c,), jnp.float32)
        b = 0.1 * jax.random.normal(next(keys), (c,), jnp.float32)
        return g, b

    g1, b1 = bn_p(out_chan)
    g2, b2 = bn_p(out_chan)
    p = {'conv1_w': conv_w(out_chan, in_chan, 3), 'bn1_g': g1, 'bn1_b': b1,
         'conv2_w': conv_w(out_chan, out_chan, 3), 'bn2_g': g2, 'bn2_b': b2}
    if in_chan != out_chan or stride != 1:
        gd, bd = bn_p(out_chan)
        p['down_w'] = conv_w(out_chan, in_chan, 1)
        p['down_g'] = gd
        p['down_b'] = bd
    return p


if __name__ == "__main__":
    key = jax.random.PRNGKey(0)
    pkey1, pkey2, xkey = jax.random.split(key, 3)

    IN_CH, OUT_CH, STRIDE = 32, 64, 2
    # Block 1: projection shortcut (stride 2, channel change); block 2: identity.
    params_ds = init_basic_block_params(pkey1, IN_CH, OUT_CH, STRIDE)
    params_id = init_basic_block_params(pkey2, OUT_CH, OUT_CH, 1)

    # Small NCHW input (PyTorch convention): batch=2, channels=32, spatial=16.
    x = jax.random.normal(xkey, (2, IN_CH, 16, 16), jnp.float32)

    @jax.jit
    def fwd(p_ds, p_id, x_nchw):
        # Stay in NHWC between the two blocks (one layout transpose in, one out).
        h = jnp.transpose(x_nchw, (0, 2, 3, 1))
        h = basic_block_nhwc(h, p_ds, STRIDE)     # projection-shortcut block
        h = basic_block_nhwc(h, p_id, 1)          # identity-shortcut block
        return jnp.transpose(h, (0, 3, 1, 2)).astype(jnp.float32)

    y = fwd(params_ds, params_id, x)
    jax.block_until_ready(y)

    assert y.shape == (2, OUT_CH, 8, 8), y.shape
    assert bool(jnp.all(jnp.isfinite(y)))
    assert bool(jnp.all(y >= 0.0))          # final ReLU
    print("KERNEL_OK")
</pallas_src>

<mosaic_0001>
module attributes {stable_mosaic.version = 11 : i64} {
  func.func @_mm_stats_kernel(%arg0: i32, %arg1: i32, %arg2: memref<64x384xbf16, #tpu.memory_space<vmem>>, %arg3: memref<384x256xbf16, #tpu.memory_space<vmem>>, %arg4: memref<64x256xbf16, #tpu.memory_space<vmem>>, %arg5: memref<1x1x256xf32, #tpu.memory_space<vmem>>, %arg6: memref<1x1x256xf32, #tpu.memory_space<vmem>>) attributes {dimension_semantics = [#tpu.dimension_semantics<parallel>, #tpu.dimension_semantics<parallel>], iteration_bounds = array<i64: 2, 1>, scalar_prefetch = 0 : i64, scratch_operands = 0 : i64, tpu.core_type = #tpu.core_type<tc>, window_params = [{transform_indices = @transform_0, window_bounds = array<i64: 64, 384>}, {transform_indices = @transform_1, window_bounds = array<i64: 384, 256>}, {transform_indices = @transform_2, window_bounds = array<i64: 64, 256>}, {transform_indices = @transform_3, window_bounds = array<i64: 1, 1, 256>}, {transform_indices = @transform_4, window_bounds = array<i64: 1, 1, 256>}]} {
    %c0 = arith.constant 0 : index
    %c0_0 = arith.constant 0 : index
    %0 = vector.load %arg2[%c0, %c0_0] : memref<64x384xbf16, #tpu.memory_space<vmem>>, vector<64x384xbf16>
    %c0_1 = arith.constant 0 : index
    %c0_2 = arith.constant 0 : index
    %1 = vector.load %arg3[%c0_1, %c0_2] : memref<384x256xbf16, #tpu.memory_space<vmem>>, vector<384x256xbf16>
    %cst = arith.constant dense<0.000000e+00> : vector<64x256xf32>
    %2 = tpu.matmul %0, %1, %cst {dimension_numbers = #tpu.dot_dimension_numbers<[1], [0], [0], [1], [0, 0, 1, 1], [], []>} : vector<64x384xbf16>, vector<384x256xbf16>, vector<64x256xf32> -> vector<64x256xf32>
    %3 = arith.truncf %2 : vector<64x256xf32> to vector<64x256xbf16>
    %c0_3 = arith.constant 0 : index
    %c0_4 = arith.constant 0 : index
    %4 = vector.load %arg4[%c0_3, %c0_4] : memref<64x256xbf16, #tpu.memory_space<vmem>>, vector<64x256xbf16>
    tpu.vector_store %arg4[%c0_3, %c0_4], %3 {strides = array<i32>} : memref<64x256xbf16, #tpu.memory_space<vmem>>, vector<64x256xbf16>,
    %cst_5 = arith.constant dense<0.000000e+00> : vector<256xf32>
    %5 = vector.multi_reduction <add>, %2, %cst_5 [0] : vector<64x256xf32> to vector<256xf32>
    %6 = vector.shape_cast %5 : vector<256xf32> to vector<1x1x256xf32>
    %c0_6 = arith.constant 0 : index
    %c0_7 = arith.constant 0 : index
    %c0_8 = arith.constant 0 : index
    %7 = vector.load %arg5[%c0_6, %c0_7, %c0_8] : memref<1x1x256xf32, #tpu.memory_space<vmem>>, vector<1x1x256xf32>
    tpu.vector_store %arg5[%c0_6, %c0_7, %c0_8], %6 {strides = array<i32>} : memref<1x1x256xf32, #tpu.memory_space<vmem>>, vector<1x1x256xf32>,
    %8 = arith.mulf %2, %2 : vector<64x256xf32>
    %cst_9 = arith.constant dense<0.000000e+00> : vector<256xf32>
    %9 = vector.multi_reduction <add>, %8, %cst_9 [0] : vector<64x256xf32> to vector<256xf32>
    %10 = vector.shape_cast %9 : vector<256xf32> to vector<1x1x256xf32>
    %c0_10 = arith.constant 0 : index
    %c0_11 = arith.constant 0 : index
    %c0_12 = arith.constant 0 : index
    %11 = vector.load %arg6[%c0_10, %c0_11, %c0_12] : memref<1x1x256xf32, #tpu.memory_space<vmem>>, vector<1x1x256xf32>
    tpu.vector_store %arg6[%c0_10, %c0_11, %c0_12], %10 {strides = array<i32>} : memref<1x1x256xf32, #tpu.memory_space<vmem>>, vector<1x1x256xf32>,
    return
  }
  func.func @transform_0(%arg0: i32, %arg1: i32) -> (i32, i32) {
    %c0_i32 = arith.constant 0 : i32
    %c0_i32_0 = arith.constant 0 : i32
    return %arg0, %c0_i32 : i32, i32
  }
  func.func @transform_1(%arg0: i32, %arg1: i32) -> (i32, i32) {
    %c0_i32 = arith.constant 0 : i32
    %c0_i32_0 = arith.constant 0 : i32
    return %c0_i32, %arg1 : i32, i32
  }
  func.func @transform_2(%arg0: i32, %arg1: i32) -> (i32, i32) {
    %c0_i32 = arith.constant 0 : i32
    return %arg0, %arg1 : i32, i32
  }
  func.func @transform_3(%arg0: i32, %arg1: i32) -> (i32, i32, i32) {
    %c0_i32 = arith.constant 0 : i32
    %c0_i32_0 = arith.constant 0 : i32
    return %arg0, %c0_i32, %arg1 : i32, i32, i32
  }
  func.func @transform_4(%arg0: i32, %arg1: i32) -> (i32, i32, i32) {
    %c0_i32 = arith.constant 0 : i32
    %c0_i32_0 = arith.constant 0 : i32
    return %arg0, %c0_i32, %arg1 : i32, i32, i32
  }
}

module attributes {stable_mosaic.version = 11 : i64} {
  func.func @_bn_act_kernel(%arg0: i32, %arg1: memref<64x128xbf16, #tpu.memory_space<vmem>>, %arg2: memref<1x128xf32, #tpu.memory_space<vmem>>, %arg3: memref<1x128xf32, #tpu.memory_space<vmem>>, %arg4: memref<64x128xbf16, #tpu.memory_space<vmem>>) attributes {dimension_semantics = [#tpu.dimension_semantics<parallel>], iteration_bounds = array<i64: 2>, scalar_prefetch = 0 : i64, scratch_operands = 0 : i64, tpu.core_type = #tpu.core_type<tc>, window_params = [{transform_indices = @transform_0, window_bounds = array<i64: 64, 128>}, {pipeline_mode = #tpu.pipeline_mode<synchronous>, transform_indices = @transform_1, window_bounds = array<i64: 1, 128>}, {pipeline_mode = #tpu.pipeline_mode<synchronous>, transform_indices = @transform_2, window_bounds = array<i64: 1, 128>}, {transform_indices = @transform_3, window_bounds = array<i64: 64, 128>}]} {
    %c0 = arith.constant 0 : index
    %c0_0 = arith.constant 0 : index
    %0 = vector.load %arg1[%c0, %c0_0] : memref<64x128xbf16, #tpu.memory_space<vmem>>, vector<64x128xbf16>
    %1 = arith.extf %0 : vector<64x128xbf16> to vector<64x128xf32>
    %c0_1 = arith.constant 0 : index
    %c0_2 = arith.constant 0 : index
    %2 = vector.load %arg2[%c0_1, %c0_2] : memref<1x128xf32, #tpu.memory_space<vmem>>, vector<1x128xf32>
    %3 = vector.broadcast %2 : vector<1x128xf32> to vector<64x128xf32>
    %4 = arith.mulf %1, %3 : vector<64x128xf32>
    %c0_3 = arith.constant 0 : index
    %c0_4 = arith.constant 0 : index
    %5 = vector.load %arg3[%c0_3, %c0_4] : memref<1x128xf32, #tpu.memory_space<vmem>>, vector<1x128xf32>
    %6 = vector.broadcast %5 : vector<1x128xf32> to vector<64x128xf32>
    %7 = arith.addf %4, %6 : vector<64x128xf32>
    %cst = arith.constant 0.000000e+00 : f32
    %8 = vector.broadcast %cst : f32 to vector<64x128xf32>
    %9 = arith.maximumf %7, %8 : vector<64x128xf32>
    %10 = arith.truncf %9 : vector<64x128xf32> to vector<64x128xbf16>
    %c0_5 = arith.constant 0 : index
    %c0_6 = arith.constant 0 : index
    %11 = vector.load %arg4[%c0_5, %c0_6] : memref<64x128xbf16, #tpu.memory_space<vmem>>, vector<64x128xbf16>
    tpu.vector_store %arg4[%c0_5, %c0_6], %10 {strides = array<i32>} : memref<64x128xbf16, #tpu.memory_space<vmem>>, vector<64x128xbf16>,
    return
  }
  func.func @transform_0(%arg0: i32) -> (i32, i32) {
    %c0_i32 = arith.constant 0 : i32
    %c0_i32_0 = arith.constant 0 : i32
    return %arg0, %c0_i32 : i32, i32
  }
  func.func @transform_1(%arg0: i32) -> (i32, i32) {
    %c0_i32 = arith.constant 0 : i32
    %c0_i32_0 = arith.constant 0 : i32
    %c0_i32_1 = arith.constant 0 : i32
    return %c0_i32, %c0_i32_0 : i32, i32
  }
  func.func @transform_2(%arg0: i32) -> (i32, i32) {
    %c0_i32 = arith.constant 0 : i32
    %c0_i32_0 = arith.constant 0 : i32
    %c0_i32_1 = arith.constant 0 : i32
    return %c0_i32, %c0_i32_0 : i32, i32
  }
  func.func @transform_3(%arg0: i32) -> (i32, i32) {
    %c0_i32 = arith.constant 0 : i32
    %c0_i32_0 = arith.constant 0 : i32
    return %arg0, %c0_i32 : i32, i32
  }
}

module attributes {stable_mosaic.version = 11 : i64} {
  func.func @_mm_stats_kernel(%arg0: i32, %arg1: i32, %arg2: memref<64x640xbf16, #tpu.memory_space<vmem>>, %arg3: memref<640x128xbf16, #tpu.memory_space<vmem>>, %arg4: memref<64x128xbf16, #tpu.memory_space<vmem>>, %arg5: memref<1x1x128xf32, #tpu.memory_space<vmem>>, %arg6: memref<1x1x128xf32, #tpu.memory_space<vmem>>) attributes {dimension_semantics = [#tpu.dimension_semantics<parallel>, #tpu.dimension_semantics<parallel>], iteration_bounds = array<i64: 2, 1>, scalar_prefetch = 0 : i64, scratch_operands = 0 : i64, tpu.core_type = #tpu.core_type<tc>, window_params = [{transform_indices = @transform_0, window_bounds = array<i64: 64, 640>}, {transform_indices = @transform_1, window_bounds = array<i64: 640, 128>}, {transform_indices = @transform_2, window_bounds = array<i64: 64, 128>}, {transform_indices = @transform_3, window_bounds = array<i64: 1, 1, 128>}, {transform_indices = @transform_4, window_bounds = array<i64: 1, 1, 128>}]} {
    %c0 = arith.constant 0 : index
    %c0_0 = arith.constant 0 : index
    %0 = vector.load %arg2[%c0, %c0_0] : memref<64x640xbf16, #tpu.memory_space<vmem>>, vector<64x640xbf16>
    %c0_1 = arith.constant 0 : index
    %c0_2 = arith.constant 0 : index
    %1 = vector.load %arg3[%c0_1, %c0_2] : memref<640x128xbf16, #tpu.memory_space<vmem>>, vector<640x128xbf16>
    %cst = arith.constant dense<0.000000e+00> : vector<64x128xf32>
    %2 = tpu.matmul %0, %1, %cst {dimension_numbers = #tpu.dot_dimension_numbers<[1], [0], [0], [1], [0, 0, 1, 1], [], []>} : vector<64x640xbf16>, vector<640x128xbf16>, vector<64x128xf32> -> vector<64x128xf32>
    %3 = arith.truncf %2 : vector<64x128xf32> to vector<64x128xbf16>
    %c0_3 = arith.constant 0 : index
    %c0_4 = arith.constant 0 : index
    %4 = vector.load %arg4[%c0_3, %c0_4] : memref<64x128xbf16, #tpu.memory_space<vmem>>, vector<64x128xbf16>
    tpu.vector_store %arg4[%c0_3, %c0_4], %3 {strides = array<i32>} : memref<64x128xbf16, #tpu.memory_space<vmem>>, vector<64x128xbf16>,
    %cst_5 = arith.constant dense<0.000000e+00> : vector<128xf32>
    %5 = vector.multi_reduction <add>, %2, %cst_5 [0] : vector<64x128xf32> to vector<128xf32>
    %6 = vector.shape_cast %5 : vector<128xf32> to vector<1x1x128xf32>
    %c0_6 = arith.constant 0 : index
    %c0_7 = arith.constant 0 : index
    %c0_8 = arith.constant 0 : index
    %7 = vector.load %arg5[%c0_6, %c0_7, %c0_8] : memref<1x1x128xf32, #tpu.memory_space<vmem>>, vector<1x1x128xf32>
    tpu.vector_store %arg5[%c0_6, %c0_7, %c0_8], %6 {strides = array<i32>} : memref<1x1x128xf32, #tpu.memory_space<vmem>>, vector<1x1x128xf32>,
    %8 = arith.mulf %2, %2 : vector<64x128xf32>
    %cst_9 = arith.constant dense<0.000000e+00> : vector<128xf32>
    %9 = vector.multi_reduction <add>, %8, %cst_9 [0] : vector<64x128xf32> to vector<128xf32>
    %10 = vector.shape_cast %9 : vector<128xf32> to vector<1x1x128xf32>
    %c0_10 = arith.constant 0 : index
    %c0_11 = arith.constant 0 : index
    %c0_12 = arith.constant 0 : index
    %11 = vector.load %arg6[%c0_10, %c0_11, %c0_12] : memref<1x1x128xf32, #tpu.memory_space<vmem>>, vector<1x1x128xf32>
    tpu.vector_store %arg6[%c0_10, %c0_11, %c0_12], %10 {strides = array<i32>} : memref<1x1x128xf32, #tpu.memory_space<vmem>>, vector<1x1x128xf32>,
    return
  }
  func.func @transform_0(%arg0: i32, %arg1: i32) -> (i32, i32) {
    %c0_i32 = arith.constant 0 : i32
    %c0_i32_0 = arith.constant 0 : i32
    return %arg0, %c0_i32 : i32, i32
  }
  func.func @transform_1(%arg0: i32, %arg1: i32) -> (i32, i32) {
    %c0_i32 = arith.constant 0 : i32
    %c0_i32_0 = arith.constant 0 : i32
    return %c0_i32, %arg1 : i32, i32
  }
  func.func @transform_2(%arg0: i32, %arg1: i32) -> (i32, i32) {
    %c0_i32 = arith.constant 0 : i32
    return %arg0, %arg1 : i32, i32
  }
  func.func @transform_3(%arg0: i32, %arg1: i32) -> (i32, i32, i32) {
    %c0_i32 = arith.constant 0 : i32
    %c0_i32_0 = arith.constant 0 : i32
    return %arg0, %c0_i32, %arg1 : i32, i32, i32
  }
  func.func @transform_4(%arg0: i32, %arg1: i32) -> (i32, i32, i32) {
    %c0_i32 = arith.constant 0 : i32
    %c0_i32_0 = arith.constant 0 : i32
    return %arg0, %c0_i32, %arg1 : i32, i32, i32
  }
}

module attributes {stable_mosaic.version = 11 : i64} {
  func.func @_bn_act_add_bn_kernel(%arg0: i32, %arg1: memref<64x128xbf16, #tpu.memory_space<vmem>>, %arg2: memref<1x128xf32, #tpu.memory_space<vmem>>, %arg3: memref<1x128xf32, #tpu.memory_space<vmem>>, %arg4: memref<64x128xbf16, #tpu.memory_space<vmem>>, %arg5: memref<1x128xf32, #tpu.memory_space<vmem>>, %arg6: memref<1x128xf32, #tpu.memory_space<vmem>>, %arg7: memref<64x128xbf16, #tpu.memory_space<vmem>>) attributes {dimension_semantics = [#tpu.dimension_semantics<parallel>], iteration_bounds = array<i64: 2>, scalar_prefetch = 0 : i64, scratch_operands = 0 : i64, tpu.core_type = #tpu.core_type<tc>, window_params = [{transform_indices = @transform_0, window_bounds = array<i64: 64, 128>}, {pipeline_mode = #tpu.pipeline_mode<synchronous>, transform_indices = @transform_1, window_bounds = array<i64: 1, 128>}, {pipeline_mode = #tpu.pipeline_mode<synchronous>, transform_indices = @transform_2, window_bounds = array<i64: 1, 128>}, {transform_indices = @transform_3, window_bounds = array<i64: 64, 128>}, {pipeline_mode = #tpu.pipeline_mode<synchronous>, transform_indices = @transform_4, window_bounds = array<i64: 1, 128>}, {pipeline_mode = #tpu.pipeline_mode<synchronous>, transform_indices = @transform_5, window_bounds = array<i64: 1, 128>}, {transform_indices = @transform_6, window_bounds = array<i64: 64, 128>}]} {
    %c0 = arith.constant 0 : index
    %c0_0 = arith.constant 0 : index
    %0 = vector.load %arg1[%c0, %c0_0] : memref<64x128xbf16, #tpu.memory_space<vmem>>, vector<64x128xbf16>
    %1 = arith.extf %0 : vector<64x128xbf16> to vector<64x128xf32>
    %c0_1 = arith.constant 0 : index
    %c0_2 = arith.constant 0 : index
    %2 = vector.load %arg2[%c0_1, %c0_2] : memref<1x128xf32, #tpu.memory_space<vmem>>, vector<1x128xf32>
    %3 = vector.broadcast %2 : vector<1x128xf32> to vector<64x128xf32>
    %4 = arith.mulf %1, %3 : vector<64x128xf32>
    %c0_3 = arith.constant 0 : index
    %c0_4 = arith.constant 0 : index
    %5 = vector.load %arg3[%c0_3, %c0_4] : memref<1x128xf32, #tpu.memory_space<vmem>>, vector<1x128xf32>
    %6 = vector.broadcast %5 : vector<1x128xf32> to vector<64x128xf32>
    %7 = arith.addf %4, %6 : vector<64x128xf32>
    %c0_5 = arith.constant 0 : index
    %c0_6 = arith.constant 0 : index
    %8 = vector.load %arg4[%c0_5, %c0_6] : memref<64x128xbf16, #tpu.memory_space<vmem>>, vector<64x128xbf16>
    %9 = arith.extf %8 : vector<64x128xbf16> to vector<64x128xf32>
    %c0_7 = arith.constant 0 : index
    %c0_8 = arith.constant 0 : index
    %10 = vector.load %arg5[%c0_7, %c0_8] : memref<1x128xf32, #tpu.memory_space<vmem>>, vector<1x128xf32>
    %11 = vector.broadcast %10 : vector<1x128xf32> to vector<64x128xf32>
    %12 = arith.mulf %9, %11 : vector<64x128xf32>
    %13 = arith.addf %7, %12 : vector<64x128xf32>
    %c0_9 = arith.constant 0 : index
    %c0_10 = arith.constant 0 : index
    %14 = vector.load %arg6[%c0_9, %c0_10] : memref<1x128xf32, #tpu.memory_space<vmem>>, vector<1x128xf32>
    %15 = vector.broadcast %14 : vector<1x128xf32> to vector<64x128xf32>
    %16 = arith.addf %13, %15 : vector<64x128xf32>
    %cst = arith.constant 0.000000e+00 : f32
    %17 = vector.broadcast %cst : f32 to vector<64x128xf32>
    %18 = arith.maximumf %16, %17 : vector<64x128xf32>
    %19 = arith.truncf %18 : vector<64x128xf32> to vector<64x128xbf16>
    %c0_11 = arith.constant 0 : index
    %c0_12 = arith.constant 0 : index
    %20 = vector.load %arg7[%c0_11, %c0_12] : memref<64x128xbf16, #tpu.memory_space<vmem>>, vector<64x128xbf16>
    tpu.vector_store %arg7[%c0_11, %c0_12], %19 {strides = array<i32>} : memref<64x128xbf16, #tpu.memory_space<vmem>>, vector<64x128xbf16>,
    return
  }
  func.func @transform_0(%arg0: i32) -> (i32, i32) {
    %c0_i32 = arith.constant 0 : i32
    %c0_i32_0 = arith.constant 0 : i32
    return %arg0, %c0_i32 : i32, i32
  }
  func.func @transform_1(%arg0: i32) -> (i32, i32) {
    %c0_i32 = arith.constant 0 : i32
    %c0_i32_0 = arith.constant 0 : i32
    %c0_i32_1 = arith.constant 0 : i32
    return %c0_i32, %c0_i32_0 : i32, i32
  }
  func.func @transform_2(%arg0: i32) -> (i32, i32) {
    %c0_i32 = arith.constant 0 : i32
    %c0_i32_0 = arith.constant 0 : i32
    %c0_i32_1 = arith.constant 0 : i32
    return %c0_i32, %c0_i32_0 : i32, i32
  }
  func.func @transform_3(%arg0: i32) -> (i32, i32) {
    %c1_i32 = arith.constant 1 : i32
    %c0_i32 = arith.constant 0 : i32
    return %arg0, %c1_i32 : i32, i32
  }
  func.func @transform_4(%arg0: i32) -> (i32, i32) {
    %c0_i32 = arith.constant 0 : i32
    %c0_i32_0 = arith.constant 0 : i32
    %c0_i32_1 = arith.constant 0 : i32
    return %c0_i32, %c0_i32_0 : i32, i32
  }
  func.func @transform_5(%arg0: i32) -> (i32, i32) {
    %c0_i32 = arith.constant 0 : i32
    %c0_i32_0 = arith.constant 0 : i32
    %c0_i32_1 = arith.constant 0 : i32
    return %c0_i32, %c0_i32_0 : i32, i32
  }
  func.func @transform_6(%arg0: i32) -> (i32, i32) {
    %c0_i32 = arith.constant 0 : i32
    %c0_i32_0 = arith.constant 0 : i32
    return %arg0, %c0_i32 : i32, i32
  }
}

module attributes {stable_mosaic.version = 11 : i64} {
  func.func @_bn_act_kernel(%arg0: i32, %arg1: memref<64x128xbf16, #tpu.memory_space<vmem>>, %arg2: memref<1x128xf32, #tpu.memory_space<vmem>>, %arg3: memref<1x128xf32, #tpu.memory_space<vmem>>, %arg4: memref<64x128xbf16, #tpu.memory_space<vmem>>) attributes {dimension_semantics = [#tpu.dimension_semantics<parallel>], iteration_bounds = array<i64: 2>, scalar_prefetch = 0 : i64, scratch_operands = 0 : i64, tpu.core_type = #tpu.core_type<tc>, window_params = [{transform_indices = @transform_0, window_bounds = array<i64: 64, 128>}, {pipeline_mode = #tpu.pipeline_mode<synchronous>, transform_indices = @transform_1, window_bounds = array<i64: 1, 128>}, {pipeline_mode = #tpu.pipeline_mode<synchronous>, transform_indices = @transform_2, window_bounds = array<i64: 1, 128>}, {transform_indices = @transform_3, window_bounds = array<i64: 64, 128>}]} {
    %c0 = arith.constant 0 : index
    %c0_0 = arith.constant 0 : index
    %0 = vector.load %arg1[%c0, %c0_0] : memref<64x128xbf16, #tpu.memory_space<vmem>>, vector<64x128xbf16>
    %1 = arith.extf %0 : vector<64x128xbf16> to vector<64x128xf32>
    %c0_1 = arith.constant 0 : index
    %c0_2 = arith.constant 0 : index
    %2 = vector.load %arg2[%c0_1, %c0_2] : memref<1x128xf32, #tpu.memory_space<vmem>>, vector<1x128xf32>
    %3 = vector.broadcast %2 : vector<1x128xf32> to vector<64x128xf32>
    %4 = arith.mulf %1, %3 : vector<64x128xf32>
    %c0_3 = arith.constant 0 : index
    %c0_4 = arith.constant 0 : index
    %5 = vector.load %arg3[%c0_3, %c0_4] : memref<1x128xf32, #tpu.memory_space<vmem>>, vector<1x128xf32>
    %6 = vector.broadcast %5 : vector<1x128xf32> to vector<64x128xf32>
    %7 = arith.addf %4, %6 : vector<64x128xf32>
    %cst = arith.constant 0.000000e+00 : f32
    %8 = vector.broadcast %cst : f32 to vector<64x128xf32>
    %9 = arith.maximumf %7, %8 : vector<64x128xf32>
    %10 = arith.truncf %9 : vector<64x128xf32> to vector<64x128xbf16>
    %c0_5 = arith.constant 0 : index
    %c0_6 = arith.constant 0 : index
    %11 = vector.load %arg4[%c0_5, %c0_6] : memref<64x128xbf16, #tpu.memory_space<vmem>>, vector<64x128xbf16>
    tpu.vector_store %arg4[%c0_5, %c0_6], %10 {strides = array<i32>} : memref<64x128xbf16, #tpu.memory_space<vmem>>, vector<64x128xbf16>,
    return
  }
  func.func @transform_0(%arg0: i32) -> (i32, i32) {
    %c0_i32 = arith.constant 0 : i32
    %c0_i32_0 = arith.constant 0 : i32
    return %arg0, %c0_i32 : i32, i32
  }
  func.func @transform_1(%arg0: i32) -> (i32, i32) {
    %c0_i32 = arith.constant 0 : i32
    %c0_i32_0 = arith.constant 0 : i32
    %c0_i32_1 = arith.constant 0 : i32
    return %c0_i32, %c0_i32_0 : i32, i32
  }
  func.func @transform_2(%arg0: i32) -> (i32, i32) {
    %c0_i32 = arith.constant 0 : i32
    %c0_i32_0 = arith.constant 0 : i32
    %c0_i32_1 = arith.constant 0 : i32
    return %c0_i32, %c0_i32_0 : i32, i32
  }
  func.func @transform_3(%arg0: i32) -> (i32, i32) {
    %c0_i32 = arith.constant 0 : i32
    %c0_i32_0 = arith.constant 0 : i32
    return %arg0, %c0_i32 : i32, i32
  }
}

module attributes {stable_mosaic.version = 11 : i64} {
  func.func @_bn_act_add_kernel(%arg0: i32, %arg1: memref<64x128xbf16, #tpu.memory_space<vmem>>, %arg2: memref<1x128xf32, #tpu.memory_space<vmem>>, %arg3: memref<1x128xf32, #tpu.memory_space<vmem>>, %arg4: memref<64x128xbf16, #tpu.memory_space<vmem>>, %arg5: memref<64x128xbf16, #tpu.memory_space<vmem>>) attributes {dimension_semantics = [#tpu.dimension_semantics<parallel>], iteration_bounds = array<i64: 2>, scalar_prefetch = 0 : i64, scratch_operands = 0 : i64, tpu.core_type = #tpu.core_type<tc>, window_params = [{transform_indices = @transform_0, window_bounds = array<i64: 64, 128>}, {pipeline_mode = #tpu.pipeline_mode<synchronous>, transform_indices = @transform_1, window_bounds = array<i64: 1, 128>}, {pipeline_mode = #tpu.pipeline_mode<synchronous>, transform_indices = @transform_2, window_bounds = array<i64: 1, 128>}, {transform_indices = @transform_3, window_bounds = array<i64: 64, 128>}, {transform_indices = @transform_4, window_bounds = array<i64: 64, 128>}]} {
    %c0 = arith.constant 0 : index
    %c0_0 = arith.constant 0 : index
    %0 = vector.load %arg1[%c0, %c0_0] : memref<64x128xbf16, #tpu.memory_space<vmem>>, vector<64x128xbf16>
    %1 = arith.extf %0 : vector<64x128xbf16> to vector<64x128xf32>
    %c0_1 = arith.constant 0 : index
    %c0_2 = arith.constant 0 : index
    %2 = vector.load %arg2[%c0_1, %c0_2] : memref<1x128xf32, #tpu.memory_space<vmem>>, vector<1x128xf32>
    %3 = vector.broadcast %2 : vector<1x128xf32> to vector<64x128xf32>
    %4 = arith.mulf %1, %3 : vector<64x128xf32>
    %c0_3 = arith.constant 0 : index
    %c0_4 = arith.constant 0 : index
    %5 = vector.load %arg3[%c0_3, %c0_4] : memref<1x128xf32, #tpu.memory_space<vmem>>, vector<1x128xf32>
    %6 = vector.broadcast %5 : vector<1x128xf32> to vector<64x128xf32>
    %7 = arith.addf %4, %6 : vector<64x128xf32>
    %c0_5 = arith.constant 0 : index
    %c0_6 = arith.constant 0 : index
    %8 = vector.load %arg4[%c0_5, %c0_6] : memref<64x128xbf16, #tpu.memory_space<vmem>>, vector<64x128xbf16>
    %9 = arith.extf %8 : vector<64x128xbf16> to vector<64x128xf32>
    %10 = arith.addf %7, %9 : vector<64x128xf32>
    %cst = arith.constant 0.000000e+00 : f32
    %11 = vector.broadcast %cst : f32 to vector<64x128xf32>
    %12 = arith.maximumf %10, %11 : vector<64x128xf32>
    %13 = arith.truncf %12 : vector<64x128xf32> to vector<64x128xbf16>
    %c0_7 = arith.constant 0 : index
    %c0_8 = arith.constant 0 : index
    %14 = vector.load %arg5[%c0_7, %c0_8] : memref<64x128xbf16, #tpu.memory_space<vmem>>, vector<64x128xbf16>
    tpu.vector_store %arg5[%c0_7, %c0_8], %13 {strides = array<i32>} : memref<64x128xbf16, #tpu.memory_space<vmem>>, vector<64x128xbf16>,
    return
  }
  func.func @transform_0(%arg0: i32) -> (i32, i32) {
    %c0_i32 = arith.constant 0 : i32
    %c0_i32_0 = arith.constant 0 : i32
    return %arg0, %c0_i32 : i32, i32
  }
  func.func @transform_1(%arg0: i32) -> (i32, i32) {
    %c0_i32 = arith.constant 0 : i32
    %c0_i32_0 = arith.constant 0 : i32
    %c0_i32_1 = arith.constant 0 : i32
    return %c0_i32, %c0_i32_0 : i32, i32
  }
  func.func @transform_2(%arg0: i32) -> (i32, i32) {
    %c0_i32 = arith.constant 0 : i32
    %c0_i32_0 = arith.constant 0 : i32
    %c0_i32_1 = arith.constant 0 : i32
    return %c0_i32, %c0_i32_0 : i32, i32
  }
  func.func @transform_3(%arg0: i32) -> (i32, i32) {
    %c0_i32 = arith.constant 0 : i32
    %c0_i32_0 = arith.constant 0 : i32
    return %arg0, %c0_i32 : i32, i32
  }
  func.func @transform_4(%arg0: i32) -> (i32, i32) {
    %c0_i32 = arith.constant 0 : i32
    %c0_i32_0 = arith.constant 0 : i32
    return %arg0, %c0_i32 : i32, i32
  }
}

</mosaic_0001>

<llo_original>
// kernel: fwd.9
$region0: #{fwd.9}
  #allocation0 [shape = 'u32[]', space=smem, size = 0x4, offset = 0x4, fixed_abs, tag = 'smem constant byte address 0x4 - core index']
  #allocation1 [shape = 'u32[72,128]{1,0:T(1,128)}', space=vmem, size = 0x9000, scoped, tag = 'internal scratch']
  %s0 = inlined_call_operand.vmem [shape: bf16[128,256], index: 0, kind: input, shape index: {}]
  %s1 = inlined_call_operand.vmem [shape: f32[1,128], index: 1, kind: input, shape index: {}]
  %s2 = inlined_call_operand.vmem [shape: f32[1,128], index: 2, kind: input, shape index: {}]
  %s3 = inlined_call_operand.vmem [shape: bf16[128,128], index: 3, kind: output, shape index: {}]
  %s4 = sld [smem:[#allocation0]]
  $region86: #{fwd.9} parent=0
    _
  %s6 = ssub.s32 1, %s4
  %s7 = scalar_select 0, %s6, %s4
  $region1: #{fwd.9} parent=0
    #allocation2 [shape = 'u8[32768]{0}', space=vmem, size = 0x8000, scoped, tag = 'input window, operand 0']
    loop: start=0, step=1, limit=4
    $region2: #{fwd.9} parent=1 // loop_pre_header
      _
    $region3: #{fwd.9} parent=1 // loop_header
      %s9 = sphi 0, %s13
      %p10 = scmp.ge.s32.totalorder %s9, 4
      %s19 = sphi 0, %s21
      %s22 = sphi 0, %s19
      %s23 = sphi 0, %s22
      %s39 = sphi 0, %s23
      %s43 = sphi 0, %s43
      %s45 = sphi 0, %s43
      %s46 = sphi 0, %s45
      %s60 = sphi 0, %s46
      %s64 = sphi 0, %s64
      %s66 = sphi 0, %s64
      %s67 = sphi 0, %s66
      %s81 = sphi 0, %s67
      %s87 = sphi 0, %s89
      %s90 = sphi 0, %s87
      %s91 = sphi 0, %s90
      %s107 = sphi 0, %s91
    $region4: #{fwd.9} parent=1 // loop_header_branch
      %12 = sbr.rel (%p10) target = $region8
    $region5: #{fwd.9} parent=1 // loop_body
      %s14 = ssub.s32 %s9, 1
      %s15 = ssub.s32 %s9, 2
      %s16 = sadd.s32 %s9, 1
      %s17 = ssub.s32 %s9, %s16
      %p18 = scmp.eq.s32.totalorder %s17, 0
      %s20 = sadd.s32 %s19, 1
      %s21 = scalar_select %p18, %s19, %s20
      %p24 = pneg %p18
      %p25 = scmp.eq.s32.totalorder %s9, 1
      %p26 = por %p24, %p25
      %p27 = scmp.ne.s32.totalorder %s19, %s22
      %p28 = scmp.eq.s32.totalorder %s9, 0
      %p29 = por %p27, %p28
      %p30 = scmp.ne.s32.totalorder %s19, %s22
      %p31 = scmp.eq.s32.totalorder %s14, 1
      %p32 = por %p30, %p31
      %p33 = scmp.ne.s32.totalorder %s22, %s23
      %p34 = scmp.eq.s32.totalorder %s14, 0
      %p35 = por %p33, %p34
      %p36 = scmp.ne.s32.totalorder %s22, %s23
      %p37 = scmp.eq.s32.totalorder %s15, 1
      %p38 = por %p36, %p37
      %p40 = scmp.ne.s32.totalorder %s23, %s39
      %p41 = scmp.eq.s32.totalorder %s15, 0
      %p42 = por %p40, %p41
      %s44 = sadd.s32 %s43, 1
      %p47 = scmp.eq.s32.totalorder %s9, 1
      %p48 = scmp.ne.s32.totalorder %s43, %s45
      %p49 = scmp.eq.s32.totalorder %s9, 0
      %p50 = por %p48, %p49
      %p51 = scmp.ne.s32.totalorder %s43, %s45
      %p52 = scmp.eq.s32.totalorder %s14, 1
      %p53 = por %p51, %p52
      %p54 = scmp.ne.s32.totalorder %s45, %s46
      %p55 = scmp.eq.s32.totalorder %s14, 0
      %p56 = por %p54, %p55
      %p57 = scmp.ne.s32.totalorder %s45, %s46
      %p58 = scmp.eq.s32.totalorder %s15, 1
      %p59 = por %p57, %p58
      %p61 = scmp.ne.s32.totalorder %s46, %s60
      %p62 = scmp.eq.s32.totalorder %s15, 0
      %p63 = por %p61, %p62
      %s65 = sadd.s32 %s64, 1
      %p68 = scmp.eq.s32.totalorder %s9, 1
      %p69 = scmp.ne.s32.totalorder %s64, %s66
      %p70 = scmp.eq.s32.totalorder %s9, 0
      %p71 = por %p69, %p70
      %p72 = scmp.ne.s32.totalorder %s64, %s66
      %p73 = scmp.eq.s32.totalorder %s14, 1
      %p74 = por %p72, %p73
      %p75 = scmp.ne.s32.totalorder %s66, %s67
      %p76 = scmp.eq.s32.totalorder %s14, 0
      %p77 = por %p75, %p76
      %p78 = scmp.ne.s32.totalorder %s66, %s67
      %p79 = scmp.eq.s32.totalorder %s15, 1
      %p80 = por %p78, %p79
      %p82 = scmp.ne.s32.totalorder %s67, %s81
      %p83 = scmp.eq.s32.totalorder %s15, 0
      %p84 = por %p82, %p83
      %s85 = ssub.s32 %s9, %s16
      %p86 = scmp.eq.s32.totalorder %s85, 0
      %s88 = sadd.s32 %s87, 1
      %s89 = scalar_select %p86, %s87, %s88
      %p92 = pneg %p86
      %p93 = scmp.eq.s32.totalorder %s9, 1
      %p94 = por %p92, %p93
      %p95 = scmp.ne.s32.totalorder %s87, %s90
      %p96 = scmp.eq.s32.totalorder %s9, 0
      %p97 = por %p95, %p96
      %p98 = scmp.ne.s32.totalorder %s87, %s90
      %p99 = scmp.eq.s32.totalorder %s14, 1
      %p100 = por %p98, %p99
      %p101 = scmp.ne.s32.totalorder %s90, %s91
      %p102 = scmp.eq.s32.totalorder %s14, 0
      %p103 = por %p101, %p102
      %p104 = scmp.ne.s32.totalorder %s90, %s91
      %p105 = scmp.eq.s32.totalorder %s15, 1
      %p106 = por %p104, %p105
      %p108 = scmp.ne.s32.totalorder %s91, %s107
      %p109 = scmp.eq.s32.totalorder %s15, 0
      %p110 = por %p108, %p109
      %p111 = scmp.le.s32.totalorder 1, %s9
      %p112 = scmp.lt.s32.totalorder %s9, 3
      %p113 = pnand %p111, %p112
      %p114 = pneg %p113
      // Predicated region
      $region9: #{fwd.9} parent=5 // pred_check
        _
      $region10: #{fwd.9} parent=5 // pred_check_branch
        %116 = sbr.rel (%p113) target = $region12
      $region11: #{fwd.9} parent=5 // pred_region
        %s117 = ssub.s32 %s9, 1
        // Predicated region
        $region13: #{fwd.9} parent=11 // pred_check
          %p118 = pneg %p56
        $region14: #{fwd.9} parent=11 // pred_check_branch
          %120 = sbr.rel (%p118) target = $region16
        $region15: #{fwd.9} parent=11 // pred_region
          _
        $region16: #{fwd.9} parent=11 // pred_fallthru
          _
        // Predicated region
        $region17: #{fwd.9} parent=11 // pred_check
          %p121 = pneg %p77
        $region18: #{fwd.9} parent=11 // pred_check_branch
          %123 = sbr.rel (%p121) target = $region20
        $region19: #{fwd.9} parent=11 // pred_region
          _
        $region20: #{fwd.9} parent=11 // pred_fallthru
          _
      $region12: #{fwd.9} parent=5 // pred_fallthru
        _
      %p124 = scmp.lt.s32.totalorder %s9, 2
      // Predicated region
      $region21: #{fwd.9} parent=5 // pred_check
        %p125 = pneg %p124
      $region22: #{fwd.9} parent=5 // pred_check_branch
        %127 = sbr.rel (%p125) target = $region24
      $region23: #{fwd.9} parent=5 // pred_region
        // Predicated region
        $region25: #{fwd.9} parent=23 // pred_check
          %p128 = pneg %p29
        $region26: #{fwd.9} parent=23 // pred_check_branch
          %130 = sbr.rel (%p128) target = $region28
        $region27: #{fwd.9} parent=23 // pred_region
          %s131 = sand.u32 %s19, 1
          %s132 = sand.u32 %s19, 1
          %s133 = smul.addr %s132, 32
          %s134 = scalar_lea.vmem [#allocation2], %s133
          %s135 = smul.u32 8, %s9
          %s136 = smul.addr %s135, 2
          %s137 = smul.addr %s136, 4
          %s138 = scalar_lea.vmem %s0, %s137
          // Predicated region
          $region29: #{fwd.9} parent=27 // pred_check
            _
          $region30: #{fwd.9} parent=27 // pred_check_branch
            %140 = sbr.rel (0) target = $region32
          $region31: #{fwd.9} parent=27 // pred_region
            // Predicated region
            $region33: #{fwd.9} parent=31 // pred_check
              _
            $region34: #{fwd.9} parent=31 // pred_check_branch
              %142 = sbr.rel target = $region36
            $region35: #{fwd.9} parent=31 // pred_region
              // Predicated region
              $region48: #{fwd.9} parent=35 // pred_check
                _
              $region49: #{fwd.9} parent=35 // pred_check_branch
                %172 = sbr.rel (0) target = $region51
              $region50: #{fwd.9} parent=35 // pred_region
                loop: start=0, step=1, limit=1
                $region52: #{fwd.9} parent=50 // loop_pre_header
                  _
                $region53: #{fwd.9} parent=50 // loop_header
                  %s174 = sphi 0, %s178
                  %p175 = scmp.ge.s32.totalorder %s174, 1
                  %s179 = sphi %s138, %s138
                  %s180 = sphi %s134, %s134
                $region54: #{fwd.9} parent=50 // loop_header_branch
                  %177 = sbr.rel (%p175) target = $region58
                $region55: #{fwd.9} parent=50 // loop_body
                  _
                $region56: #{fwd.9} parent=50 // loop_footer
                  %s178 = sadd.s32 1, %s174
                $region57: #{fwd.9} parent=50 // loop_footer_branch
                  %173 = sbr.rel target = $region53
                $region58: #{fwd.9} parent=50 // loop_exit
                  _
                %s182 = ssub.s32 16, 1
                loop: start=0, step=1, limit=1
                $region59: #{fwd.9} parent=50 // loop_pre_header
                  _
                $region60: #{fwd.9} parent=50 // loop_header
                  %s184 = sphi 0, %s188
                  %p185 = scmp.ge.s32.totalorder %s184, 1
                  %s189 = sphi %s138, %s138
                  %s190 = sphi %s134, %s134
                $region61: #{fwd.9} parent=50 // loop_header_branch
                  %187 = sbr.rel (%p185) target = $region65
                $region62: #{fwd.9} parent=50 // loop_body
                  %v191 = vld [vmem:[%s189] sm:%s182]
                  %192 = vst [vmem:[%s190] sm:%s182] %v191
                  %v193 = vld [vmem:[%s189 + $0x8] sm:%s182]
                  %194 = vst [vmem:[%s190 + $0x4] sm:%s182] %v193
                  %v195 = vld [vmem:[%s189 + $0x10] sm:%s182]
                  %196 = vst [vmem:[%s190 + $0x8] sm:%s182] %v195
                  %v197 = vld [vmem:[%s189 + $0x18] sm:%s182]
                  %198 = vst [vmem:[%s190 + $0xc] sm:%s182] %v197
                  %v199 = vld [vmem:[%s189 + $0x20] sm:%s182]
                  %200 = vst [vmem:[%s190 + $0x10] sm:%s182] %v199
                  %v201 = vld [vmem:[%s189 + $0x28] sm:%s182]
                  %202 = vst [vmem:[%s190 + $0x14] sm:%s182] %v201
                  %v203 = vld [vmem:[%s189 + $0x30] sm:%s182]
                  %204 = vst [vmem:[%s190 + $0x18] sm:%s182] %v203
                  %v205 = vld [vmem:[%s189 + $0x38] sm:%s182]
                  %206 = vst [vmem:[%s190 + $0x1c] sm:%s182] %v205
                $region63: #{fwd.9} parent=50 // loop_footer
                  %s188 = sadd.s32 1, %s184
                $region64: #{fwd.9} parent=50 // loop_footer_branch
                  %183 = sbr.rel target = $region60
                $region65: #{fwd.9} parent=50 // loop_exit
                  _
              $region51: #{fwd.9} parent=35 // pred_fallthru
                _
            $region36: #{fwd.9} parent=31 // pred_fallthru
              _
            // Predicated region
            $region37: #{fwd.9} parent=31 // pred_check
              _
            $region38: #{fwd.9} parent=31 // pred_check_branch
              %144 = sbr.rel (0) target = $region40
            $region39: #{fwd.9} parent=31 // pred_region
              %s146 = ssub.s32 16, 1
              loop: start=0, step=1, limit=1
              $region41: #{fwd.9} parent=39 // loop_pre_header
                _
              $region42: #{fwd.9} parent=39 // loop_header
                %s148 = sphi 0, %s152
                %p149 = scmp.ge.s32.totalorder %s148, 1
                %s153 = sphi %s138, %s138
                %s154 = sphi %s134, %s134
              $region43: #{fwd.9} parent=39 // loop_header_branch
                %151 = sbr.rel (%p149) target = $region47
              $region44: #{fwd.9} parent=39 // loop_body
                %v155 = vld [vmem:[%s153] sm:%s146]
                %156 = vst [vmem:[%s154] sm:%s146] %v155
                %v157 = vld [vmem:[%s153 + $0x8] sm:%s146]
                %158 = vst [vmem:[%s154 + $0x4] sm:%s146] %v157
                %v159 = vld [vmem:[%s153 + $0x10] sm:%s146]
                %160 = vst [vmem:[%s154 + $0x8] sm:%s146] %v159
                %v161 = vld [vmem:[%s153 + $0x18] sm:%s146]
                %162 = vst [vmem:[%s154 + $0xc] sm:%s146] %v161
                %v163 = vld [vmem:[%s153 + $0x20] sm:%s146]
                %164 = vst [vmem:[%s154 + $0x10] sm:%s146] %v163
                %v165 = vld [vmem:[%s153 + $0x28] sm:%s146]
                %166 = vst [vmem:[%s154 + $0x14] sm:%s146] %v165
                %v167 = vld [vmem:[%s153 + $0x30] sm:%s146]
                %168 = vst [vmem:[%s154 + $0x18] sm:%s146] %v167
                %v169 = vld [vmem:[%s153 + $0x38] sm:%s146]
                %170 = vst [vmem:[%s154 + $0x1c] sm:%s146] %v169
              $region45: #{fwd.9} parent=39 // loop_footer
                %s152 = sadd.s32 1, %s148
              $region46: #{fwd.9} parent=39 // loop_footer_branch
                %147 = sbr.rel target = $region42
              $region47: #{fwd.9} parent=39 // loop_exit
                _
            $region40: #{fwd.9} parent=31 // pred_fallthru
              _
          $region32: #{fwd.9} parent=27 // pred_fallthru
            _
          %207 = vnop
        $region28: #{fwd.9} parent=23 // pred_fallthru
          _
      $region24: #{fwd.9} parent=5 // pred_fallthru
        _
      %p208 = scmp.le.s32.totalorder 1, %s9
      %p209 = scmp.lt.s32.totalorder %s9, 3
      %p210 = pnand %p208, %p209
      %p211 = pneg %p210
      // Predicated region
      $region66: #{fwd.9} parent=5 // pred_check
        _
      $region67: #{fwd.9} parent=5 // pred_check_branch
        %213 = sbr.rel (%p210) target = $region69
      $region68: #{fwd.9} parent=5 // pred_region
        %s214 = ssub.s32 %s9, 1
        %s215 = sand.u32 %s22, 1
        %s216 = sand.u32 %s22, 1
        %s217 = smul.addr %s216, 32
        %s218 = scalar_lea.vmem [#allocation2], %s217
        // Predicated region
        $region70: #{fwd.9} parent=68 // pred_check
          %p219 = pneg %p35
        $region71: #{fwd.9} parent=68 // pred_check_branch
          %221 = sbr.rel (%p219) target = $region73
        $region72: #{fwd.9} parent=68 // pred_region
          _
        $region73: #{fwd.9} parent=68 // pred_fallthru
          _
        %s222 = sand.u32 %s22, 1
        %s223 = sand.u32 %s22, 1
        %s224 = smul.addr %s223, 32
        %s225 = scalar_lea.vmem [#allocation2], %s224
        %p226 = pneg %p35
        %p227 = pneg %p32
        %p228 = pneg %p56
        %p229 = pneg %p53
        %p230 = pneg %p77
        %p231 = pneg %p74
        %p232 = pneg %p103
        %p233 = pneg %p100
        %s234 = smul.u32 8, %s14
        %p235 = scmp.lt.s32.totalorder %s234, 15
        %s236 = scalar_select %p235, %s234, 15
        %s237 = smul.addr %s236, 4
        %s238 = scalar_lea.vmem %s3, %s237
        %s239 = smul.u32 8, %s14
        %s240 = smul.u32 8, %s14
        %p241 = scmp.lt.s32.totalorder %s240, 15
        %s242 = scalar_select %p241, %s240, 15
        %s243 = smul.addr %s242, 4
        %s244 = scalar_lea.vmem %s3, %s243
        %s245 = smul.u32 8, %s14
        %v246 = vld [vmem:[%s218] sm:$0xf]
        %v247 = vld [vmem:[%s218 + $0x4] sm:$0xf]
        %v248 = vld [vmem:[%s218 + $0x8] sm:$0xf]
        %v249 = vld [vmem:[%s218 + $0xc] sm:$0xf]
        %v250 = vld [vmem:[%s218 + $0x10] sm:$0xf]
        %v251 = vld [vmem:[%s218 + $0x14] sm:$0xf]
        %v252 = vld [vmem:[%s218 + $0x18] sm:$0xf]
        %v253 = vld [vmem:[%s218 + $0x1c] sm:$0xf]
        %v254 = vunpack.c.l.bf16 %v246
        %v255 = vunpack.c.l.bf16 %v247
        %v256 = vunpack.c.l.bf16 %v248
        %v257 = vunpack.c.l.bf16 %v249
        %v258 = vunpack.c.l.bf16 %v250
        %v259 = vunpack.c.l.bf16 %v251
        %v260 = vunpack.c.l.bf16 %v252
        %v261 = vunpack.c.l.bf16 %v253
        %v262 = vld [vmem:[%s1] sm:$0x1]
        %v264 = vperm.slane %v262, 0
        %v266 = vmul.f32 %v254, %v264
        %v267 = vmul.f32 %v255, %v264
        %v268 = vmul.f32 %v256, %v264
        %v269 = vmul.f32 %v257, %v264
        %v270 = vmul.f32 %v258, %v264
        %v271 = vmul.f32 %v259, %v264
        %v272 = vmul.f32 %v260, %v264
        %v273 = vmul.f32 %v261, %v264
        %v274 = vld [vmem:[%s2] sm:$0x1]
        %v276 = vperm.slane %v274, 0
        %v278 = vadd.f32 %v266, %v276
        %v279 = vadd.f32 %v267, %v276
        %v280 = vadd.f32 %v268, %v276
        %v281 = vadd.f32 %v269, %v276
        %v282 = vadd.f32 %v270, %v276
        %v283 = vadd.f32 %v271, %v276
        %v284 = vadd.f32 %v272, %v276
        %v285 = vadd.f32 %v273, %v276
        %v286 = vmax.f32 %v278, 0.0
        %v287 = vmax.f32 %v279, 0.0
        %v288 = vmax.f32 %v280, 0.0
        %v289 = vmax.f32 %v281, 0.0
        %v290 = vmax.f32 %v282, 0.0
        %v291 = vmax.f32 %v283, 0.0
        %v292 = vmax.f32 %v284, 0.0
        %v293 = vmax.f32 %v285, 0.0
        %v294 = vpack.c.bf16 %v286, %v286
        %v295 = vpack.c.bf16 %v287, %v287
        %v296 = vpack.c.bf16 %v288, %v288
        %v297 = vpack.c.bf16 %v289, %v289
        %v298 = vpack.c.bf16 %v290, %v290
        %v299 = vpack.c.bf16 %v291, %v291
        %v300 = vpack.c.bf16 %v292, %v292
        %v301 = vpack.c.bf16 %v293, %v293
        %302 = vst [vmem:[%s244] sm:$0xf] %v294
        %303 = vst [vmem:[%s244 + $0x4] sm:$0xf] %v295
        %304 = vst [vmem:[%s244 + $0x8] sm:$0xf] %v296
        %305 = vst [vmem:[%s244 + $0xc] sm:$0xf] %v297
        %306 = vst [vmem:[%s244 + $0x10] sm:$0xf] %v298
        %307 = vst [vmem:[%s244 + $0x14] sm:$0xf] %v299
        %308 = vst [vmem:[%s244 + $0x18] sm:$0xf] %v300
        %309 = vst [vmem:[%s244 + $0x1c] sm:$0xf] %v301
        %s310 = smul.u32 8, %s14
        %p311 = scmp.lt.s32.totalorder %s310, 15
        %s312 = scalar_select %p311, %s310, 15
        %s313 = smul.addr %s312, 4
        %s314 = scalar_lea.vmem %s3, %s313
        // Predicated region
        $region74: #{fwd.9} parent=68 // pred_check
          %p315 = pneg %p100
        $region75: #{fwd.9} parent=68 // pred_check_branch
          %317 = sbr.rel (%p315) target = $region77
        $region76: #{fwd.9} parent=68 // pred_region
          %s318 = smul.u32 8, %s14
        $region77: #{fwd.9} parent=68 // pred_fallthru
          _
      $region69: #{fwd.9} parent=5 // pred_fallthru
        _
      %p319 = scmp.le.s32.totalorder 2, %s9
      // Predicated region
      $region78: #{fwd.9} parent=5 // pred_check
        %p320 = pneg %p319
      $region79: #{fwd.9} parent=5 // pred_check_branch
        %322 = sbr.rel (%p320) target = $region81
      $region80: #{fwd.9} parent=5 // pred_region
        %s323 = ssub.s32 %s9, 2
        // Predicated region
        $region82: #{fwd.9} parent=80 // pred_check
          %p324 = pneg %p106
        $region83: #{fwd.9} parent=80 // pred_check_branch
          %326 = sbr.rel (%p324) target = $region85
        $region84: #{fwd.9} parent=80 // pred_region
          %s327 = smul.u32 8, %s15
          %p328 = scmp.lt.s32.totalorder %s327, 15
          %s329 = scalar_select %p328, %s327, 15
          %s330 = smul.addr %s329, 4
          %s331 = scalar_lea.vmem %s3, %s330
        $region85: #{fwd.9} parent=80 // pred_fallthru
          _
      $region81: #{fwd.9} parent=5 // pred_fallthru
        _
    $region6: #{fwd.9} parent=1 // loop_footer
      %s13 = sadd.s32 1, %s9
    $region7: #{fwd.9} parent=1 // loop_footer_branch
      %8 = sbr.rel target = $region3
    $region8: #{fwd.9} parent=1 // loop_exit
      _

// kernel: fwd.8
$region0: #{fwd.8}
  #allocation0 [shape = 'u32[]', space=smem, size = 0x4, offset = 0x4, fixed_abs, tag = 'smem constant byte address 0x4 - core index']
  #allocation1 [shape = 'u32[72,128]{1,0:T(1,128)}', space=vmem, size = 0x9000, scoped, tag = 'internal scratch']
  %s0 = inlined_call_operand.vmem [shape: bf16[128,384], index: 0, kind: input, shape index: {}]
  %s1 = inlined_call_operand.vmem [shape: bf16[384,256], index: 1, kind: input, shape index: {}]
  %s2 = inlined_call_operand.vmem [shape: bf16[128,256], index: 2, kind: output, shape index: {0}]
  %s3 = inlined_call_operand.vmem [shape: f32[2,1,256], index: 3, kind: output, shape index: {1}]
  %s4 = inlined_call_operand.vmem [shape: f32[2,1,256], index: 4, kind: output, shape index: {2}]
  %5 = xla_tuple %s2, %s3, %s4
  %s6 = sld [smem:[#allocation0]]
  $region57: #{fwd.8} parent=0
    _
  %s8 = ssub.s32 1, %s6
  %s9 = scalar_select 0, %s8, %s6
  loop: start=0, step=1, limit=4
  $region2: #{fwd.8} parent=0 // loop_pre_header
    _
  $region3: #{fwd.8} parent=0 // loop_header
    %s11 = sphi 0, %s15
    %p12 = scmp.ge.s32.totalorder %s11, 4
    %s18 = sphi 0, %s30
    %s19 = sphi 0, %s26
    %s20 = sphi 0, %s18
    %s21 = sphi 0, %s19
    %s22 = sphi 0, %s20
    %s23 = sphi 0, %s21
    %s33 = sphi 0, %s35
    %s36 = sphi 0, %s33
    %s37 = sphi 0, %s36
    %s53 = sphi 0, %s37
    %s59 = sphi 0, %s61
    %s62 = sphi 0, %s59
    %s63 = sphi 0, %s62
    %s79 = sphi 0, %s63
    %s87 = sphi 0, %s89
    %s90 = sphi 0, %s87
    %s91 = sphi 0, %s90
    %s107 = sphi 0, %s91
    %s115 = sphi 0, %s117
    %s118 = sphi 0, %s115
    %s119 = sphi 0, %s118
    %s135 = sphi 0, %s119
    %s143 = sphi 0, %s145
    %s146 = sphi 0, %s143
    %s147 = sphi 0, %s146
    %s163 = sphi 0, %s147
  $region4: #{fwd.8} parent=0 // loop_header_branch
    %14 = sbr.rel (%p12) target = $region8
  $region5: #{fwd.8} parent=0 // loop_body
    %s16 = ssub.s32 %s11, 1
    %s17 = ssub.s32 %s11, 2
    %s24 = sadd.s32 1, %s19
    %p25 = scmp.ge.s32.totalorder %s24, 1
    %s26 = scalar_select %p25, 0, %s24
    %s27 = sadd.s32 1, %s18
    %s28 = scalar_select %p25, %s27, %s18
    %p29 = scmp.ge.s32.totalorder %s28, 2
    %s30 = scalar_select %p29, 0, %s28
    %s31 = ssub.s32 %s18, %s30
    %p32 = scmp.eq.s32.totalorder %s31, 0
    %s34 = sadd.s32 %s33, 1
    %s35 = scalar_select %p32, %s33, %s34
    %p38 = pneg %p32
    %p39 = scmp.eq.s32.totalorder %s11, 1
    %p40 = por %p38, %p39
    %p41 = scmp.ne.s32.totalorder %s33, %s36
    %p42 = scmp.eq.s32.totalorder %s11, 0
    %p43 = por %p41, %p42
    %p44 = scmp.ne.s32.totalorder %s33, %s36
    %p45 = scmp.eq.s32.totalorder %s16, 1
    %p46 = por %p44, %p45
    %p47 = scmp.ne.s32.totalorder %s36, %s37
    %p48 = scmp.eq.s32.totalorder %s16, 0
    %p49 = por %p47, %p48
    %p50 = scmp.ne.s32.totalorder %s36, %s37
    %p51 = scmp.eq.s32.totalorder %s17, 1
    %p52 = por %p50, %p51
    %p54 = scmp.ne.s32.totalorder %s37, %s53
    %p55 = scmp.eq.s32.totalorder %s17, 0
    %p56 = por %p54, %p55
    %s57 = ssub.s32 %s19, %s26
    %p58 = scmp.eq.s32.totalorder %s57, 0
    %s60 = sadd.s32 %s59, 1
    %s61 = scalar_select %p58, %s59, %s60
    %p64 = pneg %p58
    %p65 = scmp.eq.s32.totalorder %s11, 1
    %p66 = por %p64, %p65
    %p67 = scmp.ne.s32.totalorder %s59, %s62
    %p68 = scmp.eq.s32.totalorder %s11, 0
    %p69 = por %p67, %p68
    %p70 = scmp.ne.s32.totalorder %s59, %s62
    %p71 = scmp.eq.s32.totalorder %s16, 1
    %p72 = por %p70, %p71
    %p73 = scmp.ne.s32.totalorder %s62, %s63
    %p74 = scmp.eq.s32.totalorder %s16, 0
    %p75 = por %p73, %p74
    %p76 = scmp.ne.s32.totalorder %s62, %s63
    %p77 = scmp.eq.s32.totalorder %s17, 1
    %p78 = por %p76, %p77
    %p80 = scmp.ne.s32.totalorder %s63, %s79
    %p81 = scmp.eq.s32.totalorder %s17, 0
    %p82 = por %p80, %p81
    %s83 = ssub.s32 %s18, %s30
    %s84 = ssub.s32 %s19, %s26
    %s85 = sor.u32 %s83, %s84
    %p86 = scmp.eq.s32.totalorder %s85, 0
    %s88 = sadd.s32 %s87, 1
    %s89 = scalar_select %p86, %s87, %s88
    %p92 = pneg %p86
    %p93 = scmp.eq.s32.totalorder %s11, 1
    %p94 = por %p92, %p93
    %p95 = scmp.ne.s32.totalorder %s87, %s90
    %p96 = scmp.eq.s32.totalorder %s11, 0
    %p97 = por %p95, %p96
    %p98 = scmp.ne.s32.totalorder %s87, %s90
    %p99 = scmp.eq.s32.totalorder %s16, 1
    %p100 = por %p98, %p99
    %p101 = scmp.ne.s32.totalorder %s90, %s91
    %p102 = scmp.eq.s32.totalorder %s16, 0
    %p103 = por %p101, %p102
    %p104 = scmp.ne.s32.totalorder %s90, %s91
    %p105 = scmp.eq.s32.totalorder %s17, 1
    %p106 = por %p104, %p105
    %p108 = scmp.ne.s32.totalorder %s91, %s107
    %p109 = scmp.eq.s32.totalorder %s17, 0
    %p110 = por %p108, %p109
    %s111 = ssub.s32 %s18, %s30
    %s112 = ssub.s32 %s19, %s26
    %s113 = sor.u32 %s111, %s112
    %p114 = scmp.eq.s32.totalorder %s113, 0
    %s116 = sadd.s32 %s115, 1
    %s117 = scalar_select %p114, %s115, %s116
    %p120 = pneg %p114
    %p121 = scmp.eq.s32.totalorder %s11, 1
    %p122 = por %p120, %p121
    %p123 = scmp.ne.s32.totalorder %s115, %s118
    %p124 = scmp.eq.s32.totalorder %s11, 0
    %p125 = por %p123, %p124
    %p126 = scmp.ne.s32.totalorder %s115, %s118
    %p127 = scmp.eq.s32.totalorder %s16, 1
    %p128 = por %p126, %p127
    %p129 = scmp.ne.s32.totalorder %s118, %s119
    %p130 = scmp.eq.s32.totalorder %s16, 0
    %p131 = por %p129, %p130
    %p132 = scmp.ne.s32.totalorder %s118, %s119
    %p133 = scmp.eq.s32.totalorder %s17, 1
    %p134 = por %p132, %p133
    %p136 = scmp.ne.s32.totalorder %s119, %s135
    %p137 = scmp.eq.s32.totalorder %s17, 0
    %p138 = por %p136, %p137
    %s139 = ssub.s32 %s18, %s30
    %s140 = ssub.s32 %s19, %s26
    %s141 = sor.u32 %s139, %s140
    %p142 = scmp.eq.s32.totalorder %s141, 0
    %s144 = sadd.s32 %s143, 1
    %s145 = scalar_select %p142, %s143, %s144
    %p148 = pneg %p142
    %p149 = scmp.eq.s32.totalorder %s11, 1
    %p150 = por %p148, %p149
    %p151 = scmp.ne.s32.totalorder %s143, %s146
    %p152 = scmp.eq.s32.totalorder %s11, 0
    %p153 = por %p151, %p152
    %p154 = scmp.ne.s32.totalorder %s143, %s146
    %p155 = scmp.eq.s32.totalorder %s16, 1
    %p156 = por %p154, %p155
    %p157 = scmp.ne.s32.totalorder %s146, %s147
    %p158 = scmp.eq.s32.totalorder %s16, 0
    %p159 = por %p157, %p158
    %p160 = scmp.ne.s32.totalorder %s146, %s147
    %p161 = scmp.eq.s32.totalorder %s17, 1
    %p162 = por %p160, %p161
    %p164 = scmp.ne.s32.totalorder %s147, %s163
    %p165 = scmp.eq.s32.totalorder %s17, 0
    %p166 = por %p164, %p165
    %p167 = scmp.le.s32.totalorder 1, %s11
    %p168 = scmp.lt.s32.totalorder %s11, 3
    %p169 = pnand %p167, %p168
    %p170 = pneg %p169
    // Predicated region
    $region9: #{fwd.8} parent=5 // pred_check
      _
    $region10: #{fwd.8} parent=5 // pred_check_branch
      %172 = sbr.rel (%p169) target = $region12
    $region11: #{fwd.8} parent=5 // pred_region
      %s173 = ssub.s32 %s11, 1
      // Predicated region
      $region13: #{fwd.8} parent=11 // pred_check
        %p174 = pneg %p75
      $region14: #{fwd.8} parent=11 // pred_check_branch
        %176 = sbr.rel (%p174) target = $region16
      $region15: #{fwd.8} parent=11 // pred_region
        %s177 = smul.u32 2, %s21
        %p178 = scmp.lt.s32.totalorder %s177, 1
        %s179 = scalar_select %p178, %s177, 1
        %s180 = smul.addr %s179, 4
        %s181 = scalar_lea.vmem %s1, %s180
        %s182 = smul.u32 2, %s21
      $region16: #{fwd.8} parent=11 // pred_fallthru
        _
    $region12: #{fwd.8} parent=5 // pred_fallthru
      _
    %p183 = scmp.lt.s32.totalorder %s11, 2
    // Predicated region
    $region17: #{fwd.8} parent=5 // pred_check
      %p184 = pneg %p183
    $region18: #{fwd.8} parent=5 // pred_check_branch
      %186 = sbr.rel (%p184) target = $region20
    $region19: #{fwd.8} parent=5 // pred_region
      // Predicated region
      $region21: #{fwd.8} parent=19 // pred_check
        %p187 = pneg %p43
      $region22: #{fwd.8} parent=19 // pred_check_branch
        %189 = sbr.rel (%p187) target = $region24
      $region23: #{fwd.8} parent=19 // pred_region
        %s190 = smul.u32 8, %s18
        %p191 = scmp.lt.s32.totalorder %s190, 15
        %s192 = scalar_select %p191, %s190, 15
        %s193 = smul.addr %s192, 3
        %s194 = smul.addr %s193, 4
        %s195 = scalar_lea.vmem %s0, %s194
        %s196 = smul.u32 8, %s18
      $region24: #{fwd.8} parent=19 // pred_fallthru
        _
    $region20: #{fwd.8} parent=5 // pred_fallthru
      _
    %p197 = scmp.le.s32.totalorder 1, %s11
    %p198 = scmp.lt.s32.totalorder %s11, 3
    %p199 = pnand %p197, %p198
    %p200 = pneg %p199
    // Predicated region
    $region25: #{fwd.8} parent=5 // pred_check
      _
    $region26: #{fwd.8} parent=5 // pred_check_branch
      %202 = sbr.rel (%p199) target = $region28
    $region27: #{fwd.8} parent=5 // pred_region
      %s203 = ssub.s32 %s11, 1
      %s204 = smul.u32 8, %s20
      %p205 = scmp.lt.s32.totalorder %s204, 15
      %s206 = scalar_select %p205, %s204, 15
      %s207 = smul.addr %s206, 3
      %s208 = smul.addr %s207, 4
      %s209 = scalar_lea.vmem %s0, %s208
      %p210 = pneg %p49
      %p211 = pneg %p46
      %s212 = smul.u32 2, %s21
      %p213 = scmp.lt.s32.totalorder %s212, 1
      %s214 = scalar_select %p213, %s212, 1
      %s215 = smul.addr %s214, 4
      %s216 = scalar_lea.vmem %s1, %s215
      %p217 = pneg %p75
      %p218 = pneg %p72
      %p219 = pneg %p103
      %p220 = pneg %p100
      %s221 = smul.u32 8, %s20
      %s222 = smul.u32 2, %s21
      %p223 = scmp.lt.s32.totalorder %s221, 15
      %s224 = scalar_select %p223, %s221, 15
      %p225 = scmp.lt.s32.totalorder %s222, 1
      %s226 = scalar_select %p225, %s222, 1
      %s227 = smul.addr %s224, 2
      %s228 = sadd.s32 %s226, %s227
      %s229 = smul.addr %s228, 4
      %s230 = scalar_lea.vmem %s2, %s229
      %p231 = pneg %p131
      %p232 = pneg %p128
      %s233 = smul.u32 2, %s21
      %p234 = scmp.lt.s32.totalorder %s20, 1
      %s235 = scalar_select %p234, %s20, 1
      %p236 = scmp.lt.s32.totalorder %s233, 1
      %s237 = scalar_select %p236, %s233, 1
      %s238 = smul.addr %s235, 2
      %s239 = sadd.s32 %s237, %s238
      %s240 = scalar_lea.vmem %s3, %s239
      %p241 = pneg %p159
      %p242 = pneg %p156
      %s243 = smul.u32 2, %s21
      %p244 = scmp.lt.s32.totalorder %s20, 1
      %s245 = scalar_select %p244, %s20, 1
      %p246 = scmp.lt.s32.totalorder %s243, 1
      %s247 = scalar_select %p246, %s243, 1
      %s248 = smul.addr %s245, 2
      %s249 = sadd.s32 %s247, %s248
      %s250 = scalar_lea.vmem %s4, %s249
      %s251 = smul.u32 8, %s20
      %p252 = scmp.lt.s32.totalorder %s251, 15
      %s253 = scalar_select %p252, %s251, 15
      %s254 = smul.addr %s253, 3
      %s255 = smul.addr %s254, 4
      %s256 = scalar_lea.vmem %s0, %s255
      %s257 = smul.u32 8, %s20
      %s258 = smul.u32 2, %s21
      %p259 = scmp.lt.s32.totalorder %s258, 1
      %s260 = scalar_select %p259, %s258, 1
      %s261 = smul.addr %s260, 4
      %s262 = scalar_lea.vmem %s1, %s261
      %s263 = smul.u32 2, %s21
      %s264 = smul.u32 8, %s20
      %s265 = smul.u32 2, %s21
      %p266 = scmp.lt.s32.totalorder %s264, 15
      %s267 = scalar_select %p266, %s264, 15
      %p268 = scmp.lt.s32.totalorder %s265, 1
      %s269 = scalar_select %p268, %s265, 1
      %s270 = smul.addr %s267, 2
      %s271 = sadd.s32 %s269, %s270
      %s272 = smul.addr %s271, 4
      %s273 = scalar_lea.vmem %s2, %s272
      %s274 = smul.u32 8, %s20
      %s275 = smul.u32 2, %s21
      %s276 = smul.u32 2, %s21
      %p277 = scmp.lt.s32.totalorder %s20, 1
      %s278 = scalar_select %p277, %s20, 1
      %p279 = scmp.lt.s32.totalorder %s276, 1
      %s280 = scalar_select %p279, %s276, 1
      %s281 = smul.addr %s278, 2
      %s282 = sadd.s32 %s280, %s281
      %s283 = scalar_lea.vmem %s3, %s282
      %s284 = smul.u32 2, %s21
      %s285 = smul.u32 2, %s21
      %p286 = scmp.lt.s32.totalorder %s20, 1
      %s287 = scalar_select %p286, %s20, 1
      %p288 = scmp.lt.s32.totalorder %s285, 1
      %s289 = scalar_select %p288, %s285, 1
      %s290 = smul.addr %s287, 2
      %s291 = sadd.s32 %s289, %s290
      %s292 = scalar_lea.vmem %s4, %s291
      %s293 = smul.u32 2, %s21
      %v294 = vld [vmem:[%s256] sm:$0xff]
      %v295 = vld [vmem:[%s256 + $0x8] sm:$0xf]
      %v296 = vld [vmem:[%s256 + $0xc] sm:$0xff]
      %v297 = vld [vmem:[%s256 + $0x14] sm:$0xf]
      %v298 = vld [vmem:[%s256 + $0x18] sm:$0xff]
      %v299 = vld [vmem:[%s256 + $0x20] sm:$0xf]
      %v300 = vld [vmem:[%s256 + $0x24] sm:$0xff]
      %v301 = vld [vmem:[%s256 + $0x2c] sm:$0xf]
      %v302 = vld [vmem:[%s256 + $0x30] sm:$0xff]
      %v303 = vld [vmem:[%s256 + $0x38] sm:$0xf]
      %v304 = vld [vmem:[%s256 + $0x3c] sm:$0xff]
      %v305 = vld [vmem:[%s256 + $0x44] sm:$0xf]
      %v306 = vld [vmem:[%s256 + $0x48] sm:$0xff]
      %v307 = vld [vmem:[%s256 + $0x50] sm:$0xf]
      %v308 = vld [vmem:[%s256 + $0x54] sm:$0xff]
      %v309 = vld [vmem:[%s256 + $0x5c] sm:$0xf]
      %v310 = vld [vmem:[%s262] sm:$0xff]
      %v311 = vld [vmem:[%s262 + $0x8] sm:$0xff]
      %v312 = vld [vmem:[%s262 + $0x10] sm:$0xff]
      %v313 = vld [vmem:[%s262 + $0x18] sm:$0xff]
      %v314 = vld [vmem:[%s262 + $0x20] sm:$0xff]
      %v315 = vld [vmem:[%s262 + $0x28] sm:$0xff]
      %v316 = vld [vmem:[%s262 + $0x30] sm:$0xff]
      %v317 = vld [vmem:[%s262 + $0x38] sm:$0xff]
      %v318 = vld [vmem:[%s262 + $0x40] sm:$0xff]
      %v319 = vld [vmem:[%s262 + $0x48] sm:$0xff]
      %v320 = vld [vmem:[%s262 + $0x50] sm:$0xff]
      %v321 = vld [vmem:[%s262 + $0x58] sm:$0xff]
      %v322 = vld [vmem:[%s262 + $0x60] sm:$0xff]
      %v323 = vld [vmem:[%s262 + $0x68] sm:$0xff]
      %v324 = vld [vmem:[%s262 + $0x70] sm:$0xff]
      %v325 = vld [vmem:[%s262 + $0x78] sm:$0xff]
      %v326 = vld [vmem:[%s262 + $0x80] sm:$0xff]
      %v327 = vld [vmem:[%s262 + $0x88] sm:$0xff]
      %v328 = vld [vmem:[%s262 + $0x90] sm:$0xff]
      %v329 = vld [vmem:[%s262 + $0x98] sm:$0xff]
      %v330 = vld [vmem:[%s262 + $0xa0] sm:$0xff]
      %v331 = vld [vmem:[%s262 + $0xa8] sm:$0xff]
      %v332 = vld [vmem:[%s262 + $0xb0] sm:$0xff]
      %v333 = vld [vmem:[%s262 + $0xb8] sm:$0xff]
      %v334 = vld [vmem:[%s262 + $0xc0] sm:$0xff]
      %v335 = vld [vmem:[%s262 + $0xc8] sm:$0xff]
      %v336 = vld [vmem:[%s262 + $0xd0] sm:$0xff]
      %v337 = vld [vmem:[%s262 + $0xd8] sm:$0xff]
      %v338 = vld [vmem:[%s262 + $0xe0] sm:$0xff]
      %v339 = vld [vmem:[%s262 + $0xe8] sm:$0xff]
      %v340 = vld [vmem:[%s262 + $0xf0] sm:$0xff]
      %v341 = vld [vmem:[%s262 + $0xf8] sm:$0xff]
      %v342 = vld [vmem:[%s262 + $0x100] sm:$0xff]
      %v343 = vld [vmem:[%s262 + $0x108] sm:$0xff]
      %v344 = vld [vmem:[%s262 + $0x110] sm:$0xff]
      %v345 = vld [vmem:[%s262 + $0x118] sm:$0xff]
      %v346 = vld [vmem:[%s262 + $0x120] sm:$0xff]
      %v347 = vld [vmem:[%s262 + $0x128] sm:$0xff]
      %v348 = vld [vmem:[%s262 + $0x130] sm:$0xff]
      %v349 = vld [vmem:[%s262 + $0x138] sm:$0xff]
      %v350 = vld [vmem:[%s262 + $0x140] sm:$0xff]
      %v351 = vld [vmem:[%s262 + $0x148] sm:$0xff]
      %v352 = vld [vmem:[%s262 + $0x150] sm:$0xff]
      %v353 = vld [vmem:[%s262 + $0x158] sm:$0xff]
      %v354 = vld [vmem:[%s262 + $0x160] sm:$0xff]
      %v355 = vld [vmem:[%s262 + $0x168] sm:$0xff]
      %v356 = vld [vmem:[%s262 + $0x170] sm:$0xff]
      %v357 = vld [vmem:[%s262 + $0x178] sm:$0xff]
      %v374 = vunpack.c.l.b16 %v294
      %v375 = vunpack.c.h.b16 %v294
      %v376 = vunpack.c.l.b16 %v295
      %v377 = vunpack.c.l.b16 %v296
      %v378 = vunpack.c.h.b16 %v296
      %v379 = vunpack.c.l.b16 %v297
      %v380 = vunpack.c.l.b16 %v298
      %v381 = vunpack.c.h.b16 %v298
      %v382 = vunpack.c.l.b16 %v299
      %v383 = vunpack.c.l.b16 %v300
      %v384 = vunpack.c.h.b16 %v300
      %v385 = vunpack.c.l.b16 %v301
      %v386 = vunpack.c.l.b16 %v302
      %v387 = vunpack.c.h.b16 %v302
      %v388 = vunpack.c.l.b16 %v303
      %v389 = vunpack.c.l.b16 %v304
      %v390 = vunpack.c.h.b16 %v304
      %v391 = vunpack.c.l.b16 %v305
      %v392 = vunpack.c.l.b16 %v306
      %v393 = vunpack.c.h.b16 %v306
      %v394 = vunpack.c.l.b16 %v307
      %v395 = vunpack.c.l.b16 %v308
      %v396 = vunpack.c.h.b16 %v308
      %v397 = vunpack.c.l.b16 %v309
      %v398 = vpack.c.b16 %v377, %v374
      %v399 = vpack.c.b16 %v378, %v375
      %v400 = vpack.c.b16 %v379, %v376
      %v401 = vpack.c.b16 %v383, %v380
      %v402 = vpack.c.b16 %v384, %v381
      %v403 = vpack.c.b16 %v385, %v382
      %v404 = vpack.c.b16 %v389, %v386
      %v405 = vpack.c.b16 %v390, %v387
      %v406 = vpack.c.b16 %v391, %v388
      %v407 = vpack.c.b16 %v395, %v392
      %v408 = vpack.c.b16 %v396, %v393
      %v409 = vpack.c.b16 %v397, %v394
      %v470 = vunpack.c.l.b16 %v310
      %v471 = vunpack.c.h.b16 %v310
      %v472 = vunpack.c.l.b16 %v311
      %v473 = vunpack.c.h.b16 %v311
      %v474 = vunpack.c.l.b16 %v312
      %v475 = vunpack.c.h.b16 %v312
      %v476 = vunpack.c.l.b16 %v313
      %v477 = vunpack.c.h.b16 %v313
      %v478 = vunpack.c.l.b16 %v314
      %v479 = vunpack.c.h.b16 %v314
      %v480 = vunpack.c.l.b16 %v315
      %v481 = vunpack.c.h.b16 %v315
      %v482 = vunpack.c.l.b16 %v316
      %v483 = vunpack.c.h.b16 %v316
      %v484 = vunpack.c.l.b16 %v317
      %v485 = vunpack.c.h.b16 %v317
      %v486 = vunpack.c.l.b16 %v318
      %v487 = vunpack.c.h.b16 %v318
      %v488 = vunpack.c.l.b16 %v319
      %v489 = vunpack.c.h.b16 %v319
      %v490 = vunpack.c.l.b16 %v320
      %v491 = vunpack.c.h.b16 %v320
      %v492 = vunpack.c.l.b16 %v321
      %v493 = vunpack.c.h.b16 %v321
      %v494 = vunpack.c.l.b16 %v322
      %v495 = vunpack.c.h.b16 %v322
      %v496 = vunpack.c.l.b16 %v323
      %v497 = vunpack.c.h.b16 %v323
      %v498 = vunpack.c.l.b16 %v324
      %v499 = vunpack.c.h.b16 %v324
      %v500 = vunpack.c.l.b16 %v325
      %v501 = vunpack.c.h.b16 %v325
      %v502 = vunpack.c.l.b16 %v326
      %v503 = vunpack.c.h.b16 %v326
      %v504 = vunpack.c.l.b16 %v327
      %v505 = vunpack.c.h.b16 %v327
      %v506 = vunpack.c.l.b16 %v328
      %v507 = vunpack.c.h.b16 %v328
      %v508 = vunpack.c.l.b16 %v329
      %v509 = vunpack.c.h.b16 %v329
      %v510 = vunpack.c.l.b16 %v330
      %v511 = vunpack.c.h.b16 %v330
      %v512 = vunpack.c.l.b16 %v331
      %v513 = vunpack.c.h.b16 %v331
      %v514 = vunpack.c.l.b16 %v332
      %v515 = vunpack.c.h.b16 %v332
      %v516 = vunpack.c.l.b16 %v333
      %v517 = vunpack.c.h.b16 %v333
      %v518 = vunpack.c.l.b16 %v334
      %v519 = vunpack.c.h.b16 %v334
      %v520 = vunpack.c.l.b16 %v335
      %v521 = vunpack.c.h.b16 %v335
      %v522 = vunpack.c.l.b16 %v336
      %v523 = vunpack.c.h.b16 %v336
      %v524 = vunpack.c.l.b16 %v337
      %v525 = vunpack.c.h.b16 %v337
      %v526 = vunpack.c.l.b16 %v338
      %v527 = vunpack.c.h.b16 %v338
      %v528 = vunpack.c.l.b16 %v339
      %v529 = vunpack.c.h.b16 %v339
      %v530 = vunpack.c.l.b16 %v340
      %v531 = vunpack.c.h.b16 %v340
      %v532 = vunpack.c.l.b16 %v341
      %v533 = vunpack.c.h.b16 %v341
      %v534 = vunpack.c.l.b16 %v342
      %v535 = vunpack.c.h.b16 %v342
      %v536 = vunpack.c.l.b16 %v343
      %v537 = vunpack.c.h.b16 %v343
      %v538 = vunpack.c.l.b16 %v344
      %v539 = vunpack.c.h.b16 %v344
      %v540 = vunpack.c.l.b16 %v345
      %v541 = vunpack.c.h.b16 %v345
      %v542 = vunpack.c.l.b16 %v346
      %v543 = vunpack.c.h.b16 %v346
      %v544 = vunpack.c.l.b16 %v347
      %v545 = vunpack.c.h.b16 %v347
      %v546 = vunpack.c.l.b16 %v348
      %v547 = vunpack.c.h.b16 %v348
      %v548 = vunpack.c.l.b16 %v349
      %v549 = vunpack.c.h.b16 %v349
      %v550 = vunpack.c.l.b16 %v350
      %v551 = vunpack.c.h.b16 %v350
      %v552 = vunpack.c.l.b16 %v351
      %v553 = vunpack.c.h.b16 %v351
      %v554 = vunpack.c.l.b16 %v352
      %v555 = vunpack.c.h.b16 %v352
      %v556 = vunpack.c.l.b16 %v353
      %v557 = vunpack.c.h.b16 %v353
      %v558 = vunpack.c.l.b16 %v354
      %v559 = vunpack.c.h.b16 %v354
      %v560 = vunpack.c.l.b16 %v355
      %v561 = vunpack.c.h.b16 %v355
      %v562 = vunpack.c.l.b16 %v356
      %v563 = vunpack.c.h.b16 %v356
      %v564 = vunpack.c.l.b16 %v357
      %v565 = vunpack.c.h.b16 %v357
      %v566 = vpack.c.b16 %v472, %v470
      %v567 = vpack.c.b16 %v473, %v471
      %v568 = vpack.c.b16 %v476, %v474
      %v569 = vpack.c.b16 %v477, %v475
      %v570 = vpack.c.b16 %v480, %v478
      %v571 = vpack.c.b16 %v481, %v479
      %v572 = vpack.c.b16 %v484, %v482
      %v573 = vpack.c.b16 %v485, %v483
      %v574 = vpack.c.b16 %v488, %v486
      %v575 = vpack.c.b16 %v489, %v487
      %v576 = vpack.c.b16 %v492, %v490
      %v577 = vpack.c.b16 %v493, %v491
      %v578 = vpack.c.b16 %v496, %v494
      %v579 = vpack.c.b16 %v497, %v495
      %v580 = vpack.c.b16 %v500, %v498
      %v581 = vpack.c.b16 %v501, %v499
      %v582 = vpack.c.b16 %v504, %v502
      %v583 = vpack.c.b16 %v505, %v503
      %v584 = vpack.c.b16 %v508, %v506
      %v585 = vpack.c.b16 %v509, %v507
      %v586 = vpack.c.b16 %v512, %v510
      %v587 = vpack.c.b16 %v513, %v511
      %v588 = vpack.c.b16 %v516, %v514
      %v589 = vpack.c.b16 %v517, %v515
      %v590 = vpack.c.b16 %v520, %v518
      %v591 = vpack.c.b16 %v521, %v519
      %v592 = vpack.c.b16 %v524, %v522
      %v593 = vpack.c.b16 %v525, %v523
      %v594 = vpack.c.b16 %v528, %v526
      %v595 = vpack.c.b16 %v529, %v527
      %v596 = vpack.c.b16 %v532, %v530
      %v597 = vpack.c.b16 %v533, %v531
      %v598 = vpack.c.b16 %v536, %v534
      %v599 = vpack.c.b16 %v537, %v535
      %v600 = vpack.c.b16 %v540, %v538
      %v601 = vpack.c.b16 %v541, %v539
      %v602 = vpack.c.b16 %v544, %v542
      %v603 = vpack.c.b16 %v545, %v543
      %v604 = vpack.c.b16 %v548, %v546
      %v605 = vpack.c.b16 %v549, %v547
      %v606 = vpack.c.b16 %v552, %v550
      %v607 = vpack.c.b16 %v553, %v551
      %v608 = vpack.c.b16 %v556, %v554
      %v609 = vpack.c.b16 %v557, %v555
      %v610 = vpack.c.b16 %v560, %v558
      %v611 = vpack.c.b16 %v561, %v559
      %v612 = vpack.c.b16 %v564, %v562
      %v613 = vpack.c.b16 %v565, %v563
      %662 = vmatpush.bf16.msra.mxu0 %v580
      %663 = vmatpush.bf16.msra.mxu0 %v578
      %664 = vmatpush.bf16.msra.mxu0 %v576
      %665 = vmatpush.bf16.msra.mxu0 %v574
      %666 = vmatpush.bf16.msra.mxu0 %v572
      %667 = vmatpush.bf16.msra.mxu0 %v570
      %668 = vmatpush.bf16.msra.mxu0 %v568
      %669 = vmatpush.bf16.msra.mxu0 %v566
      %670 = vmatmul.bf16.gmra.mxu0 %v398
      %v671 = vpop.f32.mrf.mxu0
      %v672 = vadd.f32 0.0, %v671
      %v673 = vpop.f32.mrf.mxu0
      %v674 = vadd.f32 0.0, %v673
      %675 = vmatmul.bf16.gmra.mxu0 %v401
      %v676 = vpop.f32.mrf.mxu0
      %v677 = vadd.f32 0.0, %v676
      %v678 = vpop.f32.mrf.mxu0
      %v679 = vadd.f32 0.0, %v678
      %680 = vmatmul.bf16.gmra.mxu0 %v404
      %v681 = vpop.f32.mrf.mxu0
      %v682 = vadd.f32 0.0, %v681
      %v683 = vpop.f32.mrf.mxu0
      %v684 = vadd.f32 0.0, %v683
      %685 = vmatmul.bf16.gmra.mxu0 %v407
      %v686 = vpop.f32.mrf.mxu0
      %v687 = vadd.f32 0.0, %v686
      %v688 = vpop.f32.mrf.mxu0
      %v689 = vadd.f32 0.0, %v688
      %690 = vdwg.mxu0
      %691 = vmatpush.bf16.msra.mxu0 %v596
      %692 = vmatpush.bf16.msra.mxu0 %v594
      %693 = vmatpush.bf16.msra.mxu0 %v592
      %694 = vmatpush.bf16.msra.mxu0 %v590
      %695 = vmatpush.bf16.msra.mxu0 %v588
      %696 = vmatpush.bf16.msra.mxu0 %v586
      %697 = vmatpush.bf16.msra.mxu0 %v584
      %698 = vmatpush.bf16.msra.mxu0 %v582
      %699 = vmatmul.bf16.gmra.mxu0 %v399
      %v700 = vpop.f32.mrf.mxu0
      %v701 = vadd.f32 %v672, %v700
      %v702 = vpop.f32.mrf.mxu0
      %v703 = vadd.f32 %v674, %v702
      %704 = vmatmul.bf16.gmra.mxu0 %v402
      %v705 = vpop.f32.mrf.mxu0
      %v706 = vadd.f32 %v677, %v705
      %v707 = vpop.f32.mrf.mxu0
      %v708 = vadd.f32 %v679, %v707
      %709 = vmatmul.bf16.gmra.mxu0 %v405
      %v710 = vpop.f32.mrf.mxu0
      %v711 = vadd.f32 %v682, %v710
      %v712 = vpop.f32.mrf.mxu0
      %v713 = vadd.f32 %v684, %v712
      %714 = vmatmul.bf16.gmra.mxu0 %v408
      %v715 = vpop.f32.mrf.mxu0
      %v716 = vadd.f32 %v687, %v715
      %v717 = vpop.f32.mrf.mxu0
      %v718 = vadd.f32 %v689, %v717
      %719 = vdwg.mxu0
      %720 = vmatpush.bf16.msra.mxu0 %v612
      %721 = vmatpush.bf16.msra.mxu0 %v610
      %722 = vmatpush.bf16.msra.mxu0 %v608
      %723 = vmatpush.bf16.msra.mxu0 %v606
      %724 = vmatpush.bf16.msra.mxu0 %v604
      %725 = vmatpush.bf16.msra.mxu0 %v602
      %726 = vmatpush.bf16.msra.mxu0 %v600
      %727 = vmatpush.bf16.msra.mxu0 %v598
      %728 = vmatmul.bf16.gmra.mxu0 %v400
      %v729 = vpop.f32.mrf.mxu0
      %v730 = vadd.f32 %v701, %v729
      %v731 = vpop.f32.mrf.mxu0
      %v732 = vadd.f32 %v703, %v731
      %733 = vmatmul.bf16.gmra.mxu0 %v403
      %v734 = vpop.f32.mrf.mxu0
      %v735 = vadd.f32 %v706, %v734
      %v736 = vpop.f32.mrf.mxu0
      %v737 = vadd.f32 %v708, %v736
      %738 = vmatmul.bf16.gmra.mxu0 %v406
      %v739 = vpop.f32.mrf.mxu0
      %v740 = vadd.f32 %v711, %v739
      %v741 = vpop.f32.mrf.mxu0
      %v742 = vadd.f32 %v713, %v741
      %743 = vmatmul.bf16.gmra.mxu0 %v409
      %v744 = vpop.f32.mrf.mxu0
      %v745 = vadd.f32 %v716, %v744
      %v746 = vpop.f32.mrf.mxu0
      %v747 = vadd.f32 %v718, %v746
      %748 = vdwg.mxu0
      %749 = vmatpush.bf16.msra.mxu0 %v581
      %750 = vmatpush.bf16.msra.mxu0 %v579
      %751 = vmatpush.bf16.msra.mxu0 %v577
      %752 = vmatpush.bf16.msra.mxu0 %v575
      %753 = vmatpush.bf16.msra.mxu0 %v573
      %754 = vmatpush.bf16.msra.mxu0 %v571
      %755 = vmatpush.bf16.msra.mxu0 %v569
      %756 = vmatpush.bf16.msra.mxu0 %v567
      %757 = vmatmul.bf16.gmra.mxu0 %v398
      %v758 = vpop.f32.mrf.mxu0
      %v759 = vadd.f32 0.0, %v758
      %v760 = vpop.f32.mrf.mxu0
      %v761 = vadd.f32 0.0, %v760
      %762 = vmatmul.bf16.gmra.mxu0 %v401
      %v763 = vpop.f32.mrf.mxu0
      %v764 = vadd.f32 0.0, %v763
      %v765 = vpop.f32.mrf.mxu0
      %v766 = vadd.f32 0.0, %v765
      %767 = vmatmul.bf16.gmra.mxu0 %v404
      %v768 = vpop.f32.mrf.mxu0
      %v769 = vadd.f32 0.0, %v768
      %v770 = vpop.f32.mrf.mxu0
      %v771 = vadd.f32 0.0, %v770
      %772 = vmatmul.bf16.gmra.mxu0 %v407
      %v773 = vpop.f32.mrf.mxu0
      %v774 = vadd.f32 0.0, %v773
      %v775 = vpop.f32.mrf.mxu0
      %v776 = vadd.f32 0.0, %v775
      %777 = vdwg.mxu0
      %778 = vmatpush.bf16.msra.mxu0 %v597
      %779 = vmatpush.bf16.msra.mxu0 %v595
      %780 = vmatpush.bf16.msra.mxu0 %v593
      %781 = vmatpush.bf16.msra.mxu0 %v591
      %782 = vmatpush.bf16.msra.mxu0 %v589
      %783 = vmatpush.bf16.msra.mxu0 %v587
      %784 = vmatpush.bf16.msra.mxu0 %v585
      %785 = vmatpush.bf16.msra.mxu0 %v583
      %786 = vmatmul.bf16.gmra.mxu0 %v399
      %v787 = vpop.f32.mrf.mxu0
      %v788 = vadd.f32 %v759, %v787
      %v789 = vpop.f32.mrf.mxu0
      %v790 = vadd.f32 %v761, %v789
      %791 = vmatmul.bf16.gmra.mxu0 %v402
      %v792 = vpop.f32.mrf.mxu0
      %v793 = vadd.f32 %v764, %v792
      %v794 = vpop.f32.mrf.mxu0
      %v795 = vadd.f32 %v766, %v794
      %796 = vmatmul.bf16.gmra.mxu0 %v405
      %v797 = vpop.f32.mrf.mxu0
      %v798 = vadd.f32 %v769, %v797
      %v799 = vpop.f32.mrf.mxu0
      %v800 = vadd.f32 %v771, %v799
      %801 = vmatmul.bf16.gmra.mxu0 %v408
      %v802 = vpop.f32.mrf.mxu0
      %v803 = vadd.f32 %v774, %v802
      %v804 = vpop.f32.mrf.mxu0
      %v805 = vadd.f32 %v776, %v804
      %806 = vdwg.mxu0
      %807 = vmatpush.bf16.msra.mxu0 %v613
      %808 = vmatpush.bf16.msra.mxu0 %v611
      %809 = vmatpush.bf16.msra.mxu0 %v609
      %810 = vmatpush.bf16.msra.mxu0 %v607
      %811 = vmatpush.bf16.msra.mxu0 %v605
      %812 = vmatpush.bf16.msra.mxu0 %v603
      %813 = vmatpush.bf16.msra.mxu0 %v601
      %814 = vmatpush.bf16.msra.mxu0 %v599
      %815 = vmatmul.bf16.gmra.mxu0 %v400
      %v816 = vpop.f32.mrf.mxu0
      %v817 = vadd.f32 %v788, %v816
      %v818 = vpop.f32.mrf.mxu0
      %v819 = vadd.f32 %v790, %v818
      %820 = vmatmul.bf16.gmra.mxu0 %v403
      %v821 = vpop.f32.mrf.mxu0
      %v822 = vadd.f32 %v793, %v821
      %v823 = vpop.f32.mrf.mxu0
      %v824 = vadd.f32 %v795, %v823
      %825 = vmatmul.bf16.gmra.mxu0 %v406
      %v826 = vpop.f32.mrf.mxu0
      %v827 = vadd.f32 %v798, %v826
      %v828 = vpop.f32.mrf.mxu0
      %v829 = vadd.f32 %v800, %v828
      %830 = vmatmul.bf16.gmra.mxu0 %v409
      %v831 = vpop.f32.mrf.mxu0
      %v832 = vadd.f32 %v803, %v831
      %v833 = vpop.f32.mrf.mxu0
      %v834 = vadd.f32 %v805, %v833
      %835 = vdwg.mxu0
      %v836 = vpack.c.bf16 %v817, %v730
      %v837 = vpack.c.bf16 %v819, %v732
      %v838 = vpack.c.bf16 %v822, %v735
      %v839 = vpack.c.bf16 %v824, %v737
      %v840 = vpack.c.bf16 %v827, %v740
      %v841 = vpack.c.bf16 %v829, %v742
      %v842 = vpack.c.bf16 %v832, %v745
      %v843 = vpack.c.bf16 %v834, %v747
      %844 = vst [vmem:[%s273] sm:$0xff] %v836
      %845 = vst [vmem:[%s273 + $0x8] sm:$0xff] %v837
      %846 = vst [vmem:[%s273 + $0x10] sm:$0xff] %v838
      %847 = vst [vmem:[%s273 + $0x18] sm:$0xff] %v839
      %848 = vst [vmem:[%s273 + $0x20] sm:$0xff] %v840
      %849 = vst [vmem:[%s273 + $0x28] sm:$0xff] %v841
      %850 = vst [vmem:[%s273 + $0x30] sm:$0xff] %v842
      %851 = vst [vmem:[%s273 + $0x38] sm:$0xff] %v843
      %v852 = vadd.f32 %v730, %v732
      %v853 = vadd.f32 %v852, %v735
      %v854 = vadd.f32 %v853, %v737
      %v855 = vadd.f32 %v854, %v740
      %v856 = vadd.f32 %v855, %v742
      %v857 = vadd.f32 %v856, %v745
      %v858 = vadd.f32 %v857, %v747
      %v859 = vrot.slane %v858, 4
      %v860 = vadd.f32 %v858, %v859
      %v861 = vrot.slane %v860, 2
      %v862 = vadd.f32 %v860, %v861
      %v863 = vrot.slane %v862, 1
      %v864 = vadd.f32 %v862, %v863
      %v865 = vadd.f32 %v817, %v819
      %v866 = vadd.f32 %v865, %v822
      %v867 = vadd.f32 %v866, %v824
      %v868 = vadd.f32 %v867, %v827
      %v869 = vadd.f32 %v868, %v829
      %v870 = vadd.f32 %v869, %v832
      %v871 = vadd.f32 %v870, %v834
      %v872 = vrot.slane %v871, 4
      %v873 = vadd.f32 %v871, %v872
      %v874 = vrot.slane %v873, 2
      %v875 = vadd.f32 %v873, %v874
      %v876 = vrot.slane %v875, 1
      %v877 = vadd.f32 %v875, %v876
      %v880 = vrot.slane %v877, 7
      %vm881 = vcmask 1040384
      %v882 = vsel %vm881, %v864, %v880
      %v884 = vlaneseq
      %vm885 = vcmp.ge.s32.totalorder %v884, 0
      %vm886 = vcmp.lt.s32.totalorder %v884, 256
      %vm887 = vmand %vm885, %vm886
      %888 = vst.msk [vmem:[%s283] sm:$0x3] %vm887, %v882
      %v889 = vmul.f32 %v730, %v730
      %v890 = vmul.f32 %v817, %v817
      %v891 = vmul.f32 %v732, %v732
      %v892 = vmul.f32 %v819, %v819
      %v893 = vmul.f32 %v735, %v735
      %v894 = vmul.f32 %v822, %v822
      %v895 = vmul.f32 %v737, %v737
      %v896 = vmul.f32 %v824, %v824
      %v897 = vmul.f32 %v740, %v740
      %v898 = vmul.f32 %v827, %v827
      %v899 = vmul.f32 %v742, %v742
      %v900 = vmul.f32 %v829, %v829
      %v901 = vmul.f32 %v745, %v745
      %v902 = vmul.f32 %v832, %v832
      %v903 = vmul.f32 %v747, %v747
      %v904 = vmul.f32 %v834, %v834
      %v905 = vadd.f32 %v889, %v891
      %v906 = vadd.f32 %v905, %v893
      %v907 = vadd.f32 %v906, %v895
      %v908 = vadd.f32 %v907, %v897
      %v909 = vadd.f32 %v908, %v899
      %v910 = vadd.f32 %v909, %v901
      %v911 = vadd.f32 %v910, %v903
      %v912 = vrot.slane %v911, 4
      %v913 = vadd.f32 %v911, %v912
      %v914 = vrot.slane %v913, 2
      %v915 = vadd.f32 %v913, %v914
      %v916 = vrot.slane %v915, 1
      %v917 = vadd.f32 %v915, %v916
      %v918 = vadd.f32 %v890, %v892
      %v919 = vadd.f32 %v918, %v894
      %v920 = vadd.f32 %v919, %v896
      %v921 = vadd.f32 %v920, %v898
      %v922 = vadd.f32 %v921, %v900
      %v923 = vadd.f32 %v922, %v902
      %v924 = vadd.f32 %v923, %v904
      %v925 = vrot.slane %v924, 4
      %v926 = vadd.f32 %v924, %v925
      %v927 = vrot.slane %v926, 2
      %v928 = vadd.f32 %v926, %v927
      %v929 = vrot.slane %v928, 1
      %v930 = vadd.f32 %v928, %v929
      %v933 = vrot.slane %v930, 7
      %v934 = vsel %vm881, %v917, %v933
      %936 = vst.msk [vmem:[%s292] sm:$0x3] %vm887, %v934
      %s937 = smul.u32 8, %s20
      %s938 = smul.u32 2, %s21
      %p939 = scmp.lt.s32.totalorder %s937, 15
      %s940 = scalar_select %p939, %s937, 15
      %p941 = scmp.lt.s32.totalorder %s938, 1
      %s942 = scalar_select %p941, %s938, 1
      %s943 = smul.addr %s940, 2
      %s944 = sadd.s32 %s942, %s943
      %s945 = smul.addr %s944, 4
      %s946 = scalar_lea.vmem %s2, %s945
      %s947 = smul.u32 2, %s21
      %p948 = scmp.lt.s32.totalorder %s20, 1
      %s949 = scalar_select %p948, %s20, 1
      %p950 = scmp.lt.s32.totalorder %s947, 1
      %s951 = scalar_select %p950, %s947, 1
      %s952 = smul.addr %s949, 2
      %s953 = sadd.s32 %s951, %s952
      %s954 = scalar_lea.vmem %s3, %s953
      %s955 = smul.u32 2, %s21
      %p956 = scmp.lt.s32.totalorder %s20, 1
      %s957 = scalar_select %p956, %s20, 1
      %p958 = scmp.lt.s32.totalorder %s955, 1
      %s959 = scalar_select %p958, %s955, 1
      %s960 = smul.addr %s957, 2
      %s961 = sadd.s32 %s959, %s960
      %s962 = scalar_lea.vmem %s4, %s961
      // Predicated region
      $region29: #{fwd.8} parent=27 // pred_check
        %p963 = pneg %p100
      $region30: #{fwd.8} parent=27 // pred_check_branch
        %965 = sbr.rel (%p963) target = $region32
      $region31: #{fwd.8} parent=27 // pred_region
        %s966 = smul.u32 8, %s20
        %s967 = smul.u32 2, %s21
      $region32: #{fwd.8} parent=27 // pred_fallthru
        _
      // Predicated region
      $region33: #{fwd.8} parent=27 // pred_check
        %p968 = pneg %p128
      $region34: #{fwd.8} parent=27 // pred_check_branch
        %970 = sbr.rel (%p968) target = $region36
      $region35: #{fwd.8} parent=27 // pred_region
        %s971 = smul.u32 2, %s21
      $region36: #{fwd.8} parent=27 // pred_fallthru
        _
      // Predicated region
      $region37: #{fwd.8} parent=27 // pred_check
        %p972 = pneg %p156
      $region38: #{fwd.8} parent=27 // pred_check_branch
        %974 = sbr.rel (%p972) target = $region40
      $region39: #{fwd.8} parent=27 // pred_region
        %s975 = smul.u32 2, %s21
      $region40: #{fwd.8} parent=27 // pred_fallthru
        _
    $region28: #{fwd.8} parent=5 // pred_fallthru
      _
    %p976 = scmp.le.s32.totalorder 2, %s11
    // Predicated region
    $region41: #{fwd.8} parent=5 // pred_check
      %p977 = pneg %p976
    $region42: #{fwd.8} parent=5 // pred_check_branch
      %979 = sbr.rel (%p977) target = $region44
    $region43: #{fwd.8} parent=5 // pred_region
      %s980 = ssub.s32 %s11, 2
      // Predicated region
      $region45: #{fwd.8} parent=43 // pred_check
        %p981 = pneg %p106
      $region46: #{fwd.8} parent=43 // pred_check_branch
        %983 = sbr.rel (%p981) target = $region48
      $region47: #{fwd.8} parent=43 // pred_region
        %s984 = smul.u32 8, %s22
        %s985 = smul.u32 2, %s23
        %p986 = scmp.lt.s32.totalorder %s984, 15
        %s987 = scalar_select %p986, %s984, 15
        %p988 = scmp.lt.s32.totalorder %s985, 1
        %s989 = scalar_select %p988, %s985, 1
        %s990 = smul.addr %s987, 2
        %s991 = sadd.s32 %s989, %s990
        %s992 = smul.addr %s991, 4
        %s993 = scalar_lea.vmem %s2, %s992
      $region48: #{fwd.8} parent=43 // pred_fallthru
        _
      // Predicated region
      $region49: #{fwd.8} parent=43 // pred_check
        %p994 = pneg %p134
      $region50: #{fwd.8} parent=43 // pred_check_branch
        %996 = sbr.rel (%p994) target = $region52
      $region51: #{fwd.8} parent=43 // pred_region
        %s997 = smul.u32 2, %s23
        %p998 = scmp.lt.s32.totalorder %s22, 1
        %s999 = scalar_select %p998, %s22, 1
        %p1000 = scmp.lt.s32.totalorder %s997, 1
        %s1001 = scalar_select %p1000, %s997, 1
        %s1002 = smul.addr %s999, 2
        %s1003 = sadd.s32 %s1001, %s1002
        %s1004 = scalar_lea.vmem %s3, %s1003
      $region52: #{fwd.8} parent=43 // pred_fallthru
        _
      // Predicated region
      $region53: #{fwd.8} parent=43 // pred_check
        %p1005 = pneg %p162
      $region54: #{fwd.8} parent=43 // pred_check_branch
        %1007 = sbr.rel (%p1005) target = $region56
      $region55: #{fwd.8} parent=43 // pred_region
        %s1008 = smul.u32 2, %s23
        %p1009 = scmp.lt.s32.totalorder %s22, 1
        %s1010 = scalar_select %p1009, %s22, 1
        %p1011 = scmp.lt.s32.totalorder %s1008, 1
        %s1012 = scalar_select %p1011, %s1008, 1
        %s1013 = smul.addr %s1010, 2
        %s1014 = sadd.s32 %s1012, %s1013
        %s1015 = scalar_lea.vmem %s4, %s1014
      $region56: #{fwd.8} parent=43 // pred_fallthru
        _
    $region44: #{fwd.8} parent=5 // pred_fallthru
      _
  $region6: #{fwd.8} parent=0 // loop_footer
    %s15 = sadd.s32 1, %s11
  $region7: #{fwd.8} parent=0 // loop_footer_branch
    %10 = sbr.rel target = $region3
  $region8: #{fwd.8} parent=0 // loop_exit
    _

// kernel: fwd.11
$region0: #{fwd.11}
  #allocation0 [shape = 'u32[]', space=smem, size = 0x4, offset = 0x4, fixed_abs, tag = 'smem constant byte address 0x4 - core index']
  #allocation1 [shape = 'u32[72,128]{1,0:T(1,128)}', space=vmem, size = 0x9000, scoped, tag = 'internal scratch']
  %s0 = inlined_call_operand.vmem [shape: bf16[128,128], index: 0, kind: input, shape index: {}]
  %s1 = inlined_call_operand.vmem [shape: f32[1,128], index: 1, kind: input, shape index: {}]
  %s2 = inlined_call_operand.vmem [shape: f32[1,128], index: 2, kind: input, shape index: {}]
  %s3 = inlined_call_operand.vmem [shape: bf16[128,256], index: 3, kind: input, shape index: {}]
  %s4 = inlined_call_operand.vmem [shape: f32[1,128], index: 4, kind: input, shape index: {}]
  %s5 = inlined_call_operand.vmem [shape: f32[1,128], index: 5, kind: input, shape index: {}]
  %s6 = inlined_call_operand.vmem [shape: bf16[128,128], index: 6, kind: output, shape index: {}]
  %s7 = sld [smem:[#allocation0]]
  $region98: #{fwd.11} parent=0
    _
  %s9 = ssub.s32 1, %s7
  %s10 = scalar_select 0, %s9, %s7
  $region1: #{fwd.11} parent=0
    #allocation2 [shape = 'u8[32768]{0}', space=vmem, size = 0x8000, scoped, tag = 'input window, operand 3']
    loop: start=0, step=1, limit=4
    $region2: #{fwd.11} parent=1 // loop_pre_header
      _
    $region3: #{fwd.11} parent=1 // loop_header
      %s12 = sphi 0, %s16
      %p13 = scmp.ge.s32.totalorder %s12, 4
      %s22 = sphi 0, %s24
      %s25 = sphi 0, %s22
      %s26 = sphi 0, %s25
      %s42 = sphi 0, %s26
      %s46 = sphi 0, %s46
      %s48 = sphi 0, %s46
      %s49 = sphi 0, %s48
      %s63 = sphi 0, %s49
      %s67 = sphi 0, %s67
      %s69 = sphi 0, %s67
      %s70 = sphi 0, %s69
      %s84 = sphi 0, %s70
      %s90 = sphi 0, %s92
      %s93 = sphi 0, %s90
      %s94 = sphi 0, %s93
      %s110 = sphi 0, %s94
      %s114 = sphi 0, %s114
      %s116 = sphi 0, %s114
      %s117 = sphi 0, %s116
      %s131 = sphi 0, %s117
      %s135 = sphi 0, %s135
      %s137 = sphi 0, %s135
      %s138 = sphi 0, %s137
      %s152 = sphi 0, %s138
      %s158 = sphi 0, %s160
      %s161 = sphi 0, %s158
      %s162 = sphi 0, %s161
      %s178 = sphi 0, %s162
    $region4: #{fwd.11} parent=1 // loop_header_branch
      %15 = sbr.rel (%p13) target = $region8
    $region5: #{fwd.11} parent=1 // loop_body
      %s17 = ssub.s32 %s12, 1
      %s18 = ssub.s32 %s12, 2
      %s19 = sadd.s32 %s12, 1
      %s20 = ssub.s32 %s12, %s19
      %p21 = scmp.eq.s32.totalorder %s20, 0
      %s23 = sadd.s32 %s22, 1
      %s24 = scalar_select %p21, %s22, %s23
      %p27 = pneg %p21
      %p28 = scmp.eq.s32.totalorder %s12, 1
      %p29 = por %p27, %p28
      %p30 = scmp.ne.s32.totalorder %s22, %s25
      %p31 = scmp.eq.s32.totalorder %s12, 0
      %p32 = por %p30, %p31
      %p33 = scmp.ne.s32.totalorder %s22, %s25
      %p34 = scmp.eq.s32.totalorder %s17, 1
      %p35 = por %p33, %p34
      %p36 = scmp.ne.s32.totalorder %s25, %s26
      %p37 = scmp.eq.s32.totalorder %s17, 0
      %p38 = por %p36, %p37
      %p39 = scmp.ne.s32.totalorder %s25, %s26
      %p40 = scmp.eq.s32.totalorder %s18, 1
      %p41 = por %p39, %p40
      %p43 = scmp.ne.s32.totalorder %s26, %s42
      %p44 = scmp.eq.s32.totalorder %s18, 0
      %p45 = por %p43, %p44
      %s47 = sadd.s32 %s46, 1
      %p50 = scmp.eq.s32.totalorder %s12, 1
      %p51 = scmp.ne.s32.totalorder %s46, %s48
      %p52 = scmp.eq.s32.totalorder %s12, 0
      %p53 = por %p51, %p52
      %p54 = scmp.ne.s32.totalorder %s46, %s48
      %p55 = scmp.eq.s32.totalorder %s17, 1
      %p56 = por %p54, %p55
      %p57 = scmp.ne.s32.totalorder %s48, %s49
      %p58 = scmp.eq.s32.totalorder %s17, 0
      %p59 = por %p57, %p58
      %p60 = scmp.ne.s32.totalorder %s48, %s49
      %p61 = scmp.eq.s32.totalorder %s18, 1
      %p62 = por %p60, %p61
      %p64 = scmp.ne.s32.totalorder %s49, %s63
      %p65 = scmp.eq.s32.totalorder %s18, 0
      %p66 = por %p64, %p65
      %s68 = sadd.s32 %s67, 1
      %p71 = scmp.eq.s32.totalorder %s12, 1
      %p72 = scmp.ne.s32.totalorder %s67, %s69
      %p73 = scmp.eq.s32.totalorder %s12, 0
      %p74 = por %p72, %p73
      %p75 = scmp.ne.s32.totalorder %s67, %s69
      %p76 = scmp.eq.s32.totalorder %s17, 1
      %p77 = por %p75, %p76
      %p78 = scmp.ne.s32.totalorder %s69, %s70
      %p79 = scmp.eq.s32.totalorder %s17, 0
      %p80 = por %p78, %p79
      %p81 = scmp.ne.s32.totalorder %s69, %s70
      %p82 = scmp.eq.s32.totalorder %s18, 1
      %p83 = por %p81, %p82
      %p85 = scmp.ne.s32.totalorder %s70, %s84
      %p86 = scmp.eq.s32.totalorder %s18, 0
      %p87 = por %p85, %p86
      %s88 = ssub.s32 %s12, %s19
      %p89 = scmp.eq.s32.totalorder %s88, 0
      %s91 = sadd.s32 %s90, 1
      %s92 = scalar_select %p89, %s90, %s91
      %p95 = pneg %p89
      %p96 = scmp.eq.s32.totalorder %s12, 1
      %p97 = por %p95, %p96
      %p98 = scmp.ne.s32.totalorder %s90, %s93
      %p99 = scmp.eq.s32.totalorder %s12, 0
      %p100 = por %p98, %p99
      %p101 = scmp.ne.s32.totalorder %s90, %s93
      %p102 = scmp.eq.s32.totalorder %s17, 1
      %p103 = por %p101, %p102
      %p104 = scmp.ne.s32.totalorder %s93, %s94
      %p105 = scmp.eq.s32.totalorder %s17, 0
      %p106 = por %p104, %p105
      %p107 = scmp.ne.s32.totalorder %s93, %s94
      %p108 = scmp.eq.s32.totalorder %s18, 1
      %p109 = por %p107, %p108
      %p111 = scmp.ne.s32.totalorder %s94, %s110
      %p112 = scmp.eq.s32.totalorder %s18, 0
      %p113 = por %p111, %p112
      %s115 = sadd.s32 %s114, 1
      %p118 = scmp.eq.s32.totalorder %s12, 1
      %p119 = scmp.ne.s32.totalorder %s114, %s116
      %p120 = scmp.eq.s32.totalorder %s12, 0
      %p121 = por %p119, %p120
      %p122 = scmp.ne.s32.totalorder %s114, %s116
      %p123 = scmp.eq.s32.totalorder %s17, 1
      %p124 = por %p122, %p123
      %p125 = scmp.ne.s32.totalorder %s116, %s117
      %p126 = scmp.eq.s32.totalorder %s17, 0
      %p127 = por %p125, %p126
      %p128 = scmp.ne.s32.totalorder %s116, %s117
      %p129 = scmp.eq.s32.totalorder %s18, 1
      %p130 = por %p128, %p129
      %p132 = scmp.ne.s32.totalorder %s117, %s131
      %p133 = scmp.eq.s32.totalorder %s18, 0
      %p134 = por %p132, %p133
      %s136 = sadd.s32 %s135, 1
      %p139 = scmp.eq.s32.totalorder %s12, 1
      %p140 = scmp.ne.s32.totalorder %s135, %s137
      %p141 = scmp.eq.s32.totalorder %s12, 0
      %p142 = por %p140, %p141
      %p143 = scmp.ne.s32.totalorder %s135, %s137
      %p144 = scmp.eq.s32.totalorder %s17, 1
      %p145 = por %p143, %p144
      %p146 = scmp.ne.s32.totalorder %s137, %s138
      %p147 = scmp.eq.s32.totalorder %s17, 0
      %p148 = por %p146, %p147
      %p149 = scmp.ne.s32.totalorder %s137, %s138
      %p150 = scmp.eq.s32.totalorder %s18, 1
      %p151 = por %p149, %p150
      %p153 = scmp.ne.s32.totalorder %s138, %s152
      %p154 = scmp.eq.s32.totalorder %s18, 0
      %p155 = por %p153, %p154
      %s156 = ssub.s32 %s12, %s19
      %p157 = scmp.eq.s32.totalorder %s156, 0
      %s159 = sadd.s32 %s158, 1
      %s160 = scalar_select %p157, %s158, %s159
      %p163 = pneg %p157
      %p164 = scmp.eq.s32.totalorder %s12, 1
      %p165 = por %p163, %p164
      %p166 = scmp.ne.s32.totalorder %s158, %s161
      %p167 = scmp.eq.s32.totalorder %s12, 0
      %p168 = por %p166, %p167
      %p169 = scmp.ne.s32.totalorder %s158, %s161
      %p170 = scmp.eq.s32.totalorder %s17, 1
      %p171 = por %p169, %p170
      %p172 = scmp.ne.s32.totalorder %s161, %s162
      %p173 = scmp.eq.s32.totalorder %s17, 0
      %p174 = por %p172, %p173
      %p175 = scmp.ne.s32.totalorder %s161, %s162
      %p176 = scmp.eq.s32.totalorder %s18, 1
      %p177 = por %p175, %p176
      %p179 = scmp.ne.s32.totalorder %s162, %s178
      %p180 = scmp.eq.s32.totalorder %s18, 0
      %p181 = por %p179, %p180
      %p182 = scmp.le.s32.totalorder 1, %s12
      %p183 = scmp.lt.s32.totalorder %s12, 3
      %p184 = pnand %p182, %p183
      %p185 = pneg %p184
      // Predicated region
      $region9: #{fwd.11} parent=5 // pred_check
        _
      $region10: #{fwd.11} parent=5 // pred_check_branch
        %187 = sbr.rel (%p184) target = $region12
      $region11: #{fwd.11} parent=5 // pred_region
        %s188 = ssub.s32 %s12, 1
        // Predicated region
        $region13: #{fwd.11} parent=11 // pred_check
          %p189 = pneg %p59
        $region14: #{fwd.11} parent=11 // pred_check_branch
          %191 = sbr.rel (%p189) target = $region16
        $region15: #{fwd.11} parent=11 // pred_region
          _
        $region16: #{fwd.11} parent=11 // pred_fallthru
          _
        // Predicated region
        $region17: #{fwd.11} parent=11 // pred_check
          %p192 = pneg %p80
        $region18: #{fwd.11} parent=11 // pred_check_branch
          %194 = sbr.rel (%p192) target = $region20
        $region19: #{fwd.11} parent=11 // pred_region
          _
        $region20: #{fwd.11} parent=11 // pred_fallthru
          _
        // Predicated region
        $region21: #{fwd.11} parent=11 // pred_check
          %p195 = pneg %p127
        $region22: #{fwd.11} parent=11 // pred_check_branch
          %197 = sbr.rel (%p195) target = $region24
        $region23: #{fwd.11} parent=11 // pred_region
          _
        $region24: #{fwd.11} parent=11 // pred_fallthru
          _
        // Predicated region
        $region25: #{fwd.11} parent=11 // pred_check
          %p198 = pneg %p148
        $region26: #{fwd.11} parent=11 // pred_check_branch
          %200 = sbr.rel (%p198) target = $region28
        $region27: #{fwd.11} parent=11 // pred_region
          _
        $region28: #{fwd.11} parent=11 // pred_fallthru
          _
      $region12: #{fwd.11} parent=5 // pred_fallthru
        _
      %p201 = scmp.lt.s32.totalorder %s12, 2
      // Predicated region
      $region29: #{fwd.11} parent=5 // pred_check
        %p202 = pneg %p201
      $region30: #{fwd.11} parent=5 // pred_check_branch
        %204 = sbr.rel (%p202) target = $region32
      $region31: #{fwd.11} parent=5 // pred_region
        // Predicated region
        $region33: #{fwd.11} parent=31 // pred_check
          %p205 = pneg %p32
        $region34: #{fwd.11} parent=31 // pred_check_branch
          %207 = sbr.rel (%p205) target = $region36
        $region35: #{fwd.11} parent=31 // pred_region
          %s208 = smul.u32 8, %s12
          %p209 = scmp.lt.s32.totalorder %s208, 15
          %s210 = scalar_select %p209, %s208, 15
          %s211 = smul.addr %s210, 4
          %s212 = scalar_lea.vmem %s0, %s211
          %s213 = smul.u32 8, %s12
        $region36: #{fwd.11} parent=31 // pred_fallthru
          _
        // Predicated region
        $region37: #{fwd.11} parent=31 // pred_check
          %p214 = pneg %p100
        $region38: #{fwd.11} parent=31 // pred_check_branch
          %216 = sbr.rel (%p214) target = $region40
        $region39: #{fwd.11} parent=31 // pred_region
          %s217 = sand.u32 %s90, 1
          %s218 = sand.u32 %s90, 1
          %s219 = smul.addr %s218, 32
          %s220 = scalar_lea.vmem [#allocation2], %s219
          %s221 = smul.u32 8, %s12
          %s222 = smul.addr %s221, 2
          %s223 = sadd.s32 1, %s222
          %s224 = smul.addr %s223, 4
          %s225 = scalar_lea.vmem %s3, %s224
          // Predicated region
          $region41: #{fwd.11} parent=39 // pred_check
            _
          $region42: #{fwd.11} parent=39 // pred_check_branch
            %227 = sbr.rel (0) target = $region44
          $region43: #{fwd.11} parent=39 // pred_region
            // Predicated region
            $region45: #{fwd.11} parent=43 // pred_check
              _
            $region46: #{fwd.11} parent=43 // pred_check_branch
              %229 = sbr.rel target = $region48
            $region47: #{fwd.11} parent=43 // pred_region
              // Predicated region
              $region60: #{fwd.11} parent=47 // pred_check
                _
              $region61: #{fwd.11} parent=47 // pred_check_branch
                %259 = sbr.rel (0) target = $region63
              $region62: #{fwd.11} parent=47 // pred_region
                loop: start=0, step=1, limit=1
                $region64: #{fwd.11} parent=62 // loop_pre_header
                  _
                $region65: #{fwd.11} parent=62 // loop_header
                  %s261 = sphi 0, %s265
                  %p262 = scmp.ge.s32.totalorder %s261, 1
                  %s266 = sphi %s225, %s225
                  %s267 = sphi %s220, %s220
                $region66: #{fwd.11} parent=62 // loop_header_branch
                  %264 = sbr.rel (%p262) target = $region70
                $region67: #{fwd.11} parent=62 // loop_body
                  _
                $region68: #{fwd.11} parent=62 // loop_footer
                  %s265 = sadd.s32 1, %s261
                $region69: #{fwd.11} parent=62 // loop_footer_branch
                  %260 = sbr.rel target = $region65
                $region70: #{fwd.11} parent=62 // loop_exit
                  _
                %s269 = ssub.s32 16, 1
                loop: start=0, step=1, limit=1
                $region71: #{fwd.11} parent=62 // loop_pre_header
                  _
                $region72: #{fwd.11} parent=62 // loop_header
                  %s271 = sphi 0, %s275
                  %p272 = scmp.ge.s32.totalorder %s271, 1
                  %s276 = sphi %s225, %s225
                  %s277 = sphi %s220, %s220
                $region73: #{fwd.11} parent=62 // loop_header_branch
                  %274 = sbr.rel (%p272) target = $region77
                $region74: #{fwd.11} parent=62 // loop_body
                  %v278 = vld [vmem:[%s276] sm:%s269]
                  %279 = vst [vmem:[%s277] sm:%s269] %v278
                  %v280 = vld [vmem:[%s276 + $0x8] sm:%s269]
                  %281 = vst [vmem:[%s277 + $0x4] sm:%s269] %v280
                  %v282 = vld [vmem:[%s276 + $0x10] sm:%s269]
                  %283 = vst [vmem:[%s277 + $0x8] sm:%s269] %v282
                  %v284 = vld [vmem:[%s276 + $0x18] sm:%s269]
                  %285 = vst [vmem:[%s277 + $0xc] sm:%s269] %v284
                  %v286 = vld [vmem:[%s276 + $0x20] sm:%s269]
                  %287 = vst [vmem:[%s277 + $0x10] sm:%s269] %v286
                  %v288 = vld [vmem:[%s276 + $0x28] sm:%s269]
                  %289 = vst [vmem:[%s277 + $0x14] sm:%s269] %v288
                  %v290 = vld [vmem:[%s276 + $0x30] sm:%s269]
                  %291 = vst [vmem:[%s277 + $0x18] sm:%s269] %v290
                  %v292 = vld [vmem:[%s276 + $0x38] sm:%s269]
                  %293 = vst [vmem:[%s277 + $0x1c] sm:%s269] %v292
                $region75: #{fwd.11} parent=62 // loop_footer
                  %s275 = sadd.s32 1, %s271
                $region76: #{fwd.11} parent=62 // loop_footer_branch
                  %270 = sbr.rel target = $region72
                $region77: #{fwd.11} parent=62 // loop_exit
                  _
              $region63: #{fwd.11} parent=47 // pred_fallthru
                _
            $region48: #{fwd.11} parent=43 // pred_fallthru
              _
            // Predicated region
            $region49: #{fwd.11} parent=43 // pred_check
              _
            $region50: #{fwd.11} parent=43 // pred_check_branch
              %231 = sbr.rel (0) target = $region52
            $region51: #{fwd.11} parent=43 // pred_region
              %s233 = ssub.s32 16, 1
              loop: start=0, step=1, limit=1
              $region53: #{fwd.11} parent=51 // loop_pre_header
                _
              $region54: #{fwd.11} parent=51 // loop_header
                %s235 = sphi 0, %s239
                %p236 = scmp.ge.s32.totalorder %s235, 1
                %s240 = sphi %s225, %s225
                %s241 = sphi %s220, %s220
              $region55: #{fwd.11} parent=51 // loop_header_branch
                %238 = sbr.rel (%p236) target = $region59
              $region56: #{fwd.11} parent=51 // loop_body
                %v242 = vld [vmem:[%s240] sm:%s233]
                %243 = vst [vmem:[%s241] sm:%s233] %v242
                %v244 = vld [vmem:[%s240 + $0x8] sm:%s233]
                %245 = vst [vmem:[%s241 + $0x4] sm:%s233] %v244
                %v246 = vld [vmem:[%s240 + $0x10] sm:%s233]
                %247 = vst [vmem:[%s241 + $0x8] sm:%s233] %v246
                %v248 = vld [vmem:[%s240 + $0x18] sm:%s233]
                %249 = vst [vmem:[%s241 + $0xc] sm:%s233] %v248
                %v250 = vld [vmem:[%s240 + $0x20] sm:%s233]
                %251 = vst [vmem:[%s241 + $0x10] sm:%s233] %v250
                %v252 = vld [vmem:[%s240 + $0x28] sm:%s233]
                %253 = vst [vmem:[%s241 + $0x14] sm:%s233] %v252
                %v254 = vld [vmem:[%s240 + $0x30] sm:%s233]
                %255 = vst [vmem:[%s241 + $0x18] sm:%s233] %v254
                %v256 = vld [vmem:[%s240 + $0x38] sm:%s233]
                %257 = vst [vmem:[%s241 + $0x1c] sm:%s233] %v256
              $region57: #{fwd.11} parent=51 // loop_footer
                %s239 = sadd.s32 1, %s235
              $region58: #{fwd.11} parent=51 // loop_footer_branch
                %234 = sbr.rel target = $region54
              $region59: #{fwd.11} parent=51 // loop_exit
                _
            $region52: #{fwd.11} parent=43 // pred_fallthru
              _
          $region44: #{fwd.11} parent=39 // pred_fallthru
            _
          %294 = vnop
        $region40: #{fwd.11} parent=31 // pred_fallthru
          _
      $region32: #{fwd.11} parent=5 // pred_fallthru
        _
      %p295 = scmp.le.s32.totalorder 1, %s12
      %p296 = scmp.lt.s32.totalorder %s12, 3
      %p297 = pnand %p295, %p296
      %p298 = pneg %p297
      // Predicated region
      $region78: #{fwd.11} parent=5 // pred_check
        _
      $region79: #{fwd.11} parent=5 // pred_check_branch
        %300 = sbr.rel (%p297) target = $region81
      $region80: #{fwd.11} parent=5 // pred_region
        %s301 = ssub.s32 %s12, 1
        %s302 = sand.u32 %s93, 1
        %s303 = sand.u32 %s93, 1
        %s304 = smul.addr %s303, 32
        %s305 = scalar_lea.vmem [#allocation2], %s304
        // Predicated region
        $region82: #{fwd.11} parent=80 // pred_check
          %p306 = pneg %p106
        $region83: #{fwd.11} parent=80 // pred_check_branch
          %308 = sbr.rel (%p306) target = $region85
        $region84: #{fwd.11} parent=80 // pred_region
          _
        $region85: #{fwd.11} parent=80 // pred_fallthru
          _
        %s309 = smul.u32 8, %s17
        %p310 = scmp.lt.s32.totalorder %s309, 15
        %s311 = scalar_select %p310, %s309, 15
        %s312 = smul.addr %s311, 4
        %s313 = scalar_lea.vmem %s0, %s312
        %p314 = pneg %p38
        %p315 = pneg %p35
        %p316 = pneg %p59
        %p317 = pneg %p56
        %p318 = pneg %p80
        %p319 = pneg %p77
        %s320 = sand.u32 %s93, 1
        %s321 = sand.u32 %s93, 1
        %s322 = smul.addr %s321, 32
        %s323 = scalar_lea.vmem [#allocation2], %s322
        %p324 = pneg %p106
        %p325 = pneg %p103
        %p326 = pneg %p127
        %p327 = pneg %p124
        %p328 = pneg %p148
        %p329 = pneg %p145
        %p330 = pneg %p174
        %p331 = pneg %p171
        %s332 = smul.u32 8, %s17
        %p333 = scmp.lt.s32.totalorder %s332, 15
        %s334 = scalar_select %p333, %s332, 15
        %s335 = smul.addr %s334, 4
        %s336 = scalar_lea.vmem %s6, %s335
        %s337 = smul.u32 8, %s17
        %p338 = scmp.lt.s32.totalorder %s337, 15
        %s339 = scalar_select %p338, %s337, 15
        %s340 = smul.addr %s339, 4
        %s341 = scalar_lea.vmem %s0, %s340
        %s342 = smul.u32 8, %s17
        %s343 = smul.u32 8, %s17
        %s344 = smul.u32 8, %s17
        %p345 = scmp.lt.s32.totalorder %s344, 15
        %s346 = scalar_select %p345, %s344, 15
        %s347 = smul.addr %s346, 4
        %s348 = scalar_lea.vmem %s6, %s347
        %s349 = smul.u32 8, %s17
        %v350 = vld [vmem:[%s341] sm:$0xf]
        %v351 = vld [vmem:[%s341 + $0x4] sm:$0xf]
        %v352 = vld [vmem:[%s341 + $0x8] sm:$0xf]
        %v353 = vld [vmem:[%s341 + $0xc] sm:$0xf]
        %v354 = vld [vmem:[%s341 + $0x10] sm:$0xf]
        %v355 = vld [vmem:[%s341 + $0x14] sm:$0xf]
        %v356 = vld [vmem:[%s341 + $0x18] sm:$0xf]
        %v357 = vld [vmem:[%s341 + $0x1c] sm:$0xf]
        %v358 = vunpack.c.l.bf16 %v350
        %v359 = vunpack.c.l.bf16 %v351
        %v360 = vunpack.c.l.bf16 %v352
        %v361 = vunpack.c.l.bf16 %v353
        %v362 = vunpack.c.l.bf16 %v354
        %v363 = vunpack.c.l.bf16 %v355
        %v364 = vunpack.c.l.bf16 %v356
        %v365 = vunpack.c.l.bf16 %v357
        %v366 = vld [vmem:[%s1] sm:$0x1]
        %v368 = vperm.slane %v366, 0
        %v370 = vmul.f32 %v358, %v368
        %v371 = vmul.f32 %v359, %v368
        %v372 = vmul.f32 %v360, %v368
        %v373 = vmul.f32 %v361, %v368
        %v374 = vmul.f32 %v362, %v368
        %v375 = vmul.f32 %v363, %v368
        %v376 = vmul.f32 %v364, %v368
        %v377 = vmul.f32 %v365, %v368
        %v378 = vld [vmem:[%s2] sm:$0x1]
        %v380 = vperm.slane %v378, 0
        %v382 = vadd.f32 %v370, %v380
        %v383 = vadd.f32 %v371, %v380
        %v384 = vadd.f32 %v372, %v380
        %v385 = vadd.f32 %v373, %v380
        %v386 = vadd.f32 %v374, %v380
        %v387 = vadd.f32 %v375, %v380
        %v388 = vadd.f32 %v376, %v380
        %v389 = vadd.f32 %v377, %v380
        %v390 = vld [vmem:[%s305] sm:$0xf]
        %v391 = vld [vmem:[%s305 + $0x4] sm:$0xf]
        %v392 = vld [vmem:[%s305 + $0x8] sm:$0xf]
        %v393 = vld [vmem:[%s305 + $0xc] sm:$0xf]
        %v394 = vld [vmem:[%s305 + $0x10] sm:$0xf]
        %v395 = vld [vmem:[%s305 + $0x14] sm:$0xf]
        %v396 = vld [vmem:[%s305 + $0x18] sm:$0xf]
        %v397 = vld [vmem:[%s305 + $0x1c] sm:$0xf]
        %v398 = vunpack.c.l.bf16 %v390
        %v399 = vunpack.c.l.bf16 %v391
        %v400 = vunpack.c.l.bf16 %v392
        %v401 = vunpack.c.l.bf16 %v393
        %v402 = vunpack.c.l.bf16 %v394
        %v403 = vunpack.c.l.bf16 %v395
        %v404 = vunpack.c.l.bf16 %v396
        %v405 = vunpack.c.l.bf16 %v397
        %v406 = vld [vmem:[%s4] sm:$0x1]
        %v408 = vperm.slane %v406, 0
        %v410 = vmul.f32 %v398, %v408
        %v411 = vmul.f32 %v399, %v408
        %v412 = vmul.f32 %v400, %v408
        %v413 = vmul.f32 %v401, %v408
        %v414 = vmul.f32 %v402, %v408
        %v415 = vmul.f32 %v403, %v408
        %v416 = vmul.f32 %v404, %v408
        %v417 = vmul.f32 %v405, %v408
        %v418 = vadd.f32 %v382, %v410
        %v419 = vadd.f32 %v383, %v411
        %v420 = vadd.f32 %v384, %v412
        %v421 = vadd.f32 %v385, %v413
        %v422 = vadd.f32 %v386, %v414
        %v423 = vadd.f32 %v387, %v415
        %v424 = vadd.f32 %v388, %v416
        %v425 = vadd.f32 %v389, %v417
        %v426 = vld [vmem:[%s5] sm:$0x1]
        %v428 = vperm.slane %v426, 0
        %v430 = vadd.f32 %v418, %v428
        %v431 = vadd.f32 %v419, %v428
        %v432 = vadd.f32 %v420, %v428
        %v433 = vadd.f32 %v421, %v428
        %v434 = vadd.f32 %v422, %v428
        %v435 = vadd.f32 %v423, %v428
        %v436 = vadd.f32 %v424, %v428
        %v437 = vadd.f32 %v425, %v428
        %v438 = vmax.f32 %v430, 0.0
        %v439 = vmax.f32 %v431, 0.0
        %v440 = vmax.f32 %v432, 0.0
        %v441 = vmax.f32 %v433, 0.0
        %v442 = vmax.f32 %v434, 0.0
        %v443 = vmax.f32 %v435, 0.0
        %v444 = vmax.f32 %v436, 0.0
        %v445 = vmax.f32 %v437, 0.0
        %v446 = vpack.c.bf16 %v438, %v438
        %v447 = vpack.c.bf16 %v439, %v439
        %v448 = vpack.c.bf16 %v440, %v440
        %v449 = vpack.c.bf16 %v441, %v441
        %v450 = vpack.c.bf16 %v442, %v442
        %v451 = vpack.c.bf16 %v443, %v443
        %v452 = vpack.c.bf16 %v444, %v444
        %v453 = vpack.c.bf16 %v445, %v445
        %454 = vst [vmem:[%s348] sm:$0xf] %v446
        %455 = vst [vmem:[%s348 + $0x4] sm:$0xf] %v447
        %456 = vst [vmem:[%s348 + $0x8] sm:$0xf] %v448
        %457 = vst [vmem:[%s348 + $0xc] sm:$0xf] %v449
        %458 = vst [vmem:[%s348 + $0x10] sm:$0xf] %v450
        %459 = vst [vmem:[%s348 + $0x14] sm:$0xf] %v451
        %460 = vst [vmem:[%s348 + $0x18] sm:$0xf] %v452
        %461 = vst [vmem:[%s348 + $0x1c] sm:$0xf] %v453
        %s462 = smul.u32 8, %s17
        %p463 = scmp.lt.s32.totalorder %s462, 15
        %s464 = scalar_select %p463, %s462, 15
        %s465 = smul.addr %s464, 4
        %s466 = scalar_lea.vmem %s6, %s465
        // Predicated region
        $region86: #{fwd.11} parent=80 // pred_check
          %p467 = pneg %p171
        $region87: #{fwd.11} parent=80 // pred_check_branch
          %469 = sbr.rel (%p467) target = $region89
        $region88: #{fwd.11} parent=80 // pred_region
          %s470 = smul.u32 8, %s17
        $region89: #{fwd.11} parent=80 // pred_fallthru
          _
      $region81: #{fwd.11} parent=5 // pred_fallthru
        _
      %p471 = scmp.le.s32.totalorder 2, %s12
      // Predicated region
      $region90: #{fwd.11} parent=5 // pred_check
        %p472 = pneg %p471
      $region91: #{fwd.11} parent=5 // pred_check_branch
        %474 = sbr.rel (%p472) target = $region93
      $region92: #{fwd.11} parent=5 // pred_region
        %s475 = ssub.s32 %s12, 2
        // Predicated region
        $region94: #{fwd.11} parent=92 // pred_check
          %p476 = pneg %p177
        $region95: #{fwd.11} parent=92 // pred_check_branch
          %478 = sbr.rel (%p476) target = $region97
        $region96: #{fwd.11} parent=92 // pred_region
          %s479 = smul.u32 8, %s18
          %p480 = scmp.lt.s32.totalorder %s479, 15
          %s481 = scalar_select %p480, %s479, 15
          %s482 = smul.addr %s481, 4
          %s483 = scalar_lea.vmem %s6, %s482
        $region97: #{fwd.11} parent=92 // pred_fallthru
          _
      $region93: #{fwd.11} parent=5 // pred_fallthru
        _
    $region6: #{fwd.11} parent=1 // loop_footer
      %s16 = sadd.s32 1, %s12
    $region7: #{fwd.11} parent=1 // loop_footer_branch
      %11 = sbr.rel target = $region3
    $region8: #{fwd.11} parent=1 // loop_exit
      _

// kernel: fwd.10
$region0: #{fwd.10}
  #allocation0 [shape = 'u32[]', space=smem, size = 0x4, offset = 0x4, fixed_abs, tag = 'smem constant byte address 0x4 - core index']
  #allocation1 [shape = 'u32[72,128]{1,0:T(1,128)}', space=vmem, size = 0x9000, scoped, tag = 'internal scratch']
  %s0 = inlined_call_operand.vmem [shape: bf16[128,640], index: 0, kind: input, shape index: {}]
  %s1 = inlined_call_operand.vmem [shape: bf16[640,128], index: 1, kind: input, shape index: {}]
  %s2 = inlined_call_operand.vmem [shape: bf16[128,128], index: 2, kind: output, shape index: {0}]
  %s3 = inlined_call_operand.vmem [shape: f32[2,1,128], index: 3, kind: output, shape index: {1}]
  %s4 = inlined_call_operand.vmem [shape: f32[2,1,128], index: 4, kind: output, shape index: {2}]
  %5 = xla_tuple %s2, %s3, %s4
  %s6 = sld [smem:[#allocation0]]
  $region57: #{fwd.10} parent=0
    _
  %s8 = ssub.s32 1, %s6
  %s9 = scalar_select 0, %s8, %s6
  loop: start=0, step=1, limit=4
  $region2: #{fwd.10} parent=0 // loop_pre_header
    _
  $region3: #{fwd.10} parent=0 // loop_header
    %s11 = sphi 0, %s15
    %p12 = scmp.ge.s32.totalorder %s11, 4
    %s18 = sphi 0, %s30
    %s19 = sphi 0, %s26
    %s20 = sphi 0, %s18
    %s21 = sphi 0, %s19
    %s22 = sphi 0, %s20
    %s23 = sphi 0, %s21
    %s33 = sphi 0, %s35
    %s36 = sphi 0, %s33
    %s37 = sphi 0, %s36
    %s53 = sphi 0, %s37
    %s59 = sphi 0, %s61
    %s62 = sphi 0, %s59
    %s63 = sphi 0, %s62
    %s79 = sphi 0, %s63
    %s87 = sphi 0, %s89
    %s90 = sphi 0, %s87
    %s91 = sphi 0, %s90
    %s107 = sphi 0, %s91
    %s115 = sphi 0, %s117
    %s118 = sphi 0, %s115
    %s119 = sphi 0, %s118
    %s135 = sphi 0, %s119
    %s143 = sphi 0, %s145
    %s146 = sphi 0, %s143
    %s147 = sphi 0, %s146
    %s163 = sphi 0, %s147
  $region4: #{fwd.10} parent=0 // loop_header_branch
    %14 = sbr.rel (%p12) target = $region8
  $region5: #{fwd.10} parent=0 // loop_body
    %s16 = ssub.s32 %s11, 1
    %s17 = ssub.s32 %s11, 2
    %s24 = sadd.s32 1, %s19
    %p25 = scmp.ge.s32.totalorder %s24, 1
    %s26 = scalar_select %p25, 0, %s24
    %s27 = sadd.s32 1, %s18
    %s28 = scalar_select %p25, %s27, %s18
    %p29 = scmp.ge.s32.totalorder %s28, 2
    %s30 = scalar_select %p29, 0, %s28
    %s31 = ssub.s32 %s18, %s30
    %p32 = scmp.eq.s32.totalorder %s31, 0
    %s34 = sadd.s32 %s33, 1
    %s35 = scalar_select %p32, %s33, %s34
    %p38 = pneg %p32
    %p39 = scmp.eq.s32.totalorder %s11, 1
    %p40 = por %p38, %p39
    %p41 = scmp.ne.s32.totalorder %s33, %s36
    %p42 = scmp.eq.s32.totalorder %s11, 0
    %p43 = por %p41, %p42
    %p44 = scmp.ne.s32.totalorder %s33, %s36
    %p45 = scmp.eq.s32.totalorder %s16, 1
    %p46 = por %p44, %p45
    %p47 = scmp.ne.s32.totalorder %s36, %s37
    %p48 = scmp.eq.s32.totalorder %s16, 0
    %p49 = por %p47, %p48
    %p50 = scmp.ne.s32.totalorder %s36, %s37
    %p51 = scmp.eq.s32.totalorder %s17, 1
    %p52 = por %p50, %p51
    %p54 = scmp.ne.s32.totalorder %s37, %s53
    %p55 = scmp.eq.s32.totalorder %s17, 0
    %p56 = por %p54, %p55
    %s57 = ssub.s32 %s19, %s26
    %p58 = scmp.eq.s32.totalorder %s57, 0
    %s60 = sadd.s32 %s59, 1
    %s61 = scalar_select %p58, %s59, %s60
    %p64 = pneg %p58
    %p65 = scmp.eq.s32.totalorder %s11, 1
    %p66 = por %p64, %p65
    %p67 = scmp.ne.s32.totalorder %s59, %s62
    %p68 = scmp.eq.s32.totalorder %s11, 0
    %p69 = por %p67, %p68
    %p70 = scmp.ne.s32.totalorder %s59, %s62
    %p71 = scmp.eq.s32.totalorder %s16, 1
    %p72 = por %p70, %p71
    %p73 = scmp.ne.s32.totalorder %s62, %s63
    %p74 = scmp.eq.s32.totalorder %s16, 0
    %p75 = por %p73, %p74
    %p76 = scmp.ne.s32.totalorder %s62, %s63
    %p77 = scmp.eq.s32.totalorder %s17, 1
    %p78 = por %p76, %p77
    %p80 = scmp.ne.s32.totalorder %s63, %s79
    %p81 = scmp.eq.s32.totalorder %s17, 0
    %p82 = por %p80, %p81
    %s83 = ssub.s32 %s18, %s30
    %s84 = ssub.s32 %s19, %s26
    %s85 = sor.u32 %s83, %s84
    %p86 = scmp.eq.s32.totalorder %s85, 0
    %s88 = sadd.s32 %s87, 1
    %s89 = scalar_select %p86, %s87, %s88
    %p92 = pneg %p86
    %p93 = scmp.eq.s32.totalorder %s11, 1
    %p94 = por %p92, %p93
    %p95 = scmp.ne.s32.totalorder %s87, %s90
    %p96 = scmp.eq.s32.totalorder %s11, 0
    %p97 = por %p95, %p96
    %p98 = scmp.ne.s32.totalorder %s87, %s90
    %p99 = scmp.eq.s32.totalorder %s16, 1
    %p100 = por %p98, %p99
    %p101 = scmp.ne.s32.totalorder %s90, %s91
    %p102 = scmp.eq.s32.totalorder %s16, 0
    %p103 = por %p101, %p102
    %p104 = scmp.ne.s32.totalorder %s90, %s91
    %p105 = scmp.eq.s32.totalorder %s17, 1
    %p106 = por %p104, %p105
    %p108 = scmp.ne.s32.totalorder %s91, %s107
    %p109 = scmp.eq.s32.totalorder %s17, 0
    %p110 = por %p108, %p109
    %s111 = ssub.s32 %s18, %s30
    %s112 = ssub.s32 %s19, %s26
    %s113 = sor.u32 %s111, %s112
    %p114 = scmp.eq.s32.totalorder %s113, 0
    %s116 = sadd.s32 %s115, 1
    %s117 = scalar_select %p114, %s115, %s116
    %p120 = pneg %p114
    %p121 = scmp.eq.s32.totalorder %s11, 1
    %p122 = por %p120, %p121
    %p123 = scmp.ne.s32.totalorder %s115, %s118
    %p124 = scmp.eq.s32.totalorder %s11, 0
    %p125 = por %p123, %p124
    %p126 = scmp.ne.s32.totalorder %s115, %s118
    %p127 = scmp.eq.s32.totalorder %s16, 1
    %p128 = por %p126, %p127
    %p129 = scmp.ne.s32.totalorder %s118, %s119
    %p130 = scmp.eq.s32.totalorder %s16, 0
    %p131 = por %p129, %p130
    %p132 = scmp.ne.s32.totalorder %s118, %s119
    %p133 = scmp.eq.s32.totalorder %s17, 1
    %p134 = por %p132, %p133
    %p136 = scmp.ne.s32.totalorder %s119, %s135
    %p137 = scmp.eq.s32.totalorder %s17, 0
    %p138 = por %p136, %p137
    %s139 = ssub.s32 %s18, %s30
    %s140 = ssub.s32 %s19, %s26
    %s141 = sor.u32 %s139, %s140
    %p142 = scmp.eq.s32.totalorder %s141, 0
    %s144 = sadd.s32 %s143, 1
    %s145 = scalar_select %p142, %s143, %s144
    %p148 = pneg %p142
    %p149 = scmp.eq.s32.totalorder %s11, 1
    %p150 = por %p148, %p149
    %p151 = scmp.ne.s32.totalorder %s143, %s146
    %p152 = scmp.eq.s32.totalorder %s11, 0
    %p153 = por %p151, %p152
    %p154 = scmp.ne.s32.totalorder %s143, %s146
    %p155 = scmp.eq.s32.totalorder %s16, 1
    %p156 = por %p154, %p155
    %p157 = scmp.ne.s32.totalorder %s146, %s147
    %p158 = scmp.eq.s32.totalorder %s16, 0
    %p159 = por %p157, %p158
    %p160 = scmp.ne.s32.totalorder %s146, %s147
    %p161 = scmp.eq.s32.totalorder %s17, 1
    %p162 = por %p160, %p161
    %p164 = scmp.ne.s32.totalorder %s147, %s163
    %p165 = scmp.eq.s32.totalorder %s17, 0
    %p166 = por %p164, %p165
    %p167 = scmp.le.s32.totalorder 1, %s11
    %p168 = scmp.lt.s32.totalorder %s11, 3
    %p169 = pnand %p167, %p168
    %p170 = pneg %p169
    // Predicated region
    $region9: #{fwd.10} parent=5 // pred_check
      _
    $region10: #{fwd.10} parent=5 // pred_check_branch
      %172 = sbr.rel (%p169) target = $region12
    $region11: #{fwd.10} parent=5 // pred_region
      %s173 = ssub.s32 %s11, 1
      // Predicated region
      $region13: #{fwd.10} parent=11 // pred_check
        %p174 = pneg %p75
      $region14: #{fwd.10} parent=11 // pred_check_branch
        %176 = sbr.rel (%p174) target = $region16
      $region15: #{fwd.10} parent=11 // pred_region
        %p177 = scmp.lt.s32.totalorder %s21, 0
        %s178 = scalar_select %p177, %s21, 0
        %s179 = smul.addr %s178, 4
        %s180 = scalar_lea.vmem %s1, %s179
      $region16: #{fwd.10} parent=11 // pred_fallthru
        _
    $region12: #{fwd.10} parent=5 // pred_fallthru
      _
    %p181 = scmp.lt.s32.totalorder %s11, 2
    // Predicated region
    $region17: #{fwd.10} parent=5 // pred_check
      %p182 = pneg %p181
    $region18: #{fwd.10} parent=5 // pred_check_branch
      %184 = sbr.rel (%p182) target = $region20
    $region19: #{fwd.10} parent=5 // pred_region
      // Predicated region
      $region21: #{fwd.10} parent=19 // pred_check
        %p185 = pneg %p43
      $region22: #{fwd.10} parent=19 // pred_check_branch
        %187 = sbr.rel (%p185) target = $region24
      $region23: #{fwd.10} parent=19 // pred_region
        %s188 = smul.u32 8, %s18
        %p189 = scmp.lt.s32.totalorder %s188, 15
        %s190 = scalar_select %p189, %s188, 15
        %s191 = smul.addr %s190, 5
        %s192 = smul.addr %s191, 4
        %s193 = scalar_lea.vmem %s0, %s192
        %s194 = smul.u32 8, %s18
      $region24: #{fwd.10} parent=19 // pred_fallthru
        _
    $region20: #{fwd.10} parent=5 // pred_fallthru
      _
    %p195 = scmp.le.s32.totalorder 1, %s11
    %p196 = scmp.lt.s32.totalorder %s11, 3
    %p197 = pnand %p195, %p196
    %p198 = pneg %p197
    // Predicated region
    $region25: #{fwd.10} parent=5 // pred_check
      _
    $region26: #{fwd.10} parent=5 // pred_check_branch
      %200 = sbr.rel (%p197) target = $region28
    $region27: #{fwd.10} parent=5 // pred_region
      %s201 = ssub.s32 %s11, 1
      %s202 = smul.u32 8, %s20
      %p203 = scmp.lt.s32.totalorder %s202, 15
      %s204 = scalar_select %p203, %s202, 15
      %s205 = smul.addr %s204, 5
      %s206 = smul.addr %s205, 4
      %s207 = scalar_lea.vmem %s0, %s206
      %p208 = pneg %p49
      %p209 = pneg %p46
      %p210 = scmp.lt.s32.totalorder %s21, 0
      %s211 = scalar_select %p210, %s21, 0
      %s212 = smul.addr %s211, 4
      %s213 = scalar_lea.vmem %s1, %s212
      %p214 = pneg %p75
      %p215 = pneg %p72
      %p216 = pneg %p103
      %p217 = pneg %p100
      %s218 = smul.u32 8, %s20
      %p219 = scmp.lt.s32.totalorder %s218, 15
      %s220 = scalar_select %p219, %s218, 15
      %p221 = scmp.lt.s32.totalorder %s21, 0
      %s222 = scalar_select %p221, %s21, 0
      %s223 = sadd.s32 %s222, %s220
      %s224 = smul.addr %s223, 4
      %s225 = scalar_lea.vmem %s2, %s224
      %p226 = pneg %p131
      %p227 = pneg %p128
      %p228 = scmp.lt.s32.totalorder %s20, 1
      %s229 = scalar_select %p228, %s20, 1
      %p230 = scmp.lt.s32.totalorder %s21, 0
      %s231 = scalar_select %p230, %s21, 0
      %s232 = sadd.s32 %s231, %s229
      %s233 = scalar_lea.vmem %s3, %s232
      %p234 = pneg %p159
      %p235 = pneg %p156
      %p236 = scmp.lt.s32.totalorder %s20, 1
      %s237 = scalar_select %p236, %s20, 1
      %p238 = scmp.lt.s32.totalorder %s21, 0
      %s239 = scalar_select %p238, %s21, 0
      %s240 = sadd.s32 %s239, %s237
      %s241 = scalar_lea.vmem %s4, %s240
      %s242 = smul.u32 8, %s20
      %p243 = scmp.lt.s32.totalorder %s242, 15
      %s244 = scalar_select %p243, %s242, 15
      %s245 = smul.addr %s244, 5
      %s246 = smul.addr %s245, 4
      %s247 = scalar_lea.vmem %s0, %s246
      %s248 = smul.u32 8, %s20
      %p249 = scmp.lt.s32.totalorder %s21, 0
      %s250 = scalar_select %p249, %s21, 0
      %s251 = smul.addr %s250, 4
      %s252 = scalar_lea.vmem %s1, %s251
      %s253 = smul.u32 8, %s20
      %p254 = scmp.lt.s32.totalorder %s253, 15
      %s255 = scalar_select %p254, %s253, 15
      %p256 = scmp.lt.s32.totalorder %s21, 0
      %s257 = scalar_select %p256, %s21, 0
      %s258 = sadd.s32 %s257, %s255
      %s259 = smul.addr %s258, 4
      %s260 = scalar_lea.vmem %s2, %s259
      %s261 = smul.u32 8, %s20
      %p262 = scmp.lt.s32.totalorder %s20, 1
      %s263 = scalar_select %p262, %s20, 1
      %p264 = scmp.lt.s32.totalorder %s21, 0
      %s265 = scalar_select %p264, %s21, 0
      %s266 = sadd.s32 %s265, %s263
      %s267 = scalar_lea.vmem %s3, %s266
      %p268 = scmp.lt.s32.totalorder %s20, 1
      %s269 = scalar_select %p268, %s20, 1
      %p270 = scmp.lt.s32.totalorder %s21, 0
      %s271 = scalar_select %p270, %s21, 0
      %s272 = sadd.s32 %s271, %s269
      %s273 = scalar_lea.vmem %s4, %s272
      %v274 = vld [vmem:[%s247] sm:$0xff]
      %v275 = vld [vmem:[%s247 + $0x8] sm:$0xff]
      %v276 = vld [vmem:[%s247 + $0x10] sm:$0xf]
      %v277 = vld [vmem:[%s247 + $0x14] sm:$0xff]
      %v278 = vld [vmem:[%s247 + $0x1c] sm:$0xff]
      %v279 = vld [vmem:[%s247 + $0x24] sm:$0xf]
      %v280 = vld [vmem:[%s247 + $0x28] sm:$0xff]
      %v281 = vld [vmem:[%s247 + $0x30] sm:$0xff]
      %v282 = vld [vmem:[%s247 + $0x38] sm:$0xf]
      %v283 = vld [vmem:[%s247 + $0x3c] sm:$0xff]
      %v284 = vld [vmem:[%s247 + $0x44] sm:$0xff]
      %v285 = vld [vmem:[%s247 + $0x4c] sm:$0xf]
      %v286 = vld [vmem:[%s247 + $0x50] sm:$0xff]
      %v287 = vld [vmem:[%s247 + $0x58] sm:$0xff]
      %v288 = vld [vmem:[%s247 + $0x60] sm:$0xf]
      %v289 = vld [vmem:[%s247 + $0x64] sm:$0xff]
      %v290 = vld [vmem:[%s247 + $0x6c] sm:$0xff]
      %v291 = vld [vmem:[%s247 + $0x74] sm:$0xf]
      %v292 = vld [vmem:[%s247 + $0x78] sm:$0xff]
      %v293 = vld [vmem:[%s247 + $0x80] sm:$0xff]
      %v294 = vld [vmem:[%s247 + $0x88] sm:$0xf]
      %v295 = vld [vmem:[%s247 + $0x8c] sm:$0xff]
      %v296 = vld [vmem:[%s247 + $0x94] sm:$0xff]
      %v297 = vld [vmem:[%s247 + $0x9c] sm:$0xf]
      %v298 = vld [vmem:[%s252] sm:$0xf]
      %v299 = vld [vmem:[%s252 + $0x4] sm:$0xf]
      %v300 = vld [vmem:[%s252 + $0x8] sm:$0xf]
      %v301 = vld [vmem:[%s252 + $0xc] sm:$0xf]
      %v302 = vld [vmem:[%s252 + $0x10] sm:$0xf]
      %v303 = vld [vmem:[%s252 + $0x14] sm:$0xf]
      %v304 = vld [vmem:[%s252 + $0x18] sm:$0xf]
      %v305 = vld [vmem:[%s252 + $0x1c] sm:$0xf]
      %v306 = vld [vmem:[%s252 + $0x20] sm:$0xf]
      %v307 = vld [vmem:[%s252 + $0x24] sm:$0xf]
      %v308 = vld [vmem:[%s252 + $0x28] sm:$0xf]
      %v309 = vld [vmem:[%s252 + $0x2c] sm:$0xf]
      %v310 = vld [vmem:[%s252 + $0x30] sm:$0xf]
      %v311 = vld [vmem:[%s252 + $0x34] sm:$0xf]
      %v312 = vld [vmem:[%s252 + $0x38] sm:$0xf]
      %v313 = vld [vmem:[%s252 + $0x3c] sm:$0xf]
      %v314 = vld [vmem:[%s252 + $0x40] sm:$0xf]
      %v315 = vld [vmem:[%s252 + $0x44] sm:$0xf]
      %v316 = vld [vmem:[%s252 + $0x48] sm:$0xf]
      %v317 = vld [vmem:[%s252 + $0x4c] sm:$0xf]
      %v318 = vld [vmem:[%s252 + $0x50] sm:$0xf]
      %v319 = vld [vmem:[%s252 + $0x54] sm:$0xf]
      %v320 = vld [vmem:[%s252 + $0x58] sm:$0xf]
      %v321 = vld [vmem:[%s252 + $0x5c] sm:$0xf]
      %v322 = vld [vmem:[%s252 + $0x60] sm:$0xf]
      %v323 = vld [vmem:[%s252 + $0x64] sm:$0xf]
      %v324 = vld [vmem:[%s252 + $0x68] sm:$0xf]
      %v325 = vld [vmem:[%s252 + $0x6c] sm:$0xf]
      %v326 = vld [vmem:[%s252 + $0x70] sm:$0xf]
      %v327 = vld [vmem:[%s252 + $0x74] sm:$0xf]
      %v328 = vld [vmem:[%s252 + $0x78] sm:$0xf]
      %v329 = vld [vmem:[%s252 + $0x7c] sm:$0xf]
      %v330 = vld [vmem:[%s252 + $0x80] sm:$0xf]
      %v331 = vld [vmem:[%s252 + $0x84] sm:$0xf]
      %v332 = vld [vmem:[%s252 + $0x88] sm:$0xf]
      %v333 = vld [vmem:[%s252 + $0x8c] sm:$0xf]
      %v334 = vld [vmem:[%s252 + $0x90] sm:$0xf]
      %v335 = vld [vmem:[%s252 + $0x94] sm:$0xf]
      %v336 = vld [vmem:[%s252 + $0x98] sm:$0xf]
      %v337 = vld [vmem:[%s252 + $0x9c] sm:$0xf]
      %v338 = vld [vmem:[%s252 + $0xa0] sm:$0xf]
      %v339 = vld [vmem:[%s252 + $0xa4] sm:$0xf]
      %v340 = vld [vmem:[%s252 + $0xa8] sm:$0xf]
      %v341 = vld [vmem:[%s252 + $0xac] sm:$0xf]
      %v342 = vld [vmem:[%s252 + $0xb0] sm:$0xf]
      %v343 = vld [vmem:[%s252 + $0xb4] sm:$0xf]
      %v344 = vld [vmem:[%s252 + $0xb8] sm:$0xf]
      %v345 = vld [vmem:[%s252 + $0xbc] sm:$0xf]
      %v346 = vld [vmem:[%s252 + $0xc0] sm:$0xf]
      %v347 = vld [vmem:[%s252 + $0xc4] sm:$0xf]
      %v348 = vld [vmem:[%s252 + $0xc8] sm:$0xf]
      %v349 = vld [vmem:[%s252 + $0xcc] sm:$0xf]
      %v350 = vld [vmem:[%s252 + $0xd0] sm:$0xf]
      %v351 = vld [vmem:[%s252 + $0xd4] sm:$0xf]
      %v352 = vld [vmem:[%s252 + $0xd8] sm:$0xf]
      %v353 = vld [vmem:[%s252 + $0xdc] sm:$0xf]
      %v354 = vld [vmem:[%s252 + $0xe0] sm:$0xf]
      %v355 = vld [vmem:[%s252 + $0xe4] sm:$0xf]
      %v356 = vld [vmem:[%s252 + $0xe8] sm:$0xf]
      %v357 = vld [vmem:[%s252 + $0xec] sm:$0xf]
      %v358 = vld [vmem:[%s252 + $0xf0] sm:$0xf]
      %v359 = vld [vmem:[%s252 + $0xf4] sm:$0xf]
      %v360 = vld [vmem:[%s252 + $0xf8] sm:$0xf]
      %v361 = vld [vmem:[%s252 + $0xfc] sm:$0xf]
      %v362 = vld [vmem:[%s252 + $0x100] sm:$0xf]
      %v363 = vld [vmem:[%s252 + $0x104] sm:$0xf]
      %v364 = vld [vmem:[%s252 + $0x108] sm:$0xf]
      %v365 = vld [vmem:[%s252 + $0x10c] sm:$0xf]
      %v366 = vld [vmem:[%s252 + $0x110] sm:$0xf]
      %v367 = vld [vmem:[%s252 + $0x114] sm:$0xf]
      %v368 = vld [vmem:[%s252 + $0x118] sm:$0xf]
      %v369 = vld [vmem:[%s252 + $0x11c] sm:$0xf]
      %v370 = vld [vmem:[%s252 + $0x120] sm:$0xf]
      %v371 = vld [vmem:[%s252 + $0x124] sm:$0xf]
      %v372 = vld [vmem:[%s252 + $0x128] sm:$0xf]
      %v373 = vld [vmem:[%s252 + $0x12c] sm:$0xf]
      %v374 = vld [vmem:[%s252 + $0x130] sm:$0xf]
      %v375 = vld [vmem:[%s252 + $0x134] sm:$0xf]
      %v376 = vld [vmem:[%s252 + $0x138] sm:$0xf]
      %v377 = vld [vmem:[%s252 + $0x13c] sm:$0xf]
      %v402 = vunpack.c.l.b16 %v274
      %v403 = vunpack.c.h.b16 %v274
      %v404 = vunpack.c.l.b16 %v275
      %v405 = vunpack.c.h.b16 %v275
      %v406 = vunpack.c.l.b16 %v276
      %v407 = vunpack.c.l.b16 %v277
      %v408 = vunpack.c.h.b16 %v277
      %v409 = vunpack.c.l.b16 %v278
      %v410 = vunpack.c.h.b16 %v278
      %v411 = vunpack.c.l.b16 %v279
      %v412 = vunpack.c.l.b16 %v280
      %v413 = vunpack.c.h.b16 %v280
      %v414 = vunpack.c.l.b16 %v281
      %v415 = vunpack.c.h.b16 %v281
      %v416 = vunpack.c.l.b16 %v282
      %v417 = vunpack.c.l.b16 %v283
      %v418 = vunpack.c.h.b16 %v283
      %v419 = vunpack.c.l.b16 %v284
      %v420 = vunpack.c.h.b16 %v284
      %v421 = vunpack.c.l.b16 %v285
      %v422 = vunpack.c.l.b16 %v286
      %v423 = vunpack.c.h.b16 %v286
      %v424 = vunpack.c.l.b16 %v287
      %v425 = vunpack.c.h.b16 %v287
      %v426 = vunpack.c.l.b16 %v288
      %v427 = vunpack.c.l.b16 %v289
      %v428 = vunpack.c.h.b16 %v289
      %v429 = vunpack.c.l.b16 %v290
      %v430 = vunpack.c.h.b16 %v290
      %v431 = vunpack.c.l.b16 %v291
      %v432 = vunpack.c.l.b16 %v292
      %v433 = vunpack.c.h.b16 %v292
      %v434 = vunpack.c.l.b16 %v293
      %v435 = vunpack.c.h.b16 %v293
      %v436 = vunpack.c.l.b16 %v294
      %v437 = vunpack.c.l.b16 %v295
      %v438 = vunpack.c.h.b16 %v295
      %v439 = vunpack.c.l.b16 %v296
      %v440 = vunpack.c.h.b16 %v296
      %v441 = vunpack.c.l.b16 %v297
      %v442 = vpack.c.b16 %v407, %v402
      %v443 = vpack.c.b16 %v408, %v403
      %v444 = vpack.c.b16 %v409, %v404
      %v445 = vpack.c.b16 %v410, %v405
      %v446 = vpack.c.b16 %v411, %v406
      %v447 = vpack.c.b16 %v417, %v412
      %v448 = vpack.c.b16 %v418, %v413
      %v449 = vpack.c.b16 %v419, %v414
      %v450 = vpack.c.b16 %v420, %v415
      %v451 = vpack.c.b16 %v421, %v416
      %v452 = vpack.c.b16 %v427, %v422
      %v453 = vpack.c.b16 %v428, %v423
      %v454 = vpack.c.b16 %v429, %v424
      %v455 = vpack.c.b16 %v430, %v425
      %v456 = vpack.c.b16 %v431, %v426
      %v457 = vpack.c.b16 %v437, %v432
      %v458 = vpack.c.b16 %v438, %v433
      %v459 = vpack.c.b16 %v439, %v434
      %v460 = vpack.c.b16 %v440, %v435
      %v461 = vpack.c.b16 %v441, %v436
      %v562 = vunpack.c.l.b16 %v298
      %v563 = vunpack.c.l.b16 %v299
      %v564 = vunpack.c.l.b16 %v300
      %v565 = vunpack.c.l.b16 %v301
      %v566 = vunpack.c.l.b16 %v302
      %v567 = vunpack.c.l.b16 %v303
      %v568 = vunpack.c.l.b16 %v304
      %v569 = vunpack.c.l.b16 %v305
      %v570 = vunpack.c.l.b16 %v306
      %v571 = vunpack.c.l.b16 %v307
      %v572 = vunpack.c.l.b16 %v308
      %v573 = vunpack.c.l.b16 %v309
      %v574 = vunpack.c.l.b16 %v310
      %v575 = vunpack.c.l.b16 %v311
      %v576 = vunpack.c.l.b16 %v312
      %v577 = vunpack.c.l.b16 %v313
      %v578 = vunpack.c.l.b16 %v314
      %v579 = vunpack.c.l.b16 %v315
      %v580 = vunpack.c.l.b16 %v316
      %v581 = vunpack.c.l.b16 %v317
      %v582 = vunpack.c.l.b16 %v318
      %v583 = vunpack.c.l.b16 %v319
      %v584 = vunpack.c.l.b16 %v320
      %v585 = vunpack.c.l.b16 %v321
      %v586 = vunpack.c.l.b16 %v322
      %v587 = vunpack.c.l.b16 %v323
      %v588 = vunpack.c.l.b16 %v324
      %v589 = vunpack.c.l.b16 %v325
      %v590 = vunpack.c.l.b16 %v326
      %v591 = vunpack.c.l.b16 %v327
      %v592 = vunpack.c.l.b16 %v328
      %v593 = vunpack.c.l.b16 %v329
      %v594 = vunpack.c.l.b16 %v330
      %v595 = vunpack.c.l.b16 %v331
      %v596 = vunpack.c.l.b16 %v332
      %v597 = vunpack.c.l.b16 %v333
      %v598 = vunpack.c.l.b16 %v334
      %v599 = vunpack.c.l.b16 %v335
      %v600 = vunpack.c.l.b16 %v336
      %v601 = vunpack.c.l.b16 %v337
      %v602 = vunpack.c.l.b16 %v338
      %v603 = vunpack.c.l.b16 %v339
      %v604 = vunpack.c.l.b16 %v340
      %v605 = vunpack.c.l.b16 %v341
      %v606 = vunpack.c.l.b16 %v342
      %v607 = vunpack.c.l.b16 %v343
      %v608 = vunpack.c.l.b16 %v344
      %v609 = vunpack.c.l.b16 %v345
      %v610 = vunpack.c.l.b16 %v346
      %v611 = vunpack.c.l.b16 %v347
      %v612 = vunpack.c.l.b16 %v348
      %v613 = vunpack.c.l.b16 %v349
      %v614 = vunpack.c.l.b16 %v350
      %v615 = vunpack.c.l.b16 %v351
      %v616 = vunpack.c.l.b16 %v352
      %v617 = vunpack.c.l.b16 %v353
      %v618 = vunpack.c.l.b16 %v354
      %v619 = vunpack.c.l.b16 %v355
      %v620 = vunpack.c.l.b16 %v356
      %v621 = vunpack.c.l.b16 %v357
      %v622 = vunpack.c.l.b16 %v358
      %v623 = vunpack.c.l.b16 %v359
      %v624 = vunpack.c.l.b16 %v360
      %v625 = vunpack.c.l.b16 %v361
      %v626 = vunpack.c.l.b16 %v362
      %v627 = vunpack.c.l.b16 %v363
      %v628 = vunpack.c.l.b16 %v364
      %v629 = vunpack.c.l.b16 %v365
      %v630 = vunpack.c.l.b16 %v366
      %v631 = vunpack.c.l.b16 %v367
      %v632 = vunpack.c.l.b16 %v368
      %v633 = vunpack.c.l.b16 %v369
      %v634 = vunpack.c.l.b16 %v370
      %v635 = vunpack.c.l.b16 %v371
      %v636 = vunpack.c.l.b16 %v372
      %v637 = vunpack.c.l.b16 %v373
      %v638 = vunpack.c.l.b16 %v374
      %v639 = vunpack.c.l.b16 %v375
      %v640 = vunpack.c.l.b16 %v376
      %v641 = vunpack.c.l.b16 %v377
      %v642 = vpack.c.b16 %v563, %v562
      %v643 = vpack.c.b16 %v565, %v564
      %v644 = vpack.c.b16 %v567, %v566
      %v645 = vpack.c.b16 %v569, %v568
      %v646 = vpack.c.b16 %v571, %v570
      %v647 = vpack.c.b16 %v573, %v572
      %v648 = vpack.c.b16 %v575, %v574
      %v649 = vpack.c.b16 %v577, %v576
      %v650 = vpack.c.b16 %v579, %v578
      %v651 = vpack.c.b16 %v581, %v580
      %v652 = vpack.c.b16 %v583, %v582
      %v653 = vpack.c.b16 %v585, %v584
      %v654 = vpack.c.b16 %v587, %v586
      %v655 = vpack.c.b16 %v589, %v588
      %v656 = vpack.c.b16 %v591, %v590
      %v657 = vpack.c.b16 %v593, %v592
      %v658 = vpack.c.b16 %v595, %v594
      %v659 = vpack.c.b16 %v597, %v596
      %v660 = vpack.c.b16 %v599, %v598
      %v661 = vpack.c.b16 %v601, %v600
      %v662 = vpack.c.b16 %v603, %v602
      %v663 = vpack.c.b16 %v605, %v604
      %v664 = vpack.c.b16 %v607, %v606
      %v665 = vpack.c.b16 %v609, %v608
      %v666 = vpack.c.b16 %v611, %v610
      %v667 = vpack.c.b16 %v613, %v612
      %v668 = vpack.c.b16 %v615, %v614
      %v669 = vpack.c.b16 %v617, %v616
      %v670 = vpack.c.b16 %v619, %v618
      %v671 = vpack.c.b16 %v621, %v620
      %v672 = vpack.c.b16 %v623, %v622
      %v673 = vpack.c.b16 %v625, %v624
      %v674 = vpack.c.b16 %v627, %v626
      %v675 = vpack.c.b16 %v629, %v628
      %v676 = vpack.c.b16 %v631, %v630
      %v677 = vpack.c.b16 %v633, %v632
      %v678 = vpack.c.b16 %v635, %v634
      %v679 = vpack.c.b16 %v637, %v636
      %v680 = vpack.c.b16 %v639, %v638
      %v681 = vpack.c.b16 %v641, %v640
      %722 = vmatpush.bf16.msra.mxu0 %v649
      %723 = vmatpush.bf16.msra.mxu0 %v648
      %724 = vmatpush.bf16.msra.mxu0 %v647
      %725 = vmatpush.bf16.msra.mxu0 %v646
      %726 = vmatpush.bf16.msra.mxu0 %v645
      %727 = vmatpush.bf16.msra.mxu0 %v644
      %728 = vmatpush.bf16.msra.mxu0 %v643
      %729 = vmatpush.bf16.msra.mxu0 %v642
      %730 = vmatmul.bf16.gmra.mxu0 %v442
      %v731 = vpop.f32.mrf.mxu0
      %v732 = vadd.f32 0.0, %v731
      %v733 = vpop.f32.mrf.mxu0
      %v734 = vadd.f32 0.0, %v733
      %735 = vmatmul.bf16.gmra.mxu0 %v447
      %v736 = vpop.f32.mrf.mxu0
      %v737 = vadd.f32 0.0, %v736
      %v738 = vpop.f32.mrf.mxu0
      %v739 = vadd.f32 0.0, %v738
      %740 = vmatmul.bf16.gmra.mxu0 %v452
      %v741 = vpop.f32.mrf.mxu0
      %v742 = vadd.f32 0.0, %v741
      %v743 = vpop.f32.mrf.mxu0
      %v744 = vadd.f32 0.0, %v743
      %745 = vmatmul.bf16.gmra.mxu0 %v457
      %v746 = vpop.f32.mrf.mxu0
      %v747 = vadd.f32 0.0, %v746
      %v748 = vpop.f32.mrf.mxu0
      %v749 = vadd.f32 0.0, %v748
      %750 = vdwg.mxu0
      %751 = vmatpush.bf16.msra.mxu0 %v657
      %752 = vmatpush.bf16.msra.mxu0 %v656
      %753 = vmatpush.bf16.msra.mxu0 %v655
      %754 = vmatpush.bf16.msra.mxu0 %v654
      %755 = vmatpush.bf16.msra.mxu0 %v653
      %756 = vmatpush.bf16.msra.mxu0 %v652
      %757 = vmatpush.bf16.msra.mxu0 %v651
      %758 = vmatpush.bf16.msra.mxu0 %v650
      %759 = vmatmul.bf16.gmra.mxu0 %v443
      %v760 = vpop.f32.mrf.mxu0
      %v761 = vadd.f32 %v732, %v760
      %v762 = vpop.f32.mrf.mxu0
      %v763 = vadd.f32 %v734, %v762
      %764 = vmatmul.bf16.gmra.mxu0 %v448
      %v765 = vpop.f32.mrf.mxu0
      %v766 = vadd.f32 %v737, %v765
      %v767 = vpop.f32.mrf.mxu0
      %v768 = vadd.f32 %v739, %v767
      %769 = vmatmul.bf16.gmra.mxu0 %v453
      %v770 = vpop.f32.mrf.mxu0
      %v771 = vadd.f32 %v742, %v770
      %v772 = vpop.f32.mrf.mxu0
      %v773 = vadd.f32 %v744, %v772
      %774 = vmatmul.bf16.gmra.mxu0 %v458
      %v775 = vpop.f32.mrf.mxu0
      %v776 = vadd.f32 %v747, %v775
      %v777 = vpop.f32.mrf.mxu0
      %v778 = vadd.f32 %v749, %v777
      %779 = vdwg.mxu0
      %780 = vmatpush.bf16.msra.mxu0 %v665
      %781 = vmatpush.bf16.msra.mxu0 %v664
      %782 = vmatpush.bf16.msra.mxu0 %v663
      %783 = vmatpush.bf16.msra.mxu0 %v662
      %784 = vmatpush.bf16.msra.mxu0 %v661
      %785 = vmatpush.bf16.msra.mxu0 %v660
      %786 = vmatpush.bf16.msra.mxu0 %v659
      %787 = vmatpush.bf16.msra.mxu0 %v658
      %788 = vmatmul.bf16.gmra.mxu0 %v444
      %v789 = vpop.f32.mrf.mxu0
      %v790 = vadd.f32 %v761, %v789
      %v791 = vpop.f32.mrf.mxu0
      %v792 = vadd.f32 %v763, %v791
      %793 = vmatmul.bf16.gmra.mxu0 %v449
      %v794 = vpop.f32.mrf.mxu0
      %v795 = vadd.f32 %v766, %v794
      %v796 = vpop.f32.mrf.mxu0
      %v797 = vadd.f32 %v768, %v796
      %798 = vmatmul.bf16.gmra.mxu0 %v454
      %v799 = vpop.f32.mrf.mxu0
      %v800 = vadd.f32 %v771, %v799
      %v801 = vpop.f32.mrf.mxu0
      %v802 = vadd.f32 %v773, %v801
      %803 = vmatmul.bf16.gmra.mxu0 %v459
      %v804 = vpop.f32.mrf.mxu0
      %v805 = vadd.f32 %v776, %v804
      %v806 = vpop.f32.mrf.mxu0
      %v807 = vadd.f32 %v778, %v806
      %808 = vdwg.mxu0
      %809 = vmatpush.bf16.msra.mxu0 %v673
      %810 = vmatpush.bf16.msra.mxu0 %v672
      %811 = vmatpush.bf16.msra.mxu0 %v671
      %812 = vmatpush.bf16.msra.mxu0 %v670
      %813 = vmatpush.bf16.msra.mxu0 %v669
      %814 = vmatpush.bf16.msra.mxu0 %v668
      %815 = vmatpush.bf16.msra.mxu0 %v667
      %816 = vmatpush.bf16.msra.mxu0 %v666
      %817 = vmatmul.bf16.gmra.mxu0 %v445
      %v818 = vpop.f32.mrf.mxu0
      %v819 = vadd.f32 %v790, %v818
      %v820 = vpop.f32.mrf.mxu0
      %v821 = vadd.f32 %v792, %v820
      %822 = vmatmul.bf16.gmra.mxu0 %v450
      %v823 = vpop.f32.mrf.mxu0
      %v824 = vadd.f32 %v795, %v823
      %v825 = vpop.f32.mrf.mxu0
      %v826 = vadd.f32 %v797, %v825
      %827 = vmatmul.bf16.gmra.mxu0 %v455
      %v828 = vpop.f32.mrf.mxu0
      %v829 = vadd.f32 %v800, %v828
      %v830 = vpop.f32.mrf.mxu0
      %v831 = vadd.f32 %v802, %v830
      %832 = vmatmul.bf16.gmra.mxu0 %v460
      %v833 = vpop.f32.mrf.mxu0
      %v834 = vadd.f32 %v805, %v833
      %v835 = vpop.f32.mrf.mxu0
      %v836 = vadd.f32 %v807, %v835
      %837 = vdwg.mxu0
      %838 = vmatpush.bf16.msra.mxu0 %v681
      %839 = vmatpush.bf16.msra.mxu0 %v680
      %840 = vmatpush.bf16.msra.mxu0 %v679
      %841 = vmatpush.bf16.msra.mxu0 %v678
      %842 = vmatpush.bf16.msra.mxu0 %v677
      %843 = vmatpush.bf16.msra.mxu0 %v676
      %844 = vmatpush.bf16.msra.mxu0 %v675
      %845 = vmatpush.bf16.msra.mxu0 %v674
      %846 = vmatmul.bf16.gmra.mxu0 %v446
      %v847 = vpop.f32.mrf.mxu0
      %v848 = vadd.f32 %v819, %v847
      %v849 = vpop.f32.mrf.mxu0
      %v850 = vadd.f32 %v821, %v849
      %851 = vmatmul.bf16.gmra.mxu0 %v451
      %v852 = vpop.f32.mrf.mxu0
      %v853 = vadd.f32 %v824, %v852
      %v854 = vpop.f32.mrf.mxu0
      %v855 = vadd.f32 %v826, %v854
      %856 = vmatmul.bf16.gmra.mxu0 %v456
      %v857 = vpop.f32.mrf.mxu0
      %v858 = vadd.f32 %v829, %v857
      %v859 = vpop.f32.mrf.mxu0
      %v860 = vadd.f32 %v831, %v859
      %861 = vmatmul.bf16.gmra.mxu0 %v461
      %v862 = vpop.f32.mrf.mxu0
      %v863 = vadd.f32 %v834, %v862
      %v864 = vpop.f32.mrf.mxu0
      %v865 = vadd.f32 %v836, %v864
      %866 = vdwg.mxu0
      %v867 = vpack.c.bf16 %v848, %v848
      %v868 = vpack.c.bf16 %v850, %v850
      %v869 = vpack.c.bf16 %v853, %v853
      %v870 = vpack.c.bf16 %v855, %v855
      %v871 = vpack.c.bf16 %v858, %v858
      %v872 = vpack.c.bf16 %v860, %v860
      %v873 = vpack.c.bf16 %v863, %v863
      %v874 = vpack.c.bf16 %v865, %v865
      %875 = vst [vmem:[%s260] sm:$0xf] %v867
      %876 = vst [vmem:[%s260 + $0x4] sm:$0xf] %v868
      %877 = vst [vmem:[%s260 + $0x8] sm:$0xf] %v869
      %878 = vst [vmem:[%s260 + $0xc] sm:$0xf] %v870
      %879 = vst [vmem:[%s260 + $0x10] sm:$0xf] %v871
      %880 = vst [vmem:[%s260 + $0x14] sm:$0xf] %v872
      %881 = vst [vmem:[%s260 + $0x18] sm:$0xf] %v873
      %882 = vst [vmem:[%s260 + $0x1c] sm:$0xf] %v874
      %v883 = vadd.f32 %v848, %v850
      %v884 = vadd.f32 %v883, %v853
      %v885 = vadd.f32 %v884, %v855
      %v886 = vadd.f32 %v885, %v858
      %v887 = vadd.f32 %v886, %v860
      %v888 = vadd.f32 %v887, %v863
      %v889 = vadd.f32 %v888, %v865
      %v890 = vrot.slane %v889, 4
      %v891 = vadd.f32 %v889, %v890
      %v892 = vrot.slane %v891, 2
      %v893 = vadd.f32 %v891, %v892
      %v894 = vrot.slane %v893, 1
      %v895 = vadd.f32 %v893, %v894
      %896 = vst [vmem:[%s267] sm:$0x1] %v895
      %v897 = vmul.f32 %v848, %v848
      %v898 = vmul.f32 %v850, %v850
      %v899 = vmul.f32 %v853, %v853
      %v900 = vmul.f32 %v855, %v855
      %v901 = vmul.f32 %v858, %v858
      %v902 = vmul.f32 %v860, %v860
      %v903 = vmul.f32 %v863, %v863
      %v904 = vmul.f32 %v865, %v865
      %v905 = vadd.f32 %v897, %v898
      %v906 = vadd.f32 %v905, %v899
      %v907 = vadd.f32 %v906, %v900
      %v908 = vadd.f32 %v907, %v901
      %v909 = vadd.f32 %v908, %v902
      %v910 = vadd.f32 %v909, %v903
      %v911 = vadd.f32 %v910, %v904
      %v912 = vrot.slane %v911, 4
      %v913 = vadd.f32 %v911, %v912
      %v914 = vrot.slane %v913, 2
      %v915 = vadd.f32 %v913, %v914
      %v916 = vrot.slane %v915, 1
      %v917 = vadd.f32 %v915, %v916
      %918 = vst [vmem:[%s273] sm:$0x1] %v917
      %s919 = smul.u32 8, %s20
      %p920 = scmp.lt.s32.totalorder %s919, 15
      %s921 = scalar_select %p920, %s919, 15
      %p922 = scmp.lt.s32.totalorder %s21, 0
      %s923 = scalar_select %p922, %s21, 0
      %s924 = sadd.s32 %s923, %s921
      %s925 = smul.addr %s924, 4
      %s926 = scalar_lea.vmem %s2, %s925
      %p927 = scmp.lt.s32.totalorder %s20, 1
      %s928 = scalar_select %p927, %s20, 1
      %p929 = scmp.lt.s32.totalorder %s21, 0
      %s930 = scalar_select %p929, %s21, 0
      %s931 = sadd.s32 %s930, %s928
      %s932 = scalar_lea.vmem %s3, %s931
      %p933 = scmp.lt.s32.totalorder %s20, 1
      %s934 = scalar_select %p933, %s20, 1
      %p935 = scmp.lt.s32.totalorder %s21, 0
      %s936 = scalar_select %p935, %s21, 0
      %s937 = sadd.s32 %s936, %s934
      %s938 = scalar_lea.vmem %s4, %s937
      // Predicated region
      $region29: #{fwd.10} parent=27 // pred_check
        %p939 = pneg %p100
      $region30: #{fwd.10} parent=27 // pred_check_branch
        %941 = sbr.rel (%p939) target = $region32
      $region31: #{fwd.10} parent=27 // pred_region
        %s942 = smul.u32 8, %s20
      $region32: #{fwd.10} parent=27 // pred_fallthru
        _
      // Predicated region
      $region33: #{fwd.10} parent=27 // pred_check
        %p943 = pneg %p128
      $region34: #{fwd.10} parent=27 // pred_check_branch
        %945 = sbr.rel (%p943) target = $region36
      $region35: #{fwd.10} parent=27 // pred_region
        _
      $region36: #{fwd.10} parent=27 // pred_fallthru
        _
      // Predicated region
      $region37: #{fwd.10} parent=27 // pred_check
        %p946 = pneg %p156
      $region38: #{fwd.10} parent=27 // pred_check_branch
        %948 = sbr.rel (%p946) target = $region40
      $region39: #{fwd.10} parent=27 // pred_region
        _
      $region40: #{fwd.10} parent=27 // pred_fallthru
        _
    $region28: #{fwd.10} parent=5 // pred_fallthru
      _
    %p949 = scmp.le.s32.totalorder 2, %s11
    // Predicated region
    $region41: #{fwd.10} parent=5 // pred_check
      %p950 = pneg %p949
    $region42: #{fwd.10} parent=5 // pred_check_branch
      %952 = sbr.rel (%p950) target = $region44
    $region43: #{fwd.10} parent=5 // pred_region
      %s953 = ssub.s32 %s11, 2
      // Predicated region
      $region45: #{fwd.10} parent=43 // pred_check
        %p954 = pneg %p106
      $region46: #{fwd.10} parent=43 // pred_check_branch
        %956 = sbr.rel (%p954) target = $region48
      $region47: #{fwd.10} parent=43 // pred_region
        %s957 = smul.u32 8, %s22
        %p958 = scmp.lt.s32.totalorder %s957, 15
        %s959 = scalar_select %p958, %s957, 15
        %p960 = scmp.lt.s32.totalorder %s23, 0
        %s961 = scalar_select %p960, %s23, 0
        %s962 = sadd.s32 %s961, %s959
        %s963 = smul.addr %s962, 4
        %s964 = scalar_lea.vmem %s2, %s963
      $region48: #{fwd.10} parent=43 // pred_fallthru
        _
      // Predicated region
      $region49: #{fwd.10} parent=43 // pred_check
        %p965 = pneg %p134
      $region50: #{fwd.10} parent=43 // pred_check_branch
        %967 = sbr.rel (%p965) target = $region52
      $region51: #{fwd.10} parent=43 // pred_region
        %p968 = scmp.lt.s32.totalorder %s22, 1
        %s969 = scalar_select %p968, %s22, 1
        %p970 = scmp.lt.s32.totalorder %s23, 0
        %s971 = scalar_select %p970, %s23, 0
        %s972 = sadd.s32 %s971, %s969
        %s973 = scalar_lea.vmem %s3, %s972
      $region52: #{fwd.10} parent=43 // pred_fallthru
        _
      // Predicated region
      $region53: #{fwd.10} parent=43 // pred_check
        %p974 = pneg %p162
      $region54: #{fwd.10} parent=43 // pred_check_branch
        %976 = sbr.rel (%p974) target = $region56
      $region55: #{fwd.10} parent=43 // pred_region
        %p977 = scmp.lt.s32.totalorder %s22, 1
        %s978 = scalar_select %p977, %s22, 1
        %p979 = scmp.lt.s32.totalorder %s23, 0
        %s980 = scalar_select %p979, %s23, 0
        %s981 = sadd.s32 %s980, %s978
        %s982 = scalar_lea.vmem %s4, %s981
      $region56: #{fwd.10} parent=43 // pred_fallthru
        _
    $region44: #{fwd.10} parent=5 // pred_fallthru
      _
  $region6: #{fwd.10} parent=0 // loop_footer
    %s15 = sadd.s32 1, %s11
  $region7: #{fwd.10} parent=0 // loop_footer_branch
    %10 = sbr.rel target = $region3
  $region8: #{fwd.10} parent=0 // loop_exit
    _

// kernel: fwd.13
$region0: #{fwd.13}
  #allocation0 [shape = 'u32[]', space=smem, size = 0x4, offset = 0x4, fixed_abs, tag = 'smem constant byte address 0x4 - core index']
  #allocation1 [shape = 'u32[72,128]{1,0:T(1,128)}', space=vmem, size = 0x9000, scoped, tag = 'internal scratch']
  %s0 = inlined_call_operand.vmem [shape: bf16[128,128], index: 0, kind: input, shape index: {}]
  %s1 = inlined_call_operand.vmem [shape: f32[1,128], index: 1, kind: input, shape index: {}]
  %s2 = inlined_call_operand.vmem [shape: f32[1,128], index: 2, kind: input, shape index: {}]
  %s3 = inlined_call_operand.vmem [shape: bf16[128,128], index: 3, kind: output, shape index: {}]
  %s4 = sld [smem:[#allocation0]]
  $region45: #{fwd.13} parent=0
    _
  %s6 = ssub.s32 1, %s4
  %s7 = scalar_select 0, %s6, %s4
  loop: start=0, step=1, limit=4
  $region2: #{fwd.13} parent=0 // loop_pre_header
    _
  $region3: #{fwd.13} parent=0 // loop_header
    %s9 = sphi 0, %s13
    %p10 = scmp.ge.s32.totalorder %s9, 4
    %s19 = sphi 0, %s21
    %s22 = sphi 0, %s19
    %s23 = sphi 0, %s22
    %s39 = sphi 0, %s23
    %s43 = sphi 0, %s43
    %s45 = sphi 0, %s43
    %s46 = sphi 0, %s45
    %s60 = sphi 0, %s46
    %s64 = sphi 0, %s64
    %s66 = sphi 0, %s64
    %s67 = sphi 0, %s66
    %s81 = sphi 0, %s67
    %s87 = sphi 0, %s89
    %s90 = sphi 0, %s87
    %s91 = sphi 0, %s90
    %s107 = sphi 0, %s91
  $region4: #{fwd.13} parent=0 // loop_header_branch
    %12 = sbr.rel (%p10) target = $region8
  $region5: #{fwd.13} parent=0 // loop_body
    %s14 = ssub.s32 %s9, 1
    %s15 = ssub.s32 %s9, 2
    %s16 = sadd.s32 %s9, 1
    %s17 = ssub.s32 %s9, %s16
    %p18 = scmp.eq.s32.totalorder %s17, 0
    %s20 = sadd.s32 %s19, 1
    %s21 = scalar_select %p18, %s19, %s20
    %p24 = pneg %p18
    %p25 = scmp.eq.s32.totalorder %s9, 1
    %p26 = por %p24, %p25
    %p27 = scmp.ne.s32.totalorder %s19, %s22
    %p28 = scmp.eq.s32.totalorder %s9, 0
    %p29 = por %p27, %p28
    %p30 = scmp.ne.s32.totalorder %s19, %s22
    %p31 = scmp.eq.s32.totalorder %s14, 1
    %p32 = por %p30, %p31
    %p33 = scmp.ne.s32.totalorder %s22, %s23
    %p34 = scmp.eq.s32.totalorder %s14, 0
    %p35 = por %p33, %p34
    %p36 = scmp.ne.s32.totalorder %s22, %s23
    %p37 = scmp.eq.s32.totalorder %s15, 1
    %p38 = por %p36, %p37
    %p40 = scmp.ne.s32.totalorder %s23, %s39
    %p41 = scmp.eq.s32.totalorder %s15, 0
    %p42 = por %p40, %p41
    %s44 = sadd.s32 %s43, 1
    %p47 = scmp.eq.s32.totalorder %s9, 1
    %p48 = scmp.ne.s32.totalorder %s43, %s45
    %p49 = scmp.eq.s32.totalorder %s9, 0
    %p50 = por %p48, %p49
    %p51 = scmp.ne.s32.totalorder %s43, %s45
    %p52 = scmp.eq.s32.totalorder %s14, 1
    %p53 = por %p51, %p52
    %p54 = scmp.ne.s32.totalorder %s45, %s46
    %p55 = scmp.eq.s32.totalorder %s14, 0
    %p56 = por %p54, %p55
    %p57 = scmp.ne.s32.totalorder %s45, %s46
    %p58 = scmp.eq.s32.totalorder %s15, 1
    %p59 = por %p57, %p58
    %p61 = scmp.ne.s32.totalorder %s46, %s60
    %p62 = scmp.eq.s32.totalorder %s15, 0
    %p63 = por %p61, %p62
    %s65 = sadd.s32 %s64, 1
    %p68 = scmp.eq.s32.totalorder %s9, 1
    %p69 = scmp.ne.s32.totalorder %s64, %s66
    %p70 = scmp.eq.s32.totalorder %s9, 0
    %p71 = por %p69, %p70
    %p72 = scmp.ne.s32.totalorder %s64, %s66
    %p73 = scmp.eq.s32.totalorder %s14, 1
    %p74 = por %p72, %p73
    %p75 = scmp.ne.s32.totalorder %s66, %s67
    %p76 = scmp.eq.s32.totalorder %s14, 0
    %p77 = por %p75, %p76
    %p78 = scmp.ne.s32.totalorder %s66, %s67
    %p79 = scmp.eq.s32.totalorder %s15, 1
    %p80 = por %p78, %p79
    %p82 = scmp.ne.s32.totalorder %s67, %s81
    %p83 = scmp.eq.s32.totalorder %s15, 0
    %p84 = por %p82, %p83
    %s85 = ssub.s32 %s9, %s16
    %p86 = scmp.eq.s32.totalorder %s85, 0
    %s88 = sadd.s32 %s87, 1
    %s89 = scalar_select %p86, %s87, %s88
    %p92 = pneg %p86
    %p93 = scmp.eq.s32.totalorder %s9, 1
    %p94 = por %p92, %p93
    %p95 = scmp.ne.s32.totalorder %s87, %s90
    %p96 = scmp.eq.s32.totalorder %s9, 0
    %p97 = por %p95, %p96
    %p98 = scmp.ne.s32.totalorder %s87, %s90
    %p99 = scmp.eq.s32.totalorder %s14, 1
    %p100 = por %p98, %p99
    %p101 = scmp.ne.s32.totalorder %s90, %s91
    %p102 = scmp.eq.s32.totalorder %s14, 0
    %p103 = por %p101, %p102
    %p104 = scmp.ne.s32.totalorder %s90, %s91
    %p105 = scmp.eq.s32.totalorder %s15, 1
    %p106 = por %p104, %p105
    %p108 = scmp.ne.s32.totalorder %s91, %s107
    %p109 = scmp.eq.s32.totalorder %s15, 0
    %p110 = por %p108, %p109
    %p111 = scmp.le.s32.totalorder 1, %s9
    %p112 = scmp.lt.s32.totalorder %s9, 3
    %p113 = pnand %p111, %p112
    %p114 = pneg %p113
    // Predicated region
    $region9: #{fwd.13} parent=5 // pred_check
      _
    $region10: #{fwd.13} parent=5 // pred_check_branch
      %116 = sbr.rel (%p113) target = $region12
    $region11: #{fwd.13} parent=5 // pred_region
      %s117 = ssub.s32 %s9, 1
      // Predicated region
      $region13: #{fwd.13} parent=11 // pred_check
        %p118 = pneg %p56
      $region14: #{fwd.13} parent=11 // pred_check_branch
        %120 = sbr.rel (%p118) target = $region16
      $region15: #{fwd.13} parent=11 // pred_region
        _
      $region16: #{fwd.13} parent=11 // pred_fallthru
        _
      // Predicated region
      $region17: #{fwd.13} parent=11 // pred_check
        %p121 = pneg %p77
      $region18: #{fwd.13} parent=11 // pred_check_branch
        %123 = sbr.rel (%p121) target = $region20
      $region19: #{fwd.13} parent=11 // pred_region
        _
      $region20: #{fwd.13} parent=11 // pred_fallthru
        _
    $region12: #{fwd.13} parent=5 // pred_fallthru
      _
    %p124 = scmp.lt.s32.totalorder %s9, 2
    // Predicated region
    $region21: #{fwd.13} parent=5 // pred_check
      %p125 = pneg %p124
    $region22: #{fwd.13} parent=5 // pred_check_branch
      %127 = sbr.rel (%p125) target = $region24
    $region23: #{fwd.13} parent=5 // pred_region
      // Predicated region
      $region25: #{fwd.13} parent=23 // pred_check
        %p128 = pneg %p29
      $region26: #{fwd.13} parent=23 // pred_check_branch
        %130 = sbr.rel (%p128) target = $region28
      $region27: #{fwd.13} parent=23 // pred_region
        %s131 = smul.u32 8, %s9
        %p132 = scmp.lt.s32.totalorder %s131, 15
        %s133 = scalar_select %p132, %s131, 15
        %s134 = smul.addr %s133, 4
        %s135 = scalar_lea.vmem %s0, %s134
        %s136 = smul.u32 8, %s9
      $region28: #{fwd.13} parent=23 // pred_fallthru
        _
    $region24: #{fwd.13} parent=5 // pred_fallthru
      _
    %p137 = scmp.le.s32.totalorder 1, %s9
    %p138 = scmp.lt.s32.totalorder %s9, 3
    %p139 = pnand %p137, %p138
    %p140 = pneg %p139
    // Predicated region
    $region29: #{fwd.13} parent=5 // pred_check
      _
    $region30: #{fwd.13} parent=5 // pred_check_branch
      %142 = sbr.rel (%p139) target = $region32
    $region31: #{fwd.13} parent=5 // pred_region
      %s143 = ssub.s32 %s9, 1
      %s144 = smul.u32 8, %s14
      %p145 = scmp.lt.s32.totalorder %s144, 15
      %s146 = scalar_select %p145, %s144, 15
      %s147 = smul.addr %s146, 4
      %s148 = scalar_lea.vmem %s0, %s147
      %p149 = pneg %p35
      %p150 = pneg %p32
      %p151 = pneg %p56
      %p152 = pneg %p53
      %p153 = pneg %p77
      %p154 = pneg %p74
      %p155 = pneg %p103
      %p156 = pneg %p100
      %s157 = smul.u32 8, %s14
      %p158 = scmp.lt.s32.totalorder %s157, 15
      %s159 = scalar_select %p158, %s157, 15
      %s160 = smul.addr %s159, 4
      %s161 = scalar_lea.vmem %s3, %s160
      %s162 = smul.u32 8, %s14
      %p163 = scmp.lt.s32.totalorder %s162, 15
      %s164 = scalar_select %p163, %s162, 15
      %s165 = smul.addr %s164, 4
      %s166 = scalar_lea.vmem %s0, %s165
      %s167 = smul.u32 8, %s14
      %s168 = smul.u32 8, %s14
      %p169 = scmp.lt.s32.totalorder %s168, 15
      %s170 = scalar_select %p169, %s168, 15
      %s171 = smul.addr %s170, 4
      %s172 = scalar_lea.vmem %s3, %s171
      %s173 = smul.u32 8, %s14
      %v174 = vld [vmem:[%s166] sm:$0xf]
      %v175 = vld [vmem:[%s166 + $0x4] sm:$0xf]
      %v176 = vld [vmem:[%s166 + $0x8] sm:$0xf]
      %v177 = vld [vmem:[%s166 + $0xc] sm:$0xf]
      %v178 = vld [vmem:[%s166 + $0x10] sm:$0xf]
      %v179 = vld [vmem:[%s166 + $0x14] sm:$0xf]
      %v180 = vld [vmem:[%s166 + $0x18] sm:$0xf]
      %v181 = vld [vmem:[%s166 + $0x1c] sm:$0xf]
      %v182 = vunpack.c.l.bf16 %v174
      %v183 = vunpack.c.l.bf16 %v175
      %v184 = vunpack.c.l.bf16 %v176
      %v185 = vunpack.c.l.bf16 %v177
      %v186 = vunpack.c.l.bf16 %v178
      %v187 = vunpack.c.l.bf16 %v179
      %v188 = vunpack.c.l.bf16 %v180
      %v189 = vunpack.c.l.bf16 %v181
      %v190 = vld [vmem:[%s1] sm:$0x1]
      %v192 = vperm.slane %v190, 0
      %v194 = vmul.f32 %v182, %v192
      %v195 = vmul.f32 %v183, %v192
      %v196 = vmul.f32 %v184, %v192
      %v197 = vmul.f32 %v185, %v192
      %v198 = vmul.f32 %v186, %v192
      %v199 = vmul.f32 %v187, %v192
      %v200 = vmul.f32 %v188, %v192
      %v201 = vmul.f32 %v189, %v192
      %v202 = vld [vmem:[%s2] sm:$0x1]
      %v204 = vperm.slane %v202, 0
      %v206 = vadd.f32 %v194, %v204
      %v207 = vadd.f32 %v195, %v204
      %v208 = vadd.f32 %v196, %v204
      %v209 = vadd.f32 %v197, %v204
      %v210 = vadd.f32 %v198, %v204
      %v211 = vadd.f32 %v199, %v204
      %v212 = vadd.f32 %v200, %v204
      %v213 = vadd.f32 %v201, %v204
      %v214 = vmax.f32 %v206, 0.0
      %v215 = vmax.f32 %v207, 0.0
      %v216 = vmax.f32 %v208, 0.0
      %v217 = vmax.f32 %v209, 0.0
      %v218 = vmax.f32 %v210, 0.0
      %v219 = vmax.f32 %v211, 0.0
      %v220 = vmax.f32 %v212, 0.0
      %v221 = vmax.f32 %v213, 0.0
      %v222 = vpack.c.bf16 %v214, %v214
      %v223 = vpack.c.bf16 %v215, %v215
      %v224 = vpack.c.bf16 %v216, %v216
      %v225 = vpack.c.bf16 %v217, %v217
      %v226 = vpack.c.bf16 %v218, %v218
      %v227 = vpack.c.bf16 %v219, %v219
      %v228 = vpack.c.bf16 %v220, %v220
      %v229 = vpack.c.bf16 %v221, %v221
      %230 = vst [vmem:[%s172] sm:$0xf] %v222
      %231 = vst [vmem:[%s172 + $0x4] sm:$0xf] %v223
      %232 = vst [vmem:[%s172 + $0x8] sm:$0xf] %v224
      %233 = vst [vmem:[%s172 + $0xc] sm:$0xf] %v225
      %234 = vst [vmem:[%s172 + $0x10] sm:$0xf] %v226
      %235 = vst [vmem:[%s172 + $0x14] sm:$0xf] %v227
      %236 = vst [vmem:[%s172 + $0x18] sm:$0xf] %v228
      %237 = vst [vmem:[%s172 + $0x1c] sm:$0xf] %v229
      %s238 = smul.u32 8, %s14
      %p239 = scmp.lt.s32.totalorder %s238, 15
      %s240 = scalar_select %p239, %s238, 15
      %s241 = smul.addr %s240, 4
      %s242 = scalar_lea.vmem %s3, %s241
      // Predicated region
      $region33: #{fwd.13} parent=31 // pred_check
        %p243 = pneg %p100
      $region34: #{fwd.13} parent=31 // pred_check_branch
        %245 = sbr.rel (%p243) target = $region36
      $region35: #{fwd.13} parent=31 // pred_region
        %s246 = smul.u32 8, %s14
      $region36: #{fwd.13} parent=31 // pred_fallthru
        _
    $region32: #{fwd.13} parent=5 // pred_fallthru
      _
    %p247 = scmp.le.s32.totalorder 2, %s9
    // Predicated region
    $region37: #{fwd.13} parent=5 // pred_check
      %p248 = pneg %p247
    $region38: #{fwd.13} parent=5 // pred_check_branch
      %250 = sbr.rel (%p248) target = $region40
    $region39: #{fwd.13} parent=5 // pred_region
      %s251 = ssub.s32 %s9, 2
      // Predicated region
      $region41: #{fwd.13} parent=39 // pred_check
        %p252 = pneg %p106
      $region42: #{fwd.13} parent=39 // pred_check_branch
        %254 = sbr.rel (%p252) target = $region44
      $region43: #{fwd.13} parent=39 // pred_region
        %s255 = smul.u32 8, %s15
        %p256 = scmp.lt.s32.totalorder %s255, 15
        %s257 = scalar_select %p256, %s255, 15
        %s258 = smul.addr %s257, 4
        %s259 = scalar_lea.vmem %s3, %s258
      $region44: #{fwd.13} parent=39 // pred_fallthru
        _
    $region40: #{fwd.13} parent=5 // pred_fallthru
      _
  $region6: #{fwd.13} parent=0 // loop_footer
    %s13 = sadd.s32 1, %s9
  $region7: #{fwd.13} parent=0 // loop_footer_branch
    %8 = sbr.rel target = $region3
  $region8: #{fwd.13} parent=0 // loop_exit
    _

// kernel: fwd.15
$region0: #{fwd.15}
  #allocation0 [shape = 'u32[]', space=smem, size = 0x4, offset = 0x4, fixed_abs, tag = 'smem constant byte address 0x4 - core index']
  #allocation1 [shape = 'u32[72,128]{1,0:T(1,128)}', space=vmem, size = 0x9000, scoped, tag = 'internal scratch']
  %s0 = inlined_call_operand.vmem [shape: bf16[128,128], index: 0, kind: input, shape index: {}]
  %s1 = inlined_call_operand.vmem [shape: f32[1,128], index: 1, kind: input, shape index: {}]
  %s2 = inlined_call_operand.vmem [shape: f32[1,128], index: 2, kind: input, shape index: {}]
  %s3 = inlined_call_operand.vmem [shape: bf16[128,128], index: 3, kind: input, shape index: {}]
  %s4 = inlined_call_operand.vmem [shape: bf16[128,128], index: 4, kind: output, shape index: {}]
  %s5 = sld [smem:[#allocation0]]
  $region49: #{fwd.15} parent=0
    _
  %s7 = ssub.s32 1, %s5
  %s8 = scalar_select 0, %s7, %s5
  loop: start=0, step=1, limit=4
  $region2: #{fwd.15} parent=0 // loop_pre_header
    _
  $region3: #{fwd.15} parent=0 // loop_header
    %s10 = sphi 0, %s14
    %p11 = scmp.ge.s32.totalorder %s10, 4
    %s20 = sphi 0, %s22
    %s23 = sphi 0, %s20
    %s24 = sphi 0, %s23
    %s40 = sphi 0, %s24
    %s44 = sphi 0, %s44
    %s46 = sphi 0, %s44
    %s47 = sphi 0, %s46
    %s61 = sphi 0, %s47
    %s65 = sphi 0, %s65
    %s67 = sphi 0, %s65
    %s68 = sphi 0, %s67
    %s82 = sphi 0, %s68
    %s88 = sphi 0, %s90
    %s91 = sphi 0, %s88
    %s92 = sphi 0, %s91
    %s108 = sphi 0, %s92
    %s114 = sphi 0, %s116
    %s117 = sphi 0, %s114
    %s118 = sphi 0, %s117
    %s134 = sphi 0, %s118
  $region4: #{fwd.15} parent=0 // loop_header_branch
    %13 = sbr.rel (%p11) target = $region8
  $region5: #{fwd.15} parent=0 // loop_body
    %s15 = ssub.s32 %s10, 1
    %s16 = ssub.s32 %s10, 2
    %s17 = sadd.s32 %s10, 1
    %s18 = ssub.s32 %s10, %s17
    %p19 = scmp.eq.s32.totalorder %s18, 0
    %s21 = sadd.s32 %s20, 1
    %s22 = scalar_select %p19, %s20, %s21
    %p25 = pneg %p19
    %p26 = scmp.eq.s32.totalorder %s10, 1
    %p27 = por %p25, %p26
    %p28 = scmp.ne.s32.totalorder %s20, %s23
    %p29 = scmp.eq.s32.totalorder %s10, 0
    %p30 = por %p28, %p29
    %p31 = scmp.ne.s32.totalorder %s20, %s23
    %p32 = scmp.eq.s32.totalorder %s15, 1
    %p33 = por %p31, %p32
    %p34 = scmp.ne.s32.totalorder %s23, %s24
    %p35 = scmp.eq.s32.totalorder %s15, 0
    %p36 = por %p34, %p35
    %p37 = scmp.ne.s32.totalorder %s23, %s24
    %p38 = scmp.eq.s32.totalorder %s16, 1
    %p39 = por %p37, %p38
    %p41 = scmp.ne.s32.totalorder %s24, %s40
    %p42 = scmp.eq.s32.totalorder %s16, 0
    %p43 = por %p41, %p42
    %s45 = sadd.s32 %s44, 1
    %p48 = scmp.eq.s32.totalorder %s10, 1
    %p49 = scmp.ne.s32.totalorder %s44, %s46
    %p50 = scmp.eq.s32.totalorder %s10, 0
    %p51 = por %p49, %p50
    %p52 = scmp.ne.s32.totalorder %s44, %s46
    %p53 = scmp.eq.s32.totalorder %s15, 1
    %p54 = por %p52, %p53
    %p55 = scmp.ne.s32.totalorder %s46, %s47
    %p56 = scmp.eq.s32.totalorder %s15, 0
    %p57 = por %p55, %p56
    %p58 = scmp.ne.s32.totalorder %s46, %s47
    %p59 = scmp.eq.s32.totalorder %s16, 1
    %p60 = por %p58, %p59
    %p62 = scmp.ne.s32.totalorder %s47, %s61
    %p63 = scmp.eq.s32.totalorder %s16, 0
    %p64 = por %p62, %p63
    %s66 = sadd.s32 %s65, 1
    %p69 = scmp.eq.s32.totalorder %s10, 1
    %p70 = scmp.ne.s32.totalorder %s65, %s67
    %p71 = scmp.eq.s32.totalorder %s10, 0
    %p72 = por %p70, %p71
    %p73 = scmp.ne.s32.totalorder %s65, %s67
    %p74 = scmp.eq.s32.totalorder %s15, 1
    %p75 = por %p73, %p74
    %p76 = scmp.ne.s32.totalorder %s67, %s68
    %p77 = scmp.eq.s32.totalorder %s15, 0
    %p78 = por %p76, %p77
    %p79 = scmp.ne.s32.totalorder %s67, %s68
    %p80 = scmp.eq.s32.totalorder %s16, 1
    %p81 = por %p79, %p80
    %p83 = scmp.ne.s32.totalorder %s68, %s82
    %p84 = scmp.eq.s32.totalorder %s16, 0
    %p85 = por %p83, %p84
    %s86 = ssub.s32 %s10, %s17
    %p87 = scmp.eq.s32.totalorder %s86, 0
    %s89 = sadd.s32 %s88, 1
    %s90 = scalar_select %p87, %s88, %s89
    %p93 = pneg %p87
    %p94 = scmp.eq.s32.totalorder %s10, 1
    %p95 = por %p93, %p94
    %p96 = scmp.ne.s32.totalorder %s88, %s91
    %p97 = scmp.eq.s32.totalorder %s10, 0
    %p98 = por %p96, %p97
    %p99 = scmp.ne.s32.totalorder %s88, %s91
    %p100 = scmp.eq.s32.totalorder %s15, 1
    %p101 = por %p99, %p100
    %p102 = scmp.ne.s32.totalorder %s91, %s92
    %p103 = scmp.eq.s32.totalorder %s15, 0
    %p104 = por %p102, %p103
    %p105 = scmp.ne.s32.totalorder %s91, %s92
    %p106 = scmp.eq.s32.totalorder %s16, 1
    %p107 = por %p105, %p106
    %p109 = scmp.ne.s32.totalorder %s92, %s108
    %p110 = scmp.eq.s32.totalorder %s16, 0
    %p111 = por %p109, %p110
    %s112 = ssub.s32 %s10, %s17
    %p113 = scmp.eq.s32.totalorder %s112, 0
    %s115 = sadd.s32 %s114, 1
    %s116 = scalar_select %p113, %s114, %s115
    %p119 = pneg %p113
    %p120 = scmp.eq.s32.totalorder %s10, 1
    %p121 = por %p119, %p120
    %p122 = scmp.ne.s32.totalorder %s114, %s117
    %p123 = scmp.eq.s32.totalorder %s10, 0
    %p124 = por %p122, %p123
    %p125 = scmp.ne.s32.totalorder %s114, %s117
    %p126 = scmp.eq.s32.totalorder %s15, 1
    %p127 = por %p125, %p126
    %p128 = scmp.ne.s32.totalorder %s117, %s118
    %p129 = scmp.eq.s32.totalorder %s15, 0
    %p130 = por %p128, %p129
    %p131 = scmp.ne.s32.totalorder %s117, %s118
    %p132 = scmp.eq.s32.totalorder %s16, 1
    %p133 = por %p131, %p132
    %p135 = scmp.ne.s32.totalorder %s118, %s134
    %p136 = scmp.eq.s32.totalorder %s16, 0
    %p137 = por %p135, %p136
    %p138 = scmp.le.s32.totalorder 1, %s10
    %p139 = scmp.lt.s32.totalorder %s10, 3
    %p140 = pnand %p138, %p139
    %p141 = pneg %p140
    // Predicated region
    $region9: #{fwd.15} parent=5 // pred_check
      _
    $region10: #{fwd.15} parent=5 // pred_check_branch
      %143 = sbr.rel (%p140) target = $region12
    $region11: #{fwd.15} parent=5 // pred_region
      %s144 = ssub.s32 %s10, 1
      // Predicated region
      $region13: #{fwd.15} parent=11 // pred_check
        %p145 = pneg %p57
      $region14: #{fwd.15} parent=11 // pred_check_branch
        %147 = sbr.rel (%p145) target = $region16
      $region15: #{fwd.15} parent=11 // pred_region
        _
      $region16: #{fwd.15} parent=11 // pred_fallthru
        _
      // Predicated region
      $region17: #{fwd.15} parent=11 // pred_check
        %p148 = pneg %p78
      $region18: #{fwd.15} parent=11 // pred_check_branch
        %150 = sbr.rel (%p148) target = $region20
      $region19: #{fwd.15} parent=11 // pred_region
        _
      $region20: #{fwd.15} parent=11 // pred_fallthru
        _
    $region12: #{fwd.15} parent=5 // pred_fallthru
      _
    %p151 = scmp.lt.s32.totalorder %s10, 2
    // Predicated region
    $region21: #{fwd.15} parent=5 // pred_check
      %p152 = pneg %p151
    $region22: #{fwd.15} parent=5 // pred_check_branch
      %154 = sbr.rel (%p152) target = $region24
    $region23: #{fwd.15} parent=5 // pred_region
      // Predicated region
      $region25: #{fwd.15} parent=23 // pred_check
        %p155 = pneg %p30
      $region26: #{fwd.15} parent=23 // pred_check_branch
        %157 = sbr.rel (%p155) target = $region28
      $region27: #{fwd.15} parent=23 // pred_region
        %s158 = smul.u32 8, %s10
        %p159 = scmp.lt.s32.totalorder %s158, 15
        %s160 = scalar_select %p159, %s158, 15
        %s161 = smul.addr %s160, 4
        %s162 = scalar_lea.vmem %s0, %s161
        %s163 = smul.u32 8, %s10
      $region28: #{fwd.15} parent=23 // pred_fallthru
        _
      // Predicated region
      $region29: #{fwd.15} parent=23 // pred_check
        %p164 = pneg %p98
      $region30: #{fwd.15} parent=23 // pred_check_branch
        %166 = sbr.rel (%p164) target = $region32
      $region31: #{fwd.15} parent=23 // pred_region
        %s167 = smul.u32 8, %s10
        %p168 = scmp.lt.s32.totalorder %s167, 15
        %s169 = scalar_select %p168, %s167, 15
        %s170 = smul.addr %s169, 4
        %s171 = scalar_lea.vmem %s3, %s170
        %s172 = smul.u32 8, %s10
      $region32: #{fwd.15} parent=23 // pred_fallthru
        _
    $region24: #{fwd.15} parent=5 // pred_fallthru
      _
    %p173 = scmp.le.s32.totalorder 1, %s10
    %p174 = scmp.lt.s32.totalorder %s10, 3
    %p175 = pnand %p173, %p174
    %p176 = pneg %p175
    // Predicated region
    $region33: #{fwd.15} parent=5 // pred_check
      _
    $region34: #{fwd.15} parent=5 // pred_check_branch
      %178 = sbr.rel (%p175) target = $region36
    $region35: #{fwd.15} parent=5 // pred_region
      %s179 = ssub.s32 %s10, 1
      %s180 = smul.u32 8, %s15
      %p181 = scmp.lt.s32.totalorder %s180, 15
      %s182 = scalar_select %p181, %s180, 15
      %s183 = smul.addr %s182, 4
      %s184 = scalar_lea.vmem %s0, %s183
      %p185 = pneg %p36
      %p186 = pneg %p33
      %p187 = pneg %p57
      %p188 = pneg %p54
      %p189 = pneg %p78
      %p190 = pneg %p75
      %s191 = smul.u32 8, %s15
      %p192 = scmp.lt.s32.totalorder %s191, 15
      %s193 = scalar_select %p192, %s191, 15
      %s194 = smul.addr %s193, 4
      %s195 = scalar_lea.vmem %s3, %s194
      %p196 = pneg %p104
      %p197 = pneg %p101
      %p198 = pneg %p130
      %p199 = pneg %p127
      %s200 = smul.u32 8, %s15
      %p201 = scmp.lt.s32.totalorder %s200, 15
      %s202 = scalar_select %p201, %s200, 15
      %s203 = smul.addr %s202, 4
      %s204 = scalar_lea.vmem %s4, %s203
      %s205 = smul.u32 8, %s15
      %p206 = scmp.lt.s32.totalorder %s205, 15
      %s207 = scalar_select %p206, %s205, 15
      %s208 = smul.addr %s207, 4
      %s209 = scalar_lea.vmem %s0, %s208
      %s210 = smul.u32 8, %s15
      %s211 = smul.u32 8, %s15
      %p212 = scmp.lt.s32.totalorder %s211, 15
      %s213 = scalar_select %p212, %s211, 15
      %s214 = smul.addr %s213, 4
      %s215 = scalar_lea.vmem %s3, %s214
      %s216 = smul.u32 8, %s15
      %s217 = smul.u32 8, %s15
      %p218 = scmp.lt.s32.totalorder %s217, 15
      %s219 = scalar_select %p218, %s217, 15
      %s220 = smul.addr %s219, 4
      %s221 = scalar_lea.vmem %s4, %s220
      %s222 = smul.u32 8, %s15
      %v223 = vld [vmem:[%s209] sm:$0xf]
      %v224 = vld [vmem:[%s209 + $0x4] sm:$0xf]
      %v225 = vld [vmem:[%s209 + $0x8] sm:$0xf]
      %v226 = vld [vmem:[%s209 + $0xc] sm:$0xf]
      %v227 = vld [vmem:[%s209 + $0x10] sm:$0xf]
      %v228 = vld [vmem:[%s209 + $0x14] sm:$0xf]
      %v229 = vld [vmem:[%s209 + $0x18] sm:$0xf]
      %v230 = vld [vmem:[%s209 + $0x1c] sm:$0xf]
      %v231 = vunpack.c.l.bf16 %v223
      %v232 = vunpack.c.l.bf16 %v224
      %v233 = vunpack.c.l.bf16 %v225
      %v234 = vunpack.c.l.bf16 %v226
      %v235 = vunpack.c.l.bf16 %v227
      %v236 = vunpack.c.l.bf16 %v228
      %v237 = vunpack.c.l.bf16 %v229
      %v238 = vunpack.c.l.bf16 %v230
      %v239 = vld [vmem:[%s1] sm:$0x1]
      %v241 = vperm.slane %v239, 0
      %v243 = vmul.f32 %v231, %v241
      %v244 = vmul.f32 %v232, %v241
      %v245 = vmul.f32 %v233, %v241
      %v246 = vmul.f32 %v234, %v241
      %v247 = vmul.f32 %v235, %v241
      %v248 = vmul.f32 %v236, %v241
      %v249 = vmul.f32 %v237, %v241
      %v250 = vmul.f32 %v238, %v241
      %v251 = vld [vmem:[%s2] sm:$0x1]
      %v253 = vperm.slane %v251, 0
      %v255 = vadd.f32 %v243, %v253
      %v256 = vadd.f32 %v244, %v253
      %v257 = vadd.f32 %v245, %v253
      %v258 = vadd.f32 %v246, %v253
      %v259 = vadd.f32 %v247, %v253
      %v260 = vadd.f32 %v248, %v253
      %v261 = vadd.f32 %v249, %v253
      %v262 = vadd.f32 %v250, %v253
      %v263 = vld [vmem:[%s215] sm:$0xf]
      %v264 = vld [vmem:[%s215 + $0x4] sm:$0xf]
      %v265 = vld [vmem:[%s215 + $0x8] sm:$0xf]
      %v266 = vld [vmem:[%s215 + $0xc] sm:$0xf]
      %v267 = vld [vmem:[%s215 + $0x10] sm:$0xf]
      %v268 = vld [vmem:[%s215 + $0x14] sm:$0xf]
      %v269 = vld [vmem:[%s215 + $0x18] sm:$0xf]
      %v270 = vld [vmem:[%s215 + $0x1c] sm:$0xf]
      %v271 = vunpack.c.l.bf16 %v263
      %v272 = vunpack.c.l.bf16 %v264
      %v273 = vunpack.c.l.bf16 %v265
      %v274 = vunpack.c.l.bf16 %v266
      %v275 = vunpack.c.l.bf16 %v267
      %v276 = vunpack.c.l.bf16 %v268
      %v277 = vunpack.c.l.bf16 %v269
      %v278 = vunpack.c.l.bf16 %v270
      %v279 = vadd.f32 %v255, %v271
      %v280 = vadd.f32 %v256, %v272
      %v281 = vadd.f32 %v257, %v273
      %v282 = vadd.f32 %v258, %v274
      %v283 = vadd.f32 %v259, %v275
      %v284 = vadd.f32 %v260, %v276
      %v285 = vadd.f32 %v261, %v277
      %v286 = vadd.f32 %v262, %v278
      %v287 = vmax.f32 %v279, 0.0
      %v288 = vmax.f32 %v280, 0.0
      %v289 = vmax.f32 %v281, 0.0
      %v290 = vmax.f32 %v282, 0.0
      %v291 = vmax.f32 %v283, 0.0
      %v292 = vmax.f32 %v284, 0.0
      %v293 = vmax.f32 %v285, 0.0
      %v294 = vmax.f32 %v286, 0.0
      %v295 = vpack.c.bf16 %v287, %v287
      %v296 = vpack.c.bf16 %v288, %v288
      %v297 = vpack.c.bf16 %v289, %v289
      %v298 = vpack.c.bf16 %v290, %v290
      %v299 = vpack.c.bf16 %v291, %v291
      %v300 = vpack.c.bf16 %v292, %v292
      %v301 = vpack.c.bf16 %v293, %v293
      %v302 = vpack.c.bf16 %v294, %v294
      %303 = vst [vmem:[%s221] sm:$0xf] %v295
      %304 = vst [vmem:[%s221 + $0x4] sm:$0xf] %v296
      %305 = vst [vmem:[%s221 + $0x8] sm:$0xf] %v297
      %306 = vst [vmem:[%s221 + $0xc] sm:$0xf] %v298
      %307 = vst [vmem:[%s221 + $0x10] sm:$0xf] %v299
      %308 = vst [vmem:[%s221 + $0x14] sm:$0xf] %v300
      %309 = vst [vmem:[%s221 + $0x18] sm:$0xf] %v301
      %310 = vst [vmem:[%s221 + $0x1c] sm:$0xf] %v302
      %s311 = smul.u32 8, %s15
      %p312 = scmp.lt.s32.totalorder %s311, 15
      %s313 = scalar_select %p312, %s311, 15
      %s314 = smul.addr %s313, 4
      %s315 = scalar_lea.vmem %s4, %s314
      // Predicated region
      $region37: #{fwd.15} parent=35 // pred_check
        %p316 = pneg %p127
      $region38: #{fwd.15} parent=35 // pred_check_branch
        %318 = sbr.rel (%p316) target = $region40
      $region39: #{fwd.15} parent=35 // pred_region
        %s319 = smul.u32 8, %s15
      $region40: #{fwd.15} parent=35 // pred_fallthru
        _
    $region36: #{fwd.15} parent=5 // pred_fallthru
      _
    %p320 = scmp.le.s32.totalorder 2, %s10
    // Predicated region
    $region41: #{fwd.15} parent=5 // pred_check
      %p321 = pneg %p320
    $region42: #{fwd.15} parent=5 // pred_check_branch
      %323 = sbr.rel (%p321) target = $region44
    $region43: #{fwd.15} parent=5 // pred_region
      %s324 = ssub.s32 %s10, 2
      // Predicated region
      $region45: #{fwd.15} parent=43 // pred_check
        %p325 = pneg %p133
      $region46: #{fwd.15} parent=43 // pred_check_branch
        %327 = sbr.rel (%p325) target = $region48
      $region47: #{fwd.15} parent=43 // pred_region
        %s328 = smul.u32 8, %s16
        %p329 = scmp.lt.s32.totalorder %s328, 15
        %s330 = scalar_select %p329, %s328, 15
        %s331 = smul.addr %s330, 4
        %s332 = scalar_lea.vmem %s4, %s331
      $region48: #{fwd.15} parent=43 // pred_fallthru
        _
    $region44: #{fwd.15} parent=5 // pred_fallthru
      _
  $region6: #{fwd.15} parent=0 // loop_footer
    %s14 = sadd.s32 1, %s10
  $region7: #{fwd.15} parent=0 // loop_footer_branch
    %9 = sbr.rel target = $region3
  $region8: #{fwd.15} parent=0 // loop_exit
    _

</llo_original>
